<compile_context>
chip_gen: v6e
topology: v6e:2x2x1
jax: 0.10.0
libtpu: 0.0.40
codegen_flags: <defaults>
</compile_context>

<pallas_src>
import functools

import jax
import jax.numpy as jnp
from jax.experimental import pallas as pl
from jax.experimental.pallas import tpu as pltpu


# --------------------------------------------------------------------------
# kernel
# --------------------------------------------------------------------------
def _make_gat_layer_kernel(num_heads, out_feats, negative_slope,
                           use_residual, apply_elu):
    H, D = num_heads, out_feats
    HD = H * D

    def kernel(*refs):
        if use_residual:
            adj_ref, z_ref, el_ref, er_ref, res_ref, out_ref = refs
        else:
            adj_ref, z_ref, el_ref, er_ref, out_ref = refs
            res_ref = None

        # Additive edge mask, built once per dst tile from the int8 adjacency
        # (replaces the per-head vselects of the previous version).
        bias = jnp.where(adj_ref[...].astype(jnp.int32) > 0, 0.0, -1e30)  # (T, N)

        pieces = []
        for h in range(H):                                   # small, static
            # e[dst, src] = LeakyReLU(el[src] + er[dst])  -- (T, N), f32
            e = er_ref[:, h:h + 1] + el_ref[h:h + 1, :]
            e = jnp.where(e > 0, e, negative_slope * e)
            e = e + bias
            m = jnp.max(e, axis=-1, keepdims=True)           # (T, 1)
            # Non-edges underflow to 0 (exp(-1e30 - m)); no second mask needed.
            p = jnp.exp(e - m)
            s = jnp.sum(p, axis=-1, keepdims=True)
            # Zero-in-degree guard: isolated destinations get all-zero alpha.
            inv_s = jnp.where(m > -1e20, pl.reciprocal(s, approx=True), 0.0)
            alpha = (p * inv_s).astype(jnp.bfloat16)         # attn_drop = identity
            oh = jnp.dot(alpha, z_ref[:, h * D:(h + 1) * D],
                         preferred_element_type=jnp.float32)  # (T, D) f32
            if use_residual:
                oh = oh + res_ref[:, h * D:(h + 1) * D]
            if apply_elu:
                oh = jnp.where(oh > 0, oh, jnp.exp(jnp.minimum(oh, 0.0)) - 1.0)
            pieces.append(oh)

        # Assemble the lane-dense (T, PAD) slab and store it with one
        # full-width (unmasked) store; the wrapper slices off the zero pad.
        t_rows, pad_w = out_ref.shape
        if pad_w > HD:
            pieces.append(jnp.zeros((t_rows, pad_w - HD), jnp.float32))
        out_ref[...] = pieces[0] if len(pieces) == 1 else jnp.concatenate(pieces, axis=-1)

    return kernel


# --------------------------------------------------------------------------
# generation-aware tiling / VMEM sizing
# --------------------------------------------------------------------------
def _vmem_capacity_bytes():
    try:
        return int(pltpu.get_tpu_info().vmem_capacity_bytes)
    except Exception:
        return 128 * 1024 * 1024   # v5e / v6e default; v7x reports 64 MiB


def _layer_vmem_bytes(T, N, H, D, residual, out_pad):
    HD = H * D
    el_rows = ((H + 7) // 8) * 8
    blocked = 2 * (T * N                              # int8 adjacency (dbl-buffered)
                   + 4 * T * H                        # er block
                   + (4 * T * HD if residual else 0)  # residual block
                   + 4 * T * out_pad)                 # padded output block
    resident = 2 * (2 * N * HD + 4 * el_rows * N)     # z (bf16) + el (f32)
    temps = 4 * 4 * T * N                             # bias / e / p f32 temps + slack
    return blocked + resident + temps


def _pick_dst_tile(N, H, D, residual, out_pad, vmem_cap):
    """Largest dst tile that fits the VMEM budget; prefer >=2 tiles (v7x)."""
    budget = int(0.7 * vmem_cap)
    single = None
    for t in (512, 256, 128):
        if N % t != 0 or _layer_vmem_bytes(t, N, H, D, residual, out_pad) > budget:
            continue
        if N // t >= 2:          # keep both v7x TensorCores busy
            return t
        if single is None:
            single = t
    if single is not None:
        return single
    # TODO(synk): pad N_dst to a multiple of 128 (mask tail rows) instead of
    # falling back to a single whole-array block for awkward N.
    return N


# --------------------------------------------------------------------------
# one GATConv layer (eval mode)
# --------------------------------------------------------------------------
def gat_conv(adj_ds_i8, h, params, *, num_heads, out_feats, negative_slope,
             residual, activation, tile_dst=None):
    """adj_ds_i8[dst, src] != 0 iff edge src -> dst.
    Returns the DGL `.flatten(1)` layout: (N, num_heads*out_feats) float32."""
    N, fin = h.shape
    H, D = num_heads, out_feats
    HD = H * D
    PAD = max(128, ((HD + 127) // 128) * 128)     # lane-dense output width
    el_rows = ((H + 7) // 8) * 8

    res_is_identity = residual and (fin == HD)

    # ---- hoisted per-node projections: one wide XLA matmul, done once ----
    #   el[i, h] = sum_d (h @ W)[i, h, d] * attn_l[h, d] = (h @ w_el)[i, h]
    w3 = params["w"].reshape(fin, H, D)
    w_el = jnp.einsum("fhd,hd->fh", w3, params["attn_l"])    # (fin, H)
    w_er = jnp.einsum("fhd,hd->fh", w3, params["attn_r"])    # (fin, H)
    w_wide = jnp.concatenate([params["w"], w_el, w_er], axis=1)
    proj = jnp.dot(h, w_wide)                                # (N, HD + 2H) f32
    z = proj[:, :HD].astype(jnp.bfloat16)                    # MXU rhs for alpha @ z
    el_t = proj[:, HD:HD + H].T                              # (H, N) f32
    el_pad = jnp.pad(el_t, ((0, el_rows - H), (0, 0)))       # 8-row resident slab
    er = proj[:, HD + H:]                                    # (N, H) f32

    res = None
    if residual:
        res = h if res_is_identity else jnp.dot(h, params["res_w"])   # (N, HD) f32

    # ---- generation-aware dst tile & VMEM limit ----
    vmem_cap = _vmem_capacity_bytes()
    T = tile_dst if tile_dst is not None else _pick_dst_tile(
        N, H, D, residual, PAD, vmem_cap)
    if N % T != 0:
        T = N
    num_tiles = N // T

    kernel = _make_gat_layer_kernel(H, D, negative_slope, residual, activation)

    in_specs = [
        pl.BlockSpec((T, N), lambda i: (i, 0)),          # adj (int8) dst-tile rows
        pl.BlockSpec((N, HD), lambda i: (0, 0)),         # z  (bf16, grid-invariant)
        pl.BlockSpec((el_rows, N), lambda i: (0, 0)),    # el (f32, grid-invariant)
        pl.BlockSpec((T, H), lambda i: (i, 0)),          # er dst tile
    ]
    inputs = [adj_ds_i8, z, el_pad, er]
    if residual:
        in_specs.append(pl.BlockSpec((T, HD), lambda i: (i, 0)))
        inputs.append(res)
    out_spec = pl.BlockSpec((T, PAD), lambda i: (i, 0))

    est = _layer_vmem_bytes(T, N, H, D, residual, PAD)
    vmem_limit = int(min(max(int(1.4 * est), 32 * 1024 * 1024),
                         int(0.85 * vmem_cap)))

    flops = (2 * H * N * N * D        # alpha @ z aggregation
             + 8 * H * N * N)         # attention elementwise / softmax
    bytes_accessed = (N * N + 2 * N * HD + 4 * el_rows * N + 4 * N * H
                      + 4 * N * PAD + (4 * N * HD if residual else 0))
    cost = pl.CostEstimate(flops=int(flops), transcendentals=int(H * N * N),
                           bytes_accessed=int(bytes_accessed))

    out_padded = pl.pallas_call(
        kernel,
        out_shape=jax.ShapeDtypeStruct((N, PAD), jnp.float32),
        grid_spec=pltpu.PrefetchScalarGridSpec(
            num_scalar_prefetch=0,
            grid=(num_tiles,),
            in_specs=in_specs,
            out_specs=out_spec,
        ),
        compiler_params=pltpu.CompilerParams(
            dimension_semantics=("parallel",),   # dst tiles independent
            vmem_limit_bytes=vmem_limit,
        ),
        cost_estimate=cost,
    )(*inputs)
    return out_padded[:, :HD]


# --------------------------------------------------------------------------
# GAT_body
# --------------------------------------------------------------------------
def init_gat_body_params(key, num_layers, in_dim, num_hidden, heads, residual):
    """Deterministic (xavier-normal-ish) init matching GAT_body.__init__ shapes."""
    params = []
    fin = in_dim
    for l in range(num_layers + 1):              # num_layers hidden + 1 output layer
        H = heads[l]
        fout = H * num_hidden
        key, k_w, k_al, k_ar, k_r = jax.random.split(key, 5)
        gain = jnp.sqrt(2.0)
        p = {
            "w": gain * jnp.sqrt(2.0 / (fin + fout))
                 * jax.random.normal(k_w, (fin, fout), jnp.float32),
            "attn_l": gain * jnp.sqrt(2.0 / (1 + num_hidden))
                 * jax.random.normal(k_al, (H, num_hidden), jnp.float32),
            "attn_r": gain * jnp.sqrt(2.0 / (1 + num_hidden))
                 * jax.random.normal(k_ar, (H, num_hidden), jnp.float32),
        }
        layer_residual = residual and (l > 0)
        if layer_residual and fin != fout:
            p["res_w"] = gain * jnp.sqrt(2.0 / (fin + fout)) \
                         * jax.random.normal(k_r, (fin, fout), jnp.float32)
        params.append(p)
        fin = fout
    return params


def gat_body_forward(adj, x, params, *, num_layers, num_hidden, heads,
                     negative_slope, residual, tile_dst=None):
    """GAT_body.forward.  adj[src, dst] = 1 iff edge src -> dst."""
    # (dst, src) orientation + int8 adjacency: softmax reduces along lanes and
    # the aggregation matmul needs no (N, N) transpose; 4x less adj traffic.
    adj_ds = (adj.T != 0).astype(jnp.int8)
    h = x
    for l in range(num_layers):
        h = gat_conv(adj_ds, h, params[l], num_heads=heads[l],
                     out_feats=num_hidden, negative_slope=negative_slope,
                     residual=(residual and l > 0), activation=True,
                     tile_dst=tile_dst)
        # .flatten(1) is already the (N, H*D) layer-output layout.
    out = gat_conv(adj_ds, h, params[num_layers], num_heads=heads[-1],
                   out_feats=num_hidden, negative_slope=negative_slope,
                   residual=residual, activation=False, tile_dst=tile_dst)
    N = out.shape[0]
    # logits = last_layer_output.mean(1)  (mean over heads) -- tiny glue in JAX.
    return out.reshape(N, heads[-1], num_hidden).mean(axis=1)


if __name__ == "__main__":
    # Small config: num_layers=2, heads=[2, 2, 1]; N chosen so the dst-tile
    # grid (auto tile 128 -> grid=(2,)) exercises the pipelined path.
    N, in_dim, num_hidden = 256, 16, 8
    num_layers = 2
    heads = [2, 2, 1]
    negative_slope = 0.2
    residual = True
    # TODO(synk): feat_drop/attn_drop (dropout) are eval-mode identities here.

    key = jax.random.PRNGKey(0)
    k_adj, k_x, k_p = jax.random.split(key, 3)

    # Random symmetric graph with self-loops (every node has >= 1 in-edge).
    raw = (jax.random.uniform(k_adj, (N, N)) < 0.05).astype(jnp.float32)
    adj = jnp.where(raw + raw.T + jnp.eye(N, dtype=jnp.float32) > 0, 1.0, 0.0)

    x = jax.random.normal(k_x, (N, in_dim), jnp.float32)
    params = init_gat_body_params(k_p, num_layers, in_dim, num_hidden, heads,
                                  residual)

    fwd = jax.jit(functools.partial(
        gat_body_forward, num_layers=num_layers, num_hidden=num_hidden,
        heads=heads, negative_slope=negative_slope, residual=residual))
    logits = jax.block_until_ready(fwd(adj, x, params))
    assert logits.shape == (N, num_hidden)
    assert bool(jnp.all(jnp.isfinite(logits)))
    print("KERNEL_OK")
</pallas_src>

<mosaic_0001>
module attributes {stable_mosaic.version = 11 : i64} {
  func.func @kernel(%arg0: i32, %arg1: memref<128x256xi8, #tpu.memory_space<vmem>>, %arg2: memref<256x16xbf16, #tpu.memory_space<vmem>>, %arg3: memref<8x256xf32, #tpu.memory_space<vmem>>, %arg4: memref<128x2xf32, #tpu.memory_space<vmem>>, %arg5: memref<128x128xf32, #tpu.memory_space<vmem>>) attributes {dimension_semantics = [#tpu.dimension_semantics<parallel>], iteration_bounds = array<i64: 2>, scalar_prefetch = 0 : i64, scratch_operands = 0 : i64, tpu.core_type = #tpu.core_type<tc>, window_params = [{transform_indices = @transform_0, window_bounds = array<i64: 128, 256>}, {pipeline_mode = #tpu.pipeline_mode<synchronous>, transform_indices = @transform_1, window_bounds = array<i64: 256, 16>}, {pipeline_mode = #tpu.pipeline_mode<synchronous>, transform_indices = @transform_2, window_bounds = array<i64: 8, 256>}, {transform_indices = @transform_3, window_bounds = array<i64: 128, 2>}, {transform_indices = @transform_4, window_bounds = array<i64: 128, 128>}]} {
    %c0 = arith.constant 0 : index
    %c0_0 = arith.constant 0 : index
    %0 = vector.load %arg1[%c0, %c0_0] : memref<128x256xi8, #tpu.memory_space<vmem>>, vector<128x256xi8>
    %1 = arith.extsi %0 : vector<128x256xi8> to vector<128x256xi32>
    %c0_i32 = arith.constant 0 : i32
    %2 = vector.broadcast %c0_i32 : i32 to vector<128x256xi32>
    %3 = arith.cmpi sgt, %1, %2 : vector<128x256xi32>
    %cst = arith.constant 0.000000e+00 : f32
    %cst_1 = arith.constant -1.000000e+30 : f32
    %4 = vector.broadcast %cst : f32 to vector<128x256xf32>
    %5 = vector.broadcast %cst_1 : f32 to vector<128x256xf32>
    %6 = arith.select %3, %4, %5 : vector<128x256xi1>, vector<128x256xf32>
    %c0_2 = arith.constant 0 : index
    %c0_3 = arith.constant 0 : index
    %7 = vector.load %arg4[%c0_2, %c0_3] : memref<128x2xf32, #tpu.memory_space<vmem>>, vector<128x1xf32>
    %c0_4 = arith.constant 0 : index
    %c0_5 = arith.constant 0 : index
    %8 = vector.load %arg3[%c0_4, %c0_5] : memref<8x256xf32, #tpu.memory_space<vmem>>, vector<1x256xf32>
    %9 = vector.broadcast %7 : vector<128x1xf32> to vector<128x256xf32>
    %10 = vector.broadcast %8 : vector<1x256xf32> to vector<128x256xf32>
    %11 = arith.addf %9, %10 : vector<128x256xf32>
    %cst_6 = arith.constant 0.000000e+00 : f32
    %12 = vector.broadcast %cst_6 : f32 to vector<128x256xf32>
    %13 = arith.cmpf ogt, %11, %12 : vector<128x256xf32>
    %cst_7 = arith.constant 2.000000e-01 : f32
    %14 = vector.broadcast %cst_7 : f32 to vector<128x256xf32>
    %15 = arith.mulf %14, %11 : vector<128x256xf32>
    %16 = arith.select %13, %11, %15 : vector<128x256xi1>, vector<128x256xf32>
    %17 = arith.addf %16, %6 : vector<128x256xf32>
    %cst_8 = arith.constant dense<0xFF800000> : vector<128xf32>
    %18 = vector.multi_reduction <maximumf>, %17, %cst_8 [1] : vector<128x256xf32> to vector<128xf32>
    %19 = vector.shape_cast %18 : vector<128xf32> to vector<128x1xf32>
    %20 = vector.broadcast %19 : vector<128x1xf32> to vector<128x256xf32>
    %21 = arith.subf %17, %20 : vector<128x256xf32>
    %22 = math.exp %21 : vector<128x256xf32>
    %cst_9 = arith.constant dense<0.000000e+00> : vector<128xf32>
    %23 = vector.multi_reduction <add>, %22, %cst_9 [1] : vector<128x256xf32> to vector<128xf32>
    %24 = vector.shape_cast %23 : vector<128xf32> to vector<128x1xf32>
    %cst_10 = arith.constant -1.000000e+20 : f32
    %25 = vector.broadcast %cst_10 : f32 to vector<128x1xf32>
    %26 = arith.cmpf ogt, %19, %25 : vector<128x1xf32>
    %27 = tpu.reciprocal %24 {approx = true} : vector<128x1xf32> -> vector<128x1xf32>
    %cst_11 = arith.constant 0.000000e+00 : f32
    %28 = vector.broadcast %cst_11 : f32 to vector<128x1xf32>
    %29 = arith.select %26, %27, %28 : vector<128x1xi1>, vector<128x1xf32>
    %30 = vector.broadcast %29 : vector<128x1xf32> to vector<128x256xf32>
    %31 = arith.mulf %22, %30 : vector<128x256xf32>
    %32 = arith.truncf %31 : vector<128x256xf32> to vector<128x256xbf16>
    %c0_12 = arith.constant 0 : index
    %c0_13 = arith.constant 0 : index
    %33 = vector.load %arg2[%c0_12, %c0_13] : memref<256x16xbf16, #tpu.memory_space<vmem>>, vector<256x8xbf16>
    %cst_14 = arith.constant dense<0.000000e+00> : vector<128x8xf32>
    %34 = tpu.matmul %32, %33, %cst_14 {dimension_numbers = #tpu.dot_dimension_numbers<[1], [0], [0], [1], [0, 0, 1, 1], [], []>} : vector<128x256xbf16>, vector<256x8xbf16>, vector<128x8xf32> -> vector<128x8xf32>
    %cst_15 = arith.constant 0.000000e+00 : f32
    %35 = vector.broadcast %cst_15 : f32 to vector<128x8xf32>
    %36 = arith.cmpf ogt, %34, %35 : vector<128x8xf32>
    %cst_16 = arith.constant 0.000000e+00 : f32
    %37 = vector.broadcast %cst_16 : f32 to vector<128x8xf32>
    %38 = arith.minimumf %34, %37 : vector<128x8xf32>
    %39 = math.exp %38 : vector<128x8xf32>
    %cst_17 = arith.constant 1.000000e+00 : f32
    %40 = vector.broadcast %cst_17 : f32 to vector<128x8xf32>
    %41 = arith.subf %39, %40 : vector<128x8xf32>
    %42 = arith.select %36, %34, %41 : vector<128x8xi1>, vector<128x8xf32>
    %c0_18 = arith.constant 0 : index
    %c1 = arith.constant 1 : index
    %43 = vector.load %arg4[%c0_18, %c1] : memref<128x2xf32, #tpu.memory_space<vmem>>, vector<128x1xf32>
    %c1_19 = arith.constant 1 : index
    %c0_20 = arith.constant 0 : index
    %44 = vector.load %arg3[%c1_19, %c0_20] : memref<8x256xf32, #tpu.memory_space<vmem>>, vector<1x256xf32>
    %45 = vector.broadcast %43 : vector<128x1xf32> to vector<128x256xf32>
    %46 = vector.broadcast %44 : vector<1x256xf32> to vector<128x256xf32>
    %47 = arith.addf %45, %46 : vector<128x256xf32>
    %cst_21 = arith.constant 0.000000e+00 : f32
    %48 = vector.broadcast %cst_21 : f32 to vector<128x256xf32>
    %49 = arith.cmpf ogt, %47, %48 : vector<128x256xf32>
    %cst_22 = arith.constant 2.000000e-01 : f32
    %50 = vector.broadcast %cst_22 : f32 to vector<128x256xf32>
    %51 = arith.mulf %50, %47 : vector<128x256xf32>
    %52 = arith.select %49, %47, %51 : vector<128x256xi1>, vector<128x256xf32>
    %53 = arith.addf %52, %6 : vector<128x256xf32>
    %cst_23 = arith.constant dense<0xFF800000> : vector<128xf32>
    %54 = vector.multi_reduction <maximumf>, %53, %cst_23 [1] : vector<128x256xf32> to vector<128xf32>
    %55 = vector.shape_cast %54 : vector<128xf32> to vector<128x1xf32>
    %56 = vector.broadcast %55 : vector<128x1xf32> to vector<128x256xf32>
    %57 = arith.subf %53, %56 : vector<128x256xf32>
    %58 = math.exp %57 : vector<128x256xf32>
    %cst_24 = arith.constant dense<0.000000e+00> : vector<128xf32>
    %59 = vector.multi_reduction <add>, %58, %cst_24 [1] : vector<128x256xf32> to vector<128xf32>
    %60 = vector.shape_cast %59 : vector<128xf32> to vector<128x1xf32>
    %cst_25 = arith.constant -1.000000e+20 : f32
    %61 = vector.broadcast %cst_25 : f32 to vector<128x1xf32>
    %62 = arith.cmpf ogt, %55, %61 : vector<128x1xf32>
    %63 = tpu.reciprocal %60 {approx = true} : vector<128x1xf32> -> vector<128x1xf32>
    %cst_26 = arith.constant 0.000000e+00 : f32
    %64 = vector.broadcast %cst_26 : f32 to vector<128x1xf32>
    %65 = arith.select %62, %63, %64 : vector<128x1xi1>, vector<128x1xf32>
    %66 = vector.broadcast %65 : vector<128x1xf32> to vector<128x256xf32>
    %67 = arith.mulf %58, %66 : vector<128x256xf32>
    %68 = arith.truncf %67 : vector<128x256xf32> to vector<128x256xbf16>
    %c0_27 = arith.constant 0 : index
    %c8 = arith.constant 8 : index
    %69 = vector.load %arg2[%c0_27, %c8] : memref<256x16xbf16, #tpu.memory_space<vmem>>, vector<256x8xbf16>
    %cst_28 = arith.constant dense<0.000000e+00> : vector<128x8xf32>
    %70 = tpu.matmul %68, %69, %cst_28 {dimension_numbers = #tpu.dot_dimension_numbers<[1], [0], [0], [1], [0, 0, 1, 1], [], []>} : vector<128x256xbf16>, vector<256x8xbf16>, vector<128x8xf32> -> vector<128x8xf32>
    %cst_29 = arith.constant 0.000000e+00 : f32
    %71 = vector.broadcast %cst_29 : f32 to vector<128x8xf32>
    %72 = arith.cmpf ogt, %70, %71 : vector<128x8xf32>
    %cst_30 = arith.constant 0.000000e+00 : f32
    %73 = vector.broadcast %cst_30 : f32 to vector<128x8xf32>
    %74 = arith.minimumf %70, %73 : vector<128x8xf32>
    %75 = math.exp %74 : vector<128x8xf32>
    %cst_31 = arith.constant 1.000000e+00 : f32
    %76 = vector.broadcast %cst_31 : f32 to vector<128x8xf32>
    %77 = arith.subf %75, %76 : vector<128x8xf32>
    %78 = arith.select %72, %70, %77 : vector<128x8xi1>, vector<128x8xf32>
    %cst_32 = arith.constant 0.000000e+00 : f32
    %79 = vector.broadcast %cst_32 : f32 to vector<128x112xf32>
    %80 = tpu.concatenate %42, %78, %79 in 1 : vector<128x8xf32>, vector<128x8xf32>, vector<128x112xf32> -> vector<128x128xf32>
    %c0_33 = arith.constant 0 : index
    %c0_34 = arith.constant 0 : index
    %81 = vector.load %arg5[%c0_33, %c0_34] : memref<128x128xf32, #tpu.memory_space<vmem>>, vector<128x128xf32>
    tpu.vector_store %arg5[%c0_33, %c0_34], %80 {strides = array<i32>} : memref<128x128xf32, #tpu.memory_space<vmem>>, vector<128x128xf32>,
    return
  }
  func.func @transform_0(%arg0: i32) -> (i32, i32) {
    %c0_i32 = arith.constant 0 : i32
    %c0_i32_0 = arith.constant 0 : i32
    return %arg0, %c0_i32 : i32, i32
  }
  func.func @transform_1(%arg0: i32) -> (i32, i32) {
    %c0_i32 = arith.constant 0 : i32
    %c0_i32_0 = arith.constant 0 : i32
    %c0_i32_1 = arith.constant 0 : i32
    return %c0_i32, %c0_i32_0 : i32, i32
  }
  func.func @transform_2(%arg0: i32) -> (i32, i32) {
    %c0_i32 = arith.constant 0 : i32
    %c0_i32_0 = arith.constant 0 : i32
    %c0_i32_1 = arith.constant 0 : i32
    return %c0_i32, %c0_i32_0 : i32, i32
  }
  func.func @transform_3(%arg0: i32) -> (i32, i32) {
    %c0_i32 = arith.constant 0 : i32
    %c0_i32_0 = arith.constant 0 : i32
    return %arg0, %c0_i32 : i32, i32
  }
  func.func @transform_4(%arg0: i32) -> (i32, i32) {
    %c0_i32 = arith.constant 0 : i32
    %c0_i32_0 = arith.constant 0 : i32
    return %arg0, %c0_i32 : i32, i32
  }
}

module attributes {stable_mosaic.version = 11 : i64} {
  func.func @kernel(%arg0: i32, %arg1: memref<128x256xi8, #tpu.memory_space<vmem>>, %arg2: memref<256x16xbf16, #tpu.memory_space<vmem>>, %arg3: memref<8x256xf32, #tpu.memory_space<vmem>>, %arg4: memref<128x2xf32, #tpu.memory_space<vmem>>, %arg5: memref<128x16xf32, #tpu.memory_space<vmem>>, %arg6: memref<128x128xf32, #tpu.memory_space<vmem>>) attributes {dimension_semantics = [#tpu.dimension_semantics<parallel>], iteration_bounds = array<i64: 2>, scalar_prefetch = 0 : i64, scratch_operands = 0 : i64, tpu.core_type = #tpu.core_type<tc>, window_params = [{transform_indices = @transform_0, window_bounds = array<i64: 128, 256>}, {pipeline_mode = #tpu.pipeline_mode<synchronous>, transform_indices = @transform_1, window_bounds = array<i64: 256, 16>}, {pipeline_mode = #tpu.pipeline_mode<synchronous>, transform_indices = @transform_2, window_bounds = array<i64: 8, 256>}, {transform_indices = @transform_3, window_bounds = array<i64: 128, 2>}, {transform_indices = @transform_4, window_bounds = array<i64: 128, 16>}, {transform_indices = @transform_5, window_bounds = array<i64: 128, 128>}]} {
    %c0 = arith.constant 0 : index
    %c0_0 = arith.constant 0 : index
    %0 = vector.load %arg1[%c0, %c0_0] : memref<128x256xi8, #tpu.memory_space<vmem>>, vector<128x256xi8>
    %1 = arith.extsi %0 : vector<128x256xi8> to vector<128x256xi32>
    %c0_i32 = arith.constant 0 : i32
    %2 = vector.broadcast %c0_i32 : i32 to vector<128x256xi32>
    %3 = arith.cmpi sgt, %1, %2 : vector<128x256xi32>
    %cst = arith.constant 0.000000e+00 : f32
    %cst_1 = arith.constant -1.000000e+30 : f32
    %4 = vector.broadcast %cst : f32 to vector<128x256xf32>
    %5 = vector.broadcast %cst_1 : f32 to vector<128x256xf32>
    %6 = arith.select %3, %4, %5 : vector<128x256xi1>, vector<128x256xf32>
    %c0_2 = arith.constant 0 : index
    %c0_3 = arith.constant 0 : index
    %7 = vector.load %arg4[%c0_2, %c0_3] : memref<128x2xf32, #tpu.memory_space<vmem>>, vector<128x1xf32>
    %c0_4 = arith.constant 0 : index
    %c0_5 = arith.constant 0 : index
    %8 = vector.load %arg3[%c0_4, %c0_5] : memref<8x256xf32, #tpu.memory_space<vmem>>, vector<1x256xf32>
    %9 = vector.broadcast %7 : vector<128x1xf32> to vector<128x256xf32>
    %10 = vector.broadcast %8 : vector<1x256xf32> to vector<128x256xf32>
    %11 = arith.addf %9, %10 : vector<128x256xf32>
    %cst_6 = arith.constant 0.000000e+00 : f32
    %12 = vector.broadcast %cst_6 : f32 to vector<128x256xf32>
    %13 = arith.cmpf ogt, %11, %12 : vector<128x256xf32>
    %cst_7 = arith.constant 2.000000e-01 : f32
    %14 = vector.broadcast %cst_7 : f32 to vector<128x256xf32>
    %15 = arith.mulf %14, %11 : vector<128x256xf32>
    %16 = arith.select %13, %11, %15 : vector<128x256xi1>, vector<128x256xf32>
    %17 = arith.addf %16, %6 : vector<128x256xf32>
    %cst_8 = arith.constant dense<0xFF800000> : vector<128xf32>
    %18 = vector.multi_reduction <maximumf>, %17, %cst_8 [1] : vector<128x256xf32> to vector<128xf32>
    %19 = vector.shape_cast %18 : vector<128xf32> to vector<128x1xf32>
    %20 = vector.broadcast %19 : vector<128x1xf32> to vector<128x256xf32>
    %21 = arith.subf %17, %20 : vector<128x256xf32>
    %22 = math.exp %21 : vector<128x256xf32>
    %cst_9 = arith.constant dense<0.000000e+00> : vector<128xf32>
    %23 = vector.multi_reduction <add>, %22, %cst_9 [1] : vector<128x256xf32> to vector<128xf32>
    %24 = vector.shape_cast %23 : vector<128xf32> to vector<128x1xf32>
    %cst_10 = arith.constant -1.000000e+20 : f32
    %25 = vector.broadcast %cst_10 : f32 to vector<128x1xf32>
    %26 = arith.cmpf ogt, %19, %25 : vector<128x1xf32>
    %27 = tpu.reciprocal %24 {approx = true} : vector<128x1xf32> -> vector<128x1xf32>
    %cst_11 = arith.constant 0.000000e+00 : f32
    %28 = vector.broadcast %cst_11 : f32 to vector<128x1xf32>
    %29 = arith.select %26, %27, %28 : vector<128x1xi1>, vector<128x1xf32>
    %30 = vector.broadcast %29 : vector<128x1xf32> to vector<128x256xf32>
    %31 = arith.mulf %22, %30 : vector<128x256xf32>
    %32 = arith.truncf %31 : vector<128x256xf32> to vector<128x256xbf16>
    %c0_12 = arith.constant 0 : index
    %c0_13 = arith.constant 0 : index
    %33 = vector.load %arg2[%c0_12, %c0_13] : memref<256x16xbf16, #tpu.memory_space<vmem>>, vector<256x8xbf16>
    %cst_14 = arith.constant dense<0.000000e+00> : vector<128x8xf32>
    %34 = tpu.matmul %32, %33, %cst_14 {dimension_numbers = #tpu.dot_dimension_numbers<[1], [0], [0], [1], [0, 0, 1, 1], [], []>} : vector<128x256xbf16>, vector<256x8xbf16>, vector<128x8xf32> -> vector<128x8xf32>
    %c0_15 = arith.constant 0 : index
    %c0_16 = arith.constant 0 : index
    %35 = vector.load %arg5[%c0_15, %c0_16] : memref<128x16xf32, #tpu.memory_space<vmem>>, vector<128x8xf32>
    %36 = arith.addf %34, %35 : vector<128x8xf32>
    %cst_17 = arith.constant 0.000000e+00 : f32
    %37 = vector.broadcast %cst_17 : f32 to vector<128x8xf32>
    %38 = arith.cmpf ogt, %36, %37 : vector<128x8xf32>
    %cst_18 = arith.constant 0.000000e+00 : f32
    %39 = vector.broadcast %cst_18 : f32 to vector<128x8xf32>
    %40 = arith.minimumf %36, %39 : vector<128x8xf32>
    %41 = math.exp %40 : vector<128x8xf32>
    %cst_19 = arith.constant 1.000000e+00 : f32
    %42 = vector.broadcast %cst_19 : f32 to vector<128x8xf32>
    %43 = arith.subf %41, %42 : vector<128x8xf32>
    %44 = arith.select %38, %36, %43 : vector<128x8xi1>, vector<128x8xf32>
    %c0_20 = arith.constant 0 : index
    %c1 = arith.constant 1 : index
    %45 = vector.load %arg4[%c0_20, %c1] : memref<128x2xf32, #tpu.memory_space<vmem>>, vector<128x1xf32>
    %c1_21 = arith.constant 1 : index
    %c0_22 = arith.constant 0 : index
    %46 = vector.load %arg3[%c1_21, %c0_22] : memref<8x256xf32, #tpu.memory_space<vmem>>, vector<1x256xf32>
    %47 = vector.broadcast %45 : vector<128x1xf32> to vector<128x256xf32>
    %48 = vector.broadcast %46 : vector<1x256xf32> to vector<128x256xf32>
    %49 = arith.addf %47, %48 : vector<128x256xf32>
    %cst_23 = arith.constant 0.000000e+00 : f32
    %50 = vector.broadcast %cst_23 : f32 to vector<128x256xf32>
    %51 = arith.cmpf ogt, %49, %50 : vector<128x256xf32>
    %cst_24 = arith.constant 2.000000e-01 : f32
    %52 = vector.broadcast %cst_24 : f32 to vector<128x256xf32>
    %53 = arith.mulf %52, %49 : vector<128x256xf32>
    %54 = arith.select %51, %49, %53 : vector<128x256xi1>, vector<128x256xf32>
    %55 = arith.addf %54, %6 : vector<128x256xf32>
    %cst_25 = arith.constant dense<0xFF800000> : vector<128xf32>
    %56 = vector.multi_reduction <maximumf>, %55, %cst_25 [1] : vector<128x256xf32> to vector<128xf32>
    %57 = vector.shape_cast %56 : vector<128xf32> to vector<128x1xf32>
    %58 = vector.broadcast %57 : vector<128x1xf32> to vector<128x256xf32>
    %59 = arith.subf %55, %58 : vector<128x256xf32>
    %60 = math.exp %59 : vector<128x256xf32>
    %cst_26 = arith.constant dense<0.000000e+00> : vector<128xf32>
    %61 = vector.multi_reduction <add>, %60, %cst_26 [1] : vector<128x256xf32> to vector<128xf32>
    %62 = vector.shape_cast %61 : vector<128xf32> to vector<128x1xf32>
    %cst_27 = arith.constant -1.000000e+20 : f32
    %63 = vector.broadcast %cst_27 : f32 to vector<128x1xf32>
    %64 = arith.cmpf ogt, %57, %63 : vector<128x1xf32>
    %65 = tpu.reciprocal %62 {approx = true} : vector<128x1xf32> -> vector<128x1xf32>
    %cst_28 = arith.constant 0.000000e+00 : f32
    %66 = vector.broadcast %cst_28 : f32 to vector<128x1xf32>
    %67 = arith.select %64, %65, %66 : vector<128x1xi1>, vector<128x1xf32>
    %68 = vector.broadcast %67 : vector<128x1xf32> to vector<128x256xf32>
    %69 = arith.mulf %60, %68 : vector<128x256xf32>
    %70 = arith.truncf %69 : vector<128x256xf32> to vector<128x256xbf16>
    %c0_29 = arith.constant 0 : index
    %c8 = arith.constant 8 : index
    %71 = vector.load %arg2[%c0_29, %c8] : memref<256x16xbf16, #tpu.memory_space<vmem>>, vector<256x8xbf16>
    %cst_30 = arith.constant dense<0.000000e+00> : vector<128x8xf32>
    %72 = tpu.matmul %70, %71, %cst_30 {dimension_numbers = #tpu.dot_dimension_numbers<[1], [0], [0], [1], [0, 0, 1, 1], [], []>} : vector<128x256xbf16>, vector<256x8xbf16>, vector<128x8xf32> -> vector<128x8xf32>
    %c0_31 = arith.constant 0 : index
    %c8_32 = arith.constant 8 : index
    %73 = vector.load %arg5[%c0_31, %c8_32] : memref<128x16xf32, #tpu.memory_space<vmem>>, vector<128x8xf32>
    %74 = arith.addf %72, %73 : vector<128x8xf32>
    %cst_33 = arith.constant 0.000000e+00 : f32
    %75 = vector.broadcast %cst_33 : f32 to vector<128x8xf32>
    %76 = arith.cmpf ogt, %74, %75 : vector<128x8xf32>
    %cst_34 = arith.constant 0.000000e+00 : f32
    %77 = vector.broadcast %cst_34 : f32 to vector<128x8xf32>
    %78 = arith.minimumf %74, %77 : vector<128x8xf32>
    %79 = math.exp %78 : vector<128x8xf32>
    %cst_35 = arith.constant 1.000000e+00 : f32
    %80 = vector.broadcast %cst_35 : f32 to vector<128x8xf32>
    %81 = arith.subf %79, %80 : vector<128x8xf32>
    %82 = arith.select %76, %74, %81 : vector<128x8xi1>, vector<128x8xf32>
    %cst_36 = arith.constant 0.000000e+00 : f32
    %83 = vector.broadcast %cst_36 : f32 to vector<128x112xf32>
    %84 = tpu.concatenate %44, %82, %83 in 1 : vector<128x8xf32>, vector<128x8xf32>, vector<128x112xf32> -> vector<128x128xf32>
    %c0_37 = arith.constant 0 : index
    %c0_38 = arith.constant 0 : index
    %85 = vector.load %arg6[%c0_37, %c0_38] : memref<128x128xf32, #tpu.memory_space<vmem>>, vector<128x128xf32>
    tpu.vector_store %arg6[%c0_37, %c0_38], %84 {strides = array<i32>} : memref<128x128xf32, #tpu.memory_space<vmem>>, vector<128x128xf32>,
    return
  }
  func.func @transform_0(%arg0: i32) -> (i32, i32) {
    %c0_i32 = arith.constant 0 : i32
    %c0_i32_0 = arith.constant 0 : i32
    return %arg0, %c0_i32 : i32, i32
  }
  func.func @transform_1(%arg0: i32) -> (i32, i32) {
    %c0_i32 = arith.constant 0 : i32
    %c0_i32_0 = arith.constant 0 : i32
    %c0_i32_1 = arith.constant 0 : i32
    return %c0_i32, %c0_i32_0 : i32, i32
  }
  func.func @transform_2(%arg0: i32) -> (i32, i32) {
    %c0_i32 = arith.constant 0 : i32
    %c0_i32_0 = arith.constant 0 : i32
    %c0_i32_1 = arith.constant 0 : i32
    return %c0_i32, %c0_i32_0 : i32, i32
  }
  func.func @transform_3(%arg0: i32) -> (i32, i32) {
    %c0_i32 = arith.constant 0 : i32
    %c0_i32_0 = arith.constant 0 : i32
    return %arg0, %c0_i32 : i32, i32
  }
  func.func @transform_4(%arg0: i32) -> (i32, i32) {
    %c0_i32 = arith.constant 0 : i32
    %c0_i32_0 = arith.constant 0 : i32
    return %arg0, %c0_i32 : i32, i32
  }
  func.func @transform_5(%arg0: i32) -> (i32, i32) {
    %c0_i32 = arith.constant 0 : i32
    %c0_i32_0 = arith.constant 0 : i32
    return %arg0, %c0_i32 : i32, i32
  }
}

module attributes {stable_mosaic.version = 11 : i64} {
  func.func @kernel(%arg0: i32, %arg1: memref<128x256xi8, #tpu.memory_space<vmem>>, %arg2: memref<256x8xbf16, #tpu.memory_space<vmem>>, %arg3: memref<8x256xf32, #tpu.memory_space<vmem>>, %arg4: memref<128x1xf32, #tpu.memory_space<vmem>>, %arg5: memref<128x8xf32, #tpu.memory_space<vmem>>, %arg6: memref<128x128xf32, #tpu.memory_space<vmem>>) attributes {dimension_semantics = [#tpu.dimension_semantics<parallel>], iteration_bounds = array<i64: 2>, scalar_prefetch = 0 : i64, scratch_operands = 0 : i64, tpu.core_type = #tpu.core_type<tc>, window_params = [{transform_indices = @transform_0, window_bounds = array<i64: 128, 256>}, {pipeline_mode = #tpu.pipeline_mode<synchronous>, transform_indices = @transform_1, window_bounds = array<i64: 256, 8>}, {pipeline_mode = #tpu.pipeline_mode<synchronous>, transform_indices = @transform_2, window_bounds = array<i64: 8, 256>}, {transform_indices = @transform_3, window_bounds = array<i64: 128, 1>}, {transform_indices = @transform_4, window_bounds = array<i64: 128, 8>}, {transform_indices = @transform_5, window_bounds = array<i64: 128, 128>}]} {
    %c0 = arith.constant 0 : index
    %c0_0 = arith.constant 0 : index
    %0 = vector.load %arg1[%c0, %c0_0] : memref<128x256xi8, #tpu.memory_space<vmem>>, vector<128x256xi8>
    %1 = arith.extsi %0 : vector<128x256xi8> to vector<128x256xi32>
    %c0_i32 = arith.constant 0 : i32
    %2 = vector.broadcast %c0_i32 : i32 to vector<128x256xi32>
    %3 = arith.cmpi sgt, %1, %2 : vector<128x256xi32>
    %cst = arith.constant 0.000000e+00 : f32
    %cst_1 = arith.constant -1.000000e+30 : f32
    %4 = vector.broadcast %cst : f32 to vector<128x256xf32>
    %5 = vector.broadcast %cst_1 : f32 to vector<128x256xf32>
    %6 = arith.select %3, %4, %5 : vector<128x256xi1>, vector<128x256xf32>
    %c0_2 = arith.constant 0 : index
    %c0_3 = arith.constant 0 : index
    %7 = vector.load %arg4[%c0_2, %c0_3] : memref<128x1xf32, #tpu.memory_space<vmem>>, vector<128x1xf32>
    %c0_4 = arith.constant 0 : index
    %c0_5 = arith.constant 0 : index
    %8 = vector.load %arg3[%c0_4, %c0_5] : memref<8x256xf32, #tpu.memory_space<vmem>>, vector<1x256xf32>
    %9 = vector.broadcast %7 : vector<128x1xf32> to vector<128x256xf32>
    %10 = vector.broadcast %8 : vector<1x256xf32> to vector<128x256xf32>
    %11 = arith.addf %9, %10 : vector<128x256xf32>
    %cst_6 = arith.constant 0.000000e+00 : f32
    %12 = vector.broadcast %cst_6 : f32 to vector<128x256xf32>
    %13 = arith.cmpf ogt, %11, %12 : vector<128x256xf32>
    %cst_7 = arith.constant 2.000000e-01 : f32
    %14 = vector.broadcast %cst_7 : f32 to vector<128x256xf32>
    %15 = arith.mulf %14, %11 : vector<128x256xf32>
    %16 = arith.select %13, %11, %15 : vector<128x256xi1>, vector<128x256xf32>
    %17 = arith.addf %16, %6 : vector<128x256xf32>
    %cst_8 = arith.constant dense<0xFF800000> : vector<128xf32>
    %18 = vector.multi_reduction <maximumf>, %17, %cst_8 [1] : vector<128x256xf32> to vector<128xf32>
    %19 = vector.shape_cast %18 : vector<128xf32> to vector<128x1xf32>
    %20 = vector.broadcast %19 : vector<128x1xf32> to vector<128x256xf32>
    %21 = arith.subf %17, %20 : vector<128x256xf32>
    %22 = math.exp %21 : vector<128x256xf32>
    %cst_9 = arith.constant dense<0.000000e+00> : vector<128xf32>
    %23 = vector.multi_reduction <add>, %22, %cst_9 [1] : vector<128x256xf32> to vector<128xf32>
    %24 = vector.shape_cast %23 : vector<128xf32> to vector<128x1xf32>
    %cst_10 = arith.constant -1.000000e+20 : f32
    %25 = vector.broadcast %cst_10 : f32 to vector<128x1xf32>
    %26 = arith.cmpf ogt, %19, %25 : vector<128x1xf32>
    %27 = tpu.reciprocal %24 {approx = true} : vector<128x1xf32> -> vector<128x1xf32>
    %cst_11 = arith.constant 0.000000e+00 : f32
    %28 = vector.broadcast %cst_11 : f32 to vector<128x1xf32>
    %29 = arith.select %26, %27, %28 : vector<128x1xi1>, vector<128x1xf32>
    %30 = vector.broadcast %29 : vector<128x1xf32> to vector<128x256xf32>
    %31 = arith.mulf %22, %30 : vector<128x256xf32>
    %32 = arith.truncf %31 : vector<128x256xf32> to vector<128x256xbf16>
    %c0_12 = arith.constant 0 : index
    %c0_13 = arith.constant 0 : index
    %33 = vector.load %arg2[%c0_12, %c0_13] : memref<256x8xbf16, #tpu.memory_space<vmem>>, vector<256x8xbf16>
    %cst_14 = arith.constant dense<0.000000e+00> : vector<128x8xf32>
    %34 = tpu.matmul %32, %33, %cst_14 {dimension_numbers = #tpu.dot_dimension_numbers<[1], [0], [0], [1], [0, 0, 1, 1], [], []>} : vector<128x256xbf16>, vector<256x8xbf16>, vector<128x8xf32> -> vector<128x8xf32>
    %c0_15 = arith.constant 0 : index
    %c0_16 = arith.constant 0 : index
    %35 = vector.load %arg5[%c0_15, %c0_16] : memref<128x8xf32, #tpu.memory_space<vmem>>, vector<128x8xf32>
    %36 = arith.addf %34, %35 : vector<128x8xf32>
    %cst_17 = arith.constant 0.000000e+00 : f32
    %37 = vector.broadcast %cst_17 : f32 to vector<128x120xf32>
    %38 = tpu.concatenate %36, %37 in 1 : vector<128x8xf32>, vector<128x120xf32> -> vector<128x128xf32>
    %c0_18 = arith.constant 0 : index
    %c0_19 = arith.constant 0 : index
    %39 = vector.load %arg6[%c0_18, %c0_19] : memref<128x128xf32, #tpu.memory_space<vmem>>, vector<128x128xf32>
    tpu.vector_store %arg6[%c0_18, %c0_19], %38 {strides = array<i32>} : memref<128x128xf32, #tpu.memory_space<vmem>>, vector<128x128xf32>,
    return
  }
  func.func @transform_0(%arg0: i32) -> (i32, i32) {
    %c0_i32 = arith.constant 0 : i32
    %c0_i32_0 = arith.constant 0 : i32
    return %arg0, %c0_i32 : i32, i32
  }
  func.func @transform_1(%arg0: i32) -> (i32, i32) {
    %c0_i32 = arith.constant 0 : i32
    %c0_i32_0 = arith.constant 0 : i32
    %c0_i32_1 = arith.constant 0 : i32
    return %c0_i32, %c0_i32_0 : i32, i32
  }
  func.func @transform_2(%arg0: i32) -> (i32, i32) {
    %c0_i32 = arith.constant 0 : i32
    %c0_i32_0 = arith.constant 0 : i32
    %c0_i32_1 = arith.constant 0 : i32
    return %c0_i32, %c0_i32_0 : i32, i32
  }
  func.func @transform_3(%arg0: i32) -> (i32, i32) {
    %c0_i32 = arith.constant 0 : i32
    %c0_i32_0 = arith.constant 0 : i32
    return %arg0, %c0_i32 : i32, i32
  }
  func.func @transform_4(%arg0: i32) -> (i32, i32) {
    %c0_i32 = arith.constant 0 : i32
    %c0_i32_0 = arith.constant 0 : i32
    return %arg0, %c0_i32 : i32, i32
  }
  func.func @transform_5(%arg0: i32) -> (i32, i32) {
    %c0_i32 = arith.constant 0 : i32
    %c0_i32_0 = arith.constant 0 : i32
    return %arg0, %c0_i32 : i32, i32
  }
}

</mosaic_0001>

<llo_original>
// kernel: gat_body_forward.4
$region0: #{gat_body_forward.4}
  #allocation0 [shape = 'u32[]', space=smem, size = 0x4, offset = 0x4, fixed_abs, tag = 'smem constant byte address 0x4 - core index']
  #allocation1 [shape = 'u32[144,128]{1,0:T(1,128)}', space=vmem, size = 0x12000, scoped, tag = 'internal scratch']
  %s0 = inlined_call_operand.vmem [shape: s8[256,256], index: 0, kind: input, shape index: {}]
  %s1 = inlined_call_operand.vmem [shape: bf16[256,16], index: 1, kind: input, shape index: {}]
  %s2 = inlined_call_operand.vmem [shape: f32[8,256], index: 2, kind: input, shape index: {}]
  %s3 = inlined_call_operand.vmem [shape: f32[256,2], index: 3, kind: input, shape index: {}]
  %s4 = inlined_call_operand.vmem [shape: f32[256,16], index: 4, kind: input, shape index: {}]
  %s5 = inlined_call_operand.vmem [shape: f32[256,128], index: 5, kind: output, shape index: {}]
  %s6 = sld [smem:[#allocation0]]
  $region53: #{gat_body_forward.4} parent=0
    _
  %s8 = ssub.s32 1, %s6
  %s9 = scalar_select 0, %s8, %s6
  loop: start=0, step=1, limit=4
  $region2: #{gat_body_forward.4} parent=0 // loop_pre_header
    _
  $region3: #{gat_body_forward.4} parent=0 // loop_header
    %s11 = sphi 0, %s15
    %p12 = scmp.ge.s32.totalorder %s11, 4
    %s21 = sphi 0, %s23
    %s24 = sphi 0, %s21
    %s25 = sphi 0, %s24
    %s41 = sphi 0, %s25
    %s45 = sphi 0, %s45
    %s47 = sphi 0, %s45
    %s48 = sphi 0, %s47
    %s62 = sphi 0, %s48
    %s66 = sphi 0, %s66
    %s68 = sphi 0, %s66
    %s69 = sphi 0, %s68
    %s83 = sphi 0, %s69
    %s89 = sphi 0, %s91
    %s92 = sphi 0, %s89
    %s93 = sphi 0, %s92
    %s109 = sphi 0, %s93
    %s115 = sphi 0, %s117
    %s118 = sphi 0, %s115
    %s119 = sphi 0, %s118
    %s135 = sphi 0, %s119
    %s141 = sphi 0, %s143
    %s144 = sphi 0, %s141
    %s145 = sphi 0, %s144
    %s161 = sphi 0, %s145
  $region4: #{gat_body_forward.4} parent=0 // loop_header_branch
    %14 = sbr.rel (%p12) target = $region8
  $region5: #{gat_body_forward.4} parent=0 // loop_body
    %s16 = ssub.s32 %s11, 1
    %s17 = ssub.s32 %s11, 2
    %s18 = sadd.s32 %s11, 1
    %s19 = ssub.s32 %s11, %s18
    %p20 = scmp.eq.s32.totalorder %s19, 0
    %s22 = sadd.s32 %s21, 1
    %s23 = scalar_select %p20, %s21, %s22
    %p26 = pneg %p20
    %p27 = scmp.eq.s32.totalorder %s11, 1
    %p28 = por %p26, %p27
    %p29 = scmp.ne.s32.totalorder %s21, %s24
    %p30 = scmp.eq.s32.totalorder %s11, 0
    %p31 = por %p29, %p30
    %p32 = scmp.ne.s32.totalorder %s21, %s24
    %p33 = scmp.eq.s32.totalorder %s16, 1
    %p34 = por %p32, %p33
    %p35 = scmp.ne.s32.totalorder %s24, %s25
    %p36 = scmp.eq.s32.totalorder %s16, 0
    %p37 = por %p35, %p36
    %p38 = scmp.ne.s32.totalorder %s24, %s25
    %p39 = scmp.eq.s32.totalorder %s17, 1
    %p40 = por %p38, %p39
    %p42 = scmp.ne.s32.totalorder %s25, %s41
    %p43 = scmp.eq.s32.totalorder %s17, 0
    %p44 = por %p42, %p43
    %s46 = sadd.s32 %s45, 1
    %p49 = scmp.eq.s32.totalorder %s11, 1
    %p50 = scmp.ne.s32.totalorder %s45, %s47
    %p51 = scmp.eq.s32.totalorder %s11, 0
    %p52 = por %p50, %p51
    %p53 = scmp.ne.s32.totalorder %s45, %s47
    %p54 = scmp.eq.s32.totalorder %s16, 1
    %p55 = por %p53, %p54
    %p56 = scmp.ne.s32.totalorder %s47, %s48
    %p57 = scmp.eq.s32.totalorder %s16, 0
    %p58 = por %p56, %p57
    %p59 = scmp.ne.s32.totalorder %s47, %s48
    %p60 = scmp.eq.s32.totalorder %s17, 1
    %p61 = por %p59, %p60
    %p63 = scmp.ne.s32.totalorder %s48, %s62
    %p64 = scmp.eq.s32.totalorder %s17, 0
    %p65 = por %p63, %p64
    %s67 = sadd.s32 %s66, 1
    %p70 = scmp.eq.s32.totalorder %s11, 1
    %p71 = scmp.ne.s32.totalorder %s66, %s68
    %p72 = scmp.eq.s32.totalorder %s11, 0
    %p73 = por %p71, %p72
    %p74 = scmp.ne.s32.totalorder %s66, %s68
    %p75 = scmp.eq.s32.totalorder %s16, 1
    %p76 = por %p74, %p75
    %p77 = scmp.ne.s32.totalorder %s68, %s69
    %p78 = scmp.eq.s32.totalorder %s16, 0
    %p79 = por %p77, %p78
    %p80 = scmp.ne.s32.totalorder %s68, %s69
    %p81 = scmp.eq.s32.totalorder %s17, 1
    %p82 = por %p80, %p81
    %p84 = scmp.ne.s32.totalorder %s69, %s83
    %p85 = scmp.eq.s32.totalorder %s17, 0
    %p86 = por %p84, %p85
    %s87 = ssub.s32 %s11, %s18
    %p88 = scmp.eq.s32.totalorder %s87, 0
    %s90 = sadd.s32 %s89, 1
    %s91 = scalar_select %p88, %s89, %s90
    %p94 = pneg %p88
    %p95 = scmp.eq.s32.totalorder %s11, 1
    %p96 = por %p94, %p95
    %p97 = scmp.ne.s32.totalorder %s89, %s92
    %p98 = scmp.eq.s32.totalorder %s11, 0
    %p99 = por %p97, %p98
    %p100 = scmp.ne.s32.totalorder %s89, %s92
    %p101 = scmp.eq.s32.totalorder %s16, 1
    %p102 = por %p100, %p101
    %p103 = scmp.ne.s32.totalorder %s92, %s93
    %p104 = scmp.eq.s32.totalorder %s16, 0
    %p105 = por %p103, %p104
    %p106 = scmp.ne.s32.totalorder %s92, %s93
    %p107 = scmp.eq.s32.totalorder %s17, 1
    %p108 = por %p106, %p107
    %p110 = scmp.ne.s32.totalorder %s93, %s109
    %p111 = scmp.eq.s32.totalorder %s17, 0
    %p112 = por %p110, %p111
    %s113 = ssub.s32 %s11, %s18
    %p114 = scmp.eq.s32.totalorder %s113, 0
    %s116 = sadd.s32 %s115, 1
    %s117 = scalar_select %p114, %s115, %s116
    %p120 = pneg %p114
    %p121 = scmp.eq.s32.totalorder %s11, 1
    %p122 = por %p120, %p121
    %p123 = scmp.ne.s32.totalorder %s115, %s118
    %p124 = scmp.eq.s32.totalorder %s11, 0
    %p125 = por %p123, %p124
    %p126 = scmp.ne.s32.totalorder %s115, %s118
    %p127 = scmp.eq.s32.totalorder %s16, 1
    %p128 = por %p126, %p127
    %p129 = scmp.ne.s32.totalorder %s118, %s119
    %p130 = scmp.eq.s32.totalorder %s16, 0
    %p131 = por %p129, %p130
    %p132 = scmp.ne.s32.totalorder %s118, %s119
    %p133 = scmp.eq.s32.totalorder %s17, 1
    %p134 = por %p132, %p133
    %p136 = scmp.ne.s32.totalorder %s119, %s135
    %p137 = scmp.eq.s32.totalorder %s17, 0
    %p138 = por %p136, %p137
    %s139 = ssub.s32 %s11, %s18
    %p140 = scmp.eq.s32.totalorder %s139, 0
    %s142 = sadd.s32 %s141, 1
    %s143 = scalar_select %p140, %s141, %s142
    %p146 = pneg %p140
    %p147 = scmp.eq.s32.totalorder %s11, 1
    %p148 = por %p146, %p147
    %p149 = scmp.ne.s32.totalorder %s141, %s144
    %p150 = scmp.eq.s32.totalorder %s11, 0
    %p151 = por %p149, %p150
    %p152 = scmp.ne.s32.totalorder %s141, %s144
    %p153 = scmp.eq.s32.totalorder %s16, 1
    %p154 = por %p152, %p153
    %p155 = scmp.ne.s32.totalorder %s144, %s145
    %p156 = scmp.eq.s32.totalorder %s16, 0
    %p157 = por %p155, %p156
    %p158 = scmp.ne.s32.totalorder %s144, %s145
    %p159 = scmp.eq.s32.totalorder %s17, 1
    %p160 = por %p158, %p159
    %p162 = scmp.ne.s32.totalorder %s145, %s161
    %p163 = scmp.eq.s32.totalorder %s17, 0
    %p164 = por %p162, %p163
    %p165 = scmp.le.s32.totalorder 1, %s11
    %p166 = scmp.lt.s32.totalorder %s11, 3
    %p167 = pnand %p165, %p166
    %p168 = pneg %p167
    // Predicated region
    $region9: #{gat_body_forward.4} parent=5 // pred_check
      _
    $region10: #{gat_body_forward.4} parent=5 // pred_check_branch
      %170 = sbr.rel (%p167) target = $region12
    $region11: #{gat_body_forward.4} parent=5 // pred_region
      %s171 = ssub.s32 %s11, 1
      // Predicated region
      $region13: #{gat_body_forward.4} parent=11 // pred_check
        %p172 = pneg %p58
      $region14: #{gat_body_forward.4} parent=11 // pred_check_branch
        %174 = sbr.rel (%p172) target = $region16
      $region15: #{gat_body_forward.4} parent=11 // pred_region
        _
      $region16: #{gat_body_forward.4} parent=11 // pred_fallthru
        _
      // Predicated region
      $region17: #{gat_body_forward.4} parent=11 // pred_check
        %p175 = pneg %p79
      $region18: #{gat_body_forward.4} parent=11 // pred_check_branch
        %177 = sbr.rel (%p175) target = $region20
      $region19: #{gat_body_forward.4} parent=11 // pred_region
        _
      $region20: #{gat_body_forward.4} parent=11 // pred_fallthru
        _
    $region12: #{gat_body_forward.4} parent=5 // pred_fallthru
      _
    %p178 = scmp.lt.s32.totalorder %s11, 2
    // Predicated region
    $region21: #{gat_body_forward.4} parent=5 // pred_check
      %p179 = pneg %p178
    $region22: #{gat_body_forward.4} parent=5 // pred_check_branch
      %181 = sbr.rel (%p179) target = $region24
    $region23: #{gat_body_forward.4} parent=5 // pred_region
      // Predicated region
      $region25: #{gat_body_forward.4} parent=23 // pred_check
        %p182 = pneg %p31
      $region26: #{gat_body_forward.4} parent=23 // pred_check_branch
        %184 = sbr.rel (%p182) target = $region28
      $region27: #{gat_body_forward.4} parent=23 // pred_region
        %s185 = smul.u32 4, %s11
        %p186 = scmp.lt.s32.totalorder %s185, 7
        %s187 = scalar_select %p186, %s185, 7
        %s188 = smul.addr %s187, 2
        %s189 = smul.addr %s188, 8
        %s190 = scalar_lea.vmem %s0, %s189
        %s191 = smul.u32 4, %s11
      $region28: #{gat_body_forward.4} parent=23 // pred_fallthru
        _
      // Predicated region
      $region29: #{gat_body_forward.4} parent=23 // pred_check
        %p192 = pneg %p99
      $region30: #{gat_body_forward.4} parent=23 // pred_check_branch
        %194 = sbr.rel (%p192) target = $region32
      $region31: #{gat_body_forward.4} parent=23 // pred_region
        %s195 = smul.u32 16, %s11
        %p196 = scmp.lt.s32.totalorder %s195, 31
        %s197 = scalar_select %p196, %s195, 31
        %s198 = smul.addr %s197, 8
        %s199 = scalar_lea.vmem %s3, %s198
        %s200 = smul.u32 16, %s11
      $region32: #{gat_body_forward.4} parent=23 // pred_fallthru
        _
      // Predicated region
      $region33: #{gat_body_forward.4} parent=23 // pred_check
        %p201 = pneg %p125
      $region34: #{gat_body_forward.4} parent=23 // pred_check_branch
        %203 = sbr.rel (%p201) target = $region36
      $region35: #{gat_body_forward.4} parent=23 // pred_region
        %s204 = smul.u32 16, %s11
        %p205 = scmp.lt.s32.totalorder %s204, 31
        %s206 = scalar_select %p205, %s204, 31
        %s207 = smul.addr %s206, 8
        %s208 = scalar_lea.vmem %s4, %s207
        %s209 = smul.u32 16, %s11
      $region36: #{gat_body_forward.4} parent=23 // pred_fallthru
        _
    $region24: #{gat_body_forward.4} parent=5 // pred_fallthru
      _
    %p210 = scmp.le.s32.totalorder 1, %s11
    %p211 = scmp.lt.s32.totalorder %s11, 3
    %p212 = pnand %p210, %p211
    %p213 = pneg %p212
    // Predicated region
    $region37: #{gat_body_forward.4} parent=5 // pred_check
      _
    $region38: #{gat_body_forward.4} parent=5 // pred_check_branch
      %215 = sbr.rel (%p212) target = $region40
    $region39: #{gat_body_forward.4} parent=5 // pred_region
      %s216 = ssub.s32 %s11, 1
      %s217 = smul.u32 4, %s16
      %p218 = scmp.lt.s32.totalorder %s217, 7
      %s219 = scalar_select %p218, %s217, 7
      %s220 = smul.addr %s219, 2
      %s221 = smul.addr %s220, 8
      %s222 = scalar_lea.vmem %s0, %s221
      %p223 = pneg %p37
      %p224 = pneg %p34
      %p225 = pneg %p58
      %p226 = pneg %p55
      %p227 = pneg %p79
      %p228 = pneg %p76
      %s229 = smul.u32 16, %s16
      %p230 = scmp.lt.s32.totalorder %s229, 31
      %s231 = scalar_select %p230, %s229, 31
      %s232 = smul.addr %s231, 8
      %s233 = scalar_lea.vmem %s3, %s232
      %p234 = pneg %p105
      %p235 = pneg %p102
      %s236 = smul.u32 16, %s16
      %p237 = scmp.lt.s32.totalorder %s236, 31
      %s238 = scalar_select %p237, %s236, 31
      %s239 = smul.addr %s238, 8
      %s240 = scalar_lea.vmem %s4, %s239
      %p241 = pneg %p131
      %p242 = pneg %p128
      %p243 = pneg %p157
      %p244 = pneg %p154
      %s245 = smul.u32 16, %s16
      %p246 = scmp.lt.s32.totalorder %s245, 31
      %s247 = scalar_select %p246, %s245, 31
      %s248 = smul.addr %s247, 8
      %s249 = scalar_lea.vmem %s5, %s248
      %s250 = smul.u32 4, %s16
      %p251 = scmp.lt.s32.totalorder %s250, 7
      %s252 = scalar_select %p251, %s250, 7
      %s253 = smul.addr %s252, 2
      %s254 = smul.addr %s253, 8
      %s255 = scalar_lea.vmem %s0, %s254
      %s256 = smul.u32 4, %s16
      %s257 = smul.u32 16, %s16
      %p258 = scmp.lt.s32.totalorder %s257, 31
      %s259 = scalar_select %p258, %s257, 31
      %s260 = smul.addr %s259, 8
      %s261 = scalar_lea.vmem %s3, %s260
      %s262 = smul.u32 16, %s16
      %s263 = smul.u32 16, %s16
      %p264 = scmp.lt.s32.totalorder %s263, 31
      %s265 = scalar_select %p264, %s263, 31
      %s266 = smul.addr %s265, 8
      %s267 = scalar_lea.vmem %s4, %s266
      %s268 = smul.u32 16, %s16
      %s269 = smul.u32 16, %s16
      %p270 = scmp.lt.s32.totalorder %s269, 31
      %s271 = scalar_select %p270, %s269, 31
      %s272 = smul.addr %s271, 8
      %s273 = scalar_lea.vmem %s5, %s272
      %s274 = smul.u32 16, %s16
      %v276 = vld [vmem:[%s255] sm:$0xff]
      %v277 = vld [vmem:[%s255 + $0x8] sm:$0xff]
      %v278 = vld [vmem:[%s255 + $0x10] sm:$0xff]
      %v279 = vld [vmem:[%s255 + $0x18] sm:$0xff]
      %v280 = vld [vmem:[%s255 + $0x20] sm:$0xff]
      %v281 = vld [vmem:[%s255 + $0x28] sm:$0xff]
      %v282 = vld [vmem:[%s255 + $0x30] sm:$0xff]
      %v283 = vld [vmem:[%s255 + $0x38] sm:$0xff]
      %v284 = vunpack.c.0.s8 %v276
      %v285 = vunpack.c.0.s8 %v277
      %v286 = vunpack.c.1.s8 %v276
      %v287 = vunpack.c.1.s8 %v277
      %v288 = vunpack.c.2.s8 %v276
      %v289 = vunpack.c.2.s8 %v277
      %v290 = vunpack.c.3.s8 %v276
      %v291 = vunpack.c.3.s8 %v277
      %v292 = vunpack.c.0.s8 %v278
      %v293 = vunpack.c.0.s8 %v279
      %v294 = vunpack.c.1.s8 %v278
      %v295 = vunpack.c.1.s8 %v279
      %v296 = vunpack.c.2.s8 %v278
      %v297 = vunpack.c.2.s8 %v279
      %v298 = vunpack.c.3.s8 %v278
      %v299 = vunpack.c.3.s8 %v279
      %v300 = vunpack.c.0.s8 %v280
      %v301 = vunpack.c.0.s8 %v281
      %v302 = vunpack.c.1.s8 %v280
      %v303 = vunpack.c.1.s8 %v281
      %v304 = vunpack.c.2.s8 %v280
      %v305 = vunpack.c.2.s8 %v281
      %v306 = vunpack.c.3.s8 %v280
      %v307 = vunpack.c.3.s8 %v281
      %v308 = vunpack.c.0.s8 %v282
      %v309 = vunpack.c.0.s8 %v283
      %v310 = vunpack.c.1.s8 %v282
      %v311 = vunpack.c.1.s8 %v283
      %v312 = vunpack.c.2.s8 %v282
      %v313 = vunpack.c.2.s8 %v283
      %v314 = vunpack.c.3.s8 %v282
      %v315 = vunpack.c.3.s8 %v283
      %vm316 = vcmp.gt.s32.totalorder %v284, 0
      %vm317 = vcmp.gt.s32.totalorder %v285, 0
      %vm318 = vcmp.gt.s32.totalorder %v286, 0
      %vm319 = vcmp.gt.s32.totalorder %v287, 0
      %vm320 = vcmp.gt.s32.totalorder %v288, 0
      %vm321 = vcmp.gt.s32.totalorder %v289, 0
      %vm322 = vcmp.gt.s32.totalorder %v290, 0
      %vm323 = vcmp.gt.s32.totalorder %v291, 0
      %vm324 = vcmp.gt.s32.totalorder %v292, 0
      %vm325 = vcmp.gt.s32.totalorder %v293, 0
      %vm326 = vcmp.gt.s32.totalorder %v294, 0
      %vm327 = vcmp.gt.s32.totalorder %v295, 0
      %vm328 = vcmp.gt.s32.totalorder %v296, 0
      %vm329 = vcmp.gt.s32.totalorder %v297, 0
      %vm330 = vcmp.gt.s32.totalorder %v298, 0
      %vm331 = vcmp.gt.s32.totalorder %v299, 0
      %vm332 = vcmp.gt.s32.totalorder %v300, 0
      %vm333 = vcmp.gt.s32.totalorder %v301, 0
      %vm334 = vcmp.gt.s32.totalorder %v302, 0
      %vm335 = vcmp.gt.s32.totalorder %v303, 0
      %vm336 = vcmp.gt.s32.totalorder %v304, 0
      %vm337 = vcmp.gt.s32.totalorder %v305, 0
      %vm338 = vcmp.gt.s32.totalorder %v306, 0
      %vm339 = vcmp.gt.s32.totalorder %v307, 0
      %vm340 = vcmp.gt.s32.totalorder %v308, 0
      %vm341 = vcmp.gt.s32.totalorder %v309, 0
      %vm342 = vcmp.gt.s32.totalorder %v310, 0
      %vm343 = vcmp.gt.s32.totalorder %v311, 0
      %vm344 = vcmp.gt.s32.totalorder %v312, 0
      %vm345 = vcmp.gt.s32.totalorder %v313, 0
      %vm346 = vcmp.gt.s32.totalorder %v314, 0
      %vm347 = vcmp.gt.s32.totalorder %v315, 0
      %v348 = vsel %vm316, 0.0, -1e+30
      %v349 = vsel %vm317, 0.0, -1e+30
      %v350 = vsel %vm318, 0.0, -1e+30
      %v351 = vsel %vm319, 0.0, -1e+30
      %v352 = vsel %vm320, 0.0, -1e+30
      %v353 = vsel %vm321, 0.0, -1e+30
      %v354 = vsel %vm322, 0.0, -1e+30
      %v355 = vsel %vm323, 0.0, -1e+30
      %v356 = vsel %vm324, 0.0, -1e+30
      %v357 = vsel %vm325, 0.0, -1e+30
      %v358 = vsel %vm326, 0.0, -1e+30
      %v359 = vsel %vm327, 0.0, -1e+30
      %v360 = vsel %vm328, 0.0, -1e+30
      %v361 = vsel %vm329, 0.0, -1e+30
      %v362 = vsel %vm330, 0.0, -1e+30
      %v363 = vsel %vm331, 0.0, -1e+30
      %v364 = vsel %vm332, 0.0, -1e+30
      %v365 = vsel %vm333, 0.0, -1e+30
      %v366 = vsel %vm334, 0.0, -1e+30
      %v367 = vsel %vm335, 0.0, -1e+30
      %v368 = vsel %vm336, 0.0, -1e+30
      %v369 = vsel %vm337, 0.0, -1e+30
      %v370 = vsel %vm338, 0.0, -1e+30
      %v371 = vsel %vm339, 0.0, -1e+30
      %v372 = vsel %vm340, 0.0, -1e+30
      %v373 = vsel %vm341, 0.0, -1e+30
      %v374 = vsel %vm342, 0.0, -1e+30
      %v375 = vsel %vm343, 0.0, -1e+30
      %v376 = vsel %vm344, 0.0, -1e+30
      %v377 = vsel %vm345, 0.0, -1e+30
      %v378 = vsel %vm346, 0.0, -1e+30
      %v379 = vsel %vm347, 0.0, -1e+30
      %v380 = vld [vmem:[%s261] sm:$0xff]
      %v381 = vld [vmem:[%s261 + $0x8] sm:$0xff]
      %v382 = vld [vmem:[%s261 + $0x10] sm:$0xff]
      %v383 = vld [vmem:[%s261 + $0x18] sm:$0xff]
      %v384 = vld [vmem:[%s261 + $0x20] sm:$0xff]
      %v385 = vld [vmem:[%s261 + $0x28] sm:$0xff]
      %v386 = vld [vmem:[%s261 + $0x30] sm:$0xff]
      %v387 = vld [vmem:[%s261 + $0x38] sm:$0xff]
      %v388 = vld [vmem:[%s261 + $0x40] sm:$0xff]
      %v389 = vld [vmem:[%s261 + $0x48] sm:$0xff]
      %v390 = vld [vmem:[%s261 + $0x50] sm:$0xff]
      %v391 = vld [vmem:[%s261 + $0x58] sm:$0xff]
      %v392 = vld [vmem:[%s261 + $0x60] sm:$0xff]
      %v393 = vld [vmem:[%s261 + $0x68] sm:$0xff]
      %v394 = vld [vmem:[%s261 + $0x70] sm:$0xff]
      %v395 = vld [vmem:[%s261 + $0x78] sm:$0xff]
      %v396 = vld [vmem:[%s2] ss:$8 sm:$0x3]
      %398 = vset.pattern.permute.xlu0 0
      %399 = vperm.xlu0 %398, %v380
      %v400 = vpop.permute.xlu0 %399
      %403 = vset.pattern.permute.xlu0 0
      %404 = vperm.xlu0 %403, %v381
      %v405 = vpop.permute.xlu0 %404
      %408 = vset.pattern.permute.xlu0 0
      %409 = vperm.xlu0 %408, %v382
      %v410 = vpop.permute.xlu0 %409
      %413 = vset.pattern.permute.xlu0 0
      %414 = vperm.xlu0 %413, %v383
      %v415 = vpop.permute.xlu0 %414
      %418 = vset.pattern.permute.xlu0 0
      %419 = vperm.xlu0 %418, %v384
      %v420 = vpop.permute.xlu0 %419
      %423 = vset.pattern.permute.xlu0 0
      %424 = vperm.xlu0 %423, %v385
      %v425 = vpop.permute.xlu0 %424
      %428 = vset.pattern.permute.xlu0 0
      %429 = vperm.xlu0 %428, %v386
      %v430 = vpop.permute.xlu0 %429
      %433 = vset.pattern.permute.xlu0 0
      %434 = vperm.xlu0 %433, %v387
      %v435 = vpop.permute.xlu0 %434
      %438 = vset.pattern.permute.xlu0 0
      %439 = vperm.xlu0 %438, %v388
      %v440 = vpop.permute.xlu0 %439
      %443 = vset.pattern.permute.xlu0 0
      %444 = vperm.xlu0 %443, %v389
      %v445 = vpop.permute.xlu0 %444
      %448 = vset.pattern.permute.xlu0 0
      %449 = vperm.xlu0 %448, %v390
      %v450 = vpop.permute.xlu0 %449
      %453 = vset.pattern.permute.xlu0 0
      %454 = vperm.xlu0 %453, %v391
      %v455 = vpop.permute.xlu0 %454
      %458 = vset.pattern.permute.xlu0 0
      %459 = vperm.xlu0 %458, %v392
      %v460 = vpop.permute.xlu0 %459
      %463 = vset.pattern.permute.xlu0 0
      %464 = vperm.xlu0 %463, %v393
      %v465 = vpop.permute.xlu0 %464
      %468 = vset.pattern.permute.xlu0 0
      %469 = vperm.xlu0 %468, %v394
      %v470 = vpop.permute.xlu0 %469
      %473 = vset.pattern.permute.xlu0 0
      %474 = vperm.xlu0 %473, %v395
      %v475 = vpop.permute.xlu0 %474
      %v478 = vlaneseq
      %v479 = vshrl.u32 %v478, 7
      %v480 = vsub.s32 0, %v479
      %v481 = vrot.slane %v396, %v480
      %v482 = vlaneseq
      %v483 = vshrl.u32 %v482, 7
      %v484 = vsub.s32 1, %v483
      %v485 = vrot.slane %v396, %v484
      %v488 = vadd.f32 %v400, %v481
      %v489 = vadd.f32 %v400, %v485
      %v490 = vadd.f32 %v405, %v481
      %v491 = vadd.f32 %v405, %v485
      %v492 = vadd.f32 %v410, %v481
      %v493 = vadd.f32 %v410, %v485
      %v494 = vadd.f32 %v415, %v481
      %v495 = vadd.f32 %v415, %v485
      %v496 = vadd.f32 %v420, %v481
      %v497 = vadd.f32 %v420, %v485
      %v498 = vadd.f32 %v425, %v481
      %v499 = vadd.f32 %v425, %v485
      %v500 = vadd.f32 %v430, %v481
      %v501 = vadd.f32 %v430, %v485
      %v502 = vadd.f32 %v435, %v481
      %v503 = vadd.f32 %v435, %v485
      %v504 = vadd.f32 %v440, %v481
      %v505 = vadd.f32 %v440, %v485
      %v506 = vadd.f32 %v445, %v481
      %v507 = vadd.f32 %v445, %v485
      %v508 = vadd.f32 %v450, %v481
      %v509 = vadd.f32 %v450, %v485
      %v510 = vadd.f32 %v455, %v481
      %v511 = vadd.f32 %v455, %v485
      %v512 = vadd.f32 %v460, %v481
      %v513 = vadd.f32 %v460, %v485
      %v514 = vadd.f32 %v465, %v481
      %v515 = vadd.f32 %v465, %v485
      %v516 = vadd.f32 %v470, %v481
      %v517 = vadd.f32 %v470, %v485
      %v518 = vadd.f32 %v475, %v481
      %v519 = vadd.f32 %v475, %v485
      %vm520 = vcmp.gt.f32.partialorder %v488, 0.0
      %vm521 = vcmp.gt.f32.partialorder %v489, 0.0
      %vm522 = vcmp.gt.f32.partialorder %v490, 0.0
      %vm523 = vcmp.gt.f32.partialorder %v491, 0.0
      %vm524 = vcmp.gt.f32.partialorder %v492, 0.0
      %vm525 = vcmp.gt.f32.partialorder %v493, 0.0
      %vm526 = vcmp.gt.f32.partialorder %v494, 0.0
      %vm527 = vcmp.gt.f32.partialorder %v495, 0.0
      %vm528 = vcmp.gt.f32.partialorder %v496, 0.0
      %vm529 = vcmp.gt.f32.partialorder %v497, 0.0
      %vm530 = vcmp.gt.f32.partialorder %v498, 0.0
      %vm531 = vcmp.gt.f32.partialorder %v499, 0.0
      %vm532 = vcmp.gt.f32.partialorder %v500, 0.0
      %vm533 = vcmp.gt.f32.partialorder %v501, 0.0
      %vm534 = vcmp.gt.f32.partialorder %v502, 0.0
      %vm535 = vcmp.gt.f32.partialorder %v503, 0.0
      %vm536 = vcmp.gt.f32.partialorder %v504, 0.0
      %vm537 = vcmp.gt.f32.partialorder %v505, 0.0
      %vm538 = vcmp.gt.f32.partialorder %v506, 0.0
      %vm539 = vcmp.gt.f32.partialorder %v507, 0.0
      %vm540 = vcmp.gt.f32.partialorder %v508, 0.0
      %vm541 = vcmp.gt.f32.partialorder %v509, 0.0
      %vm542 = vcmp.gt.f32.partialorder %v510, 0.0
      %vm543 = vcmp.gt.f32.partialorder %v511, 0.0
      %vm544 = vcmp.gt.f32.partialorder %v512, 0.0
      %vm545 = vcmp.gt.f32.partialorder %v513, 0.0
      %vm546 = vcmp.gt.f32.partialorder %v514, 0.0
      %vm547 = vcmp.gt.f32.partialorder %v515, 0.0
      %vm548 = vcmp.gt.f32.partialorder %v516, 0.0
      %vm549 = vcmp.gt.f32.partialorder %v517, 0.0
      %vm550 = vcmp.gt.f32.partialorder %v518, 0.0
      %vm551 = vcmp.gt.f32.partialorder %v519, 0.0
      %v552 = vmul.f32 %v488, 0.2
      %v553 = vmul.f32 %v489, 0.2
      %v554 = vmul.f32 %v490, 0.2
      %v555 = vmul.f32 %v491, 0.2
      %v556 = vmul.f32 %v492, 0.2
      %v557 = vmul.f32 %v493, 0.2
      %v558 = vmul.f32 %v494, 0.2
      %v559 = vmul.f32 %v495, 0.2
      %v560 = vmul.f32 %v496, 0.2
      %v561 = vmul.f32 %v497, 0.2
      %v562 = vmul.f32 %v498, 0.2
      %v563 = vmul.f32 %v499, 0.2
      %v564 = vmul.f32 %v500, 0.2
      %v565 = vmul.f32 %v501, 0.2
      %v566 = vmul.f32 %v502, 0.2
      %v567 = vmul.f32 %v503, 0.2
      %v568 = vmul.f32 %v504, 0.2
      %v569 = vmul.f32 %v505, 0.2
      %v570 = vmul.f32 %v506, 0.2
      %v571 = vmul.f32 %v507, 0.2
      %v572 = vmul.f32 %v508, 0.2
      %v573 = vmul.f32 %v509, 0.2
      %v574 = vmul.f32 %v510, 0.2
      %v575 = vmul.f32 %v511, 0.2
      %v576 = vmul.f32 %v512, 0.2
      %v577 = vmul.f32 %v513, 0.2
      %v578 = vmul.f32 %v514, 0.2
      %v579 = vmul.f32 %v515, 0.2
      %v580 = vmul.f32 %v516, 0.2
      %v581 = vmul.f32 %v517, 0.2
      %v582 = vmul.f32 %v518, 0.2
      %v583 = vmul.f32 %v519, 0.2
      %v584 = vsel %vm520, %v488, %v552
      %v585 = vsel %vm521, %v489, %v553
      %v586 = vsel %vm522, %v490, %v554
      %v587 = vsel %vm523, %v491, %v555
      %v588 = vsel %vm524, %v492, %v556
      %v589 = vsel %vm525, %v493, %v557
      %v590 = vsel %vm526, %v494, %v558
      %v591 = vsel %vm527, %v495, %v559
      %v592 = vsel %vm528, %v496, %v560
      %v593 = vsel %vm529, %v497, %v561
      %v594 = vsel %vm530, %v498, %v562
      %v595 = vsel %vm531, %v499, %v563
      %v596 = vsel %vm532, %v500, %v564
      %v597 = vsel %vm533, %v501, %v565
      %v598 = vsel %vm534, %v502, %v566
      %v599 = vsel %vm535, %v503, %v567
      %v600 = vsel %vm536, %v504, %v568
      %v601 = vsel %vm537, %v505, %v569
      %v602 = vsel %vm538, %v506, %v570
      %v603 = vsel %vm539, %v507, %v571
      %v604 = vsel %vm540, %v508, %v572
      %v605 = vsel %vm541, %v509, %v573
      %v606 = vsel %vm542, %v510, %v574
      %v607 = vsel %vm543, %v511, %v575
      %v608 = vsel %vm544, %v512, %v576
      %v609 = vsel %vm545, %v513, %v577
      %v610 = vsel %vm546, %v514, %v578
      %v611 = vsel %vm547, %v515, %v579
      %v612 = vsel %vm548, %v516, %v580
      %v613 = vsel %vm549, %v517, %v581
      %v614 = vsel %vm550, %v518, %v582
      %v615 = vsel %vm551, %v519, %v583
      %v616 = vadd.f32 %v584, %v348
      %v617 = vadd.f32 %v585, %v349
      %v618 = vadd.f32 %v586, %v350
      %v619 = vadd.f32 %v587, %v351
      %v620 = vadd.f32 %v588, %v352
      %v621 = vadd.f32 %v589, %v353
      %v622 = vadd.f32 %v590, %v354
      %v623 = vadd.f32 %v591, %v355
      %v624 = vadd.f32 %v592, %v356
      %v625 = vadd.f32 %v593, %v357
      %v626 = vadd.f32 %v594, %v358
      %v627 = vadd.f32 %v595, %v359
      %v628 = vadd.f32 %v596, %v360
      %v629 = vadd.f32 %v597, %v361
      %v630 = vadd.f32 %v598, %v362
      %v631 = vadd.f32 %v599, %v363
      %v632 = vadd.f32 %v600, %v364
      %v633 = vadd.f32 %v601, %v365
      %v634 = vadd.f32 %v602, %v366
      %v635 = vadd.f32 %v603, %v367
      %v636 = vadd.f32 %v604, %v368
      %v637 = vadd.f32 %v605, %v369
      %v638 = vadd.f32 %v606, %v370
      %v639 = vadd.f32 %v607, %v371
      %v640 = vadd.f32 %v608, %v372
      %v641 = vadd.f32 %v609, %v373
      %v642 = vadd.f32 %v610, %v374
      %v643 = vadd.f32 %v611, %v375
      %v644 = vadd.f32 %v612, %v376
      %v645 = vadd.f32 %v613, %v377
      %v646 = vadd.f32 %v614, %v378
      %v647 = vadd.f32 %v615, %v379
      %v648 = vmax.f32 %v616, %v617
      %649 = vmax.xlane.f32.xlu0 %v648
      %v650 = vpop.xlane.xlu0 %649
      %v651 = vmax.f32 %v618, %v619
      %652 = vmax.xlane.f32.xlu0 %v651
      %v653 = vpop.xlane.xlu0 %652
      %v654 = vmax.f32 %v620, %v621
      %655 = vmax.xlane.f32.xlu0 %v654
      %v656 = vpop.xlane.xlu0 %655
      %v657 = vmax.f32 %v622, %v623
      %658 = vmax.xlane.f32.xlu0 %v657
      %v659 = vpop.xlane.xlu0 %658
      %v660 = vmax.f32 %v624, %v625
      %661 = vmax.xlane.f32.xlu0 %v660
      %v662 = vpop.xlane.xlu0 %661
      %v663 = vmax.f32 %v626, %v627
      %664 = vmax.xlane.f32.xlu0 %v663
      %v665 = vpop.xlane.xlu0 %664
      %v666 = vmax.f32 %v628, %v629
      %667 = vmax.xlane.f32.xlu0 %v666
      %v668 = vpop.xlane.xlu0 %667
      %v669 = vmax.f32 %v630, %v631
      %670 = vmax.xlane.f32.xlu0 %v669
      %v671 = vpop.xlane.xlu0 %670
      %v672 = vmax.f32 %v632, %v633
      %673 = vmax.xlane.f32.xlu0 %v672
      %v674 = vpop.xlane.xlu0 %673
      %v675 = vmax.f32 %v634, %v635
      %676 = vmax.xlane.f32.xlu0 %v675
      %v677 = vpop.xlane.xlu0 %676
      %v678 = vmax.f32 %v636, %v637
      %679 = vmax.xlane.f32.xlu0 %v678
      %v680 = vpop.xlane.xlu0 %679
      %v681 = vmax.f32 %v638, %v639
      %682 = vmax.xlane.f32.xlu0 %v681
      %v683 = vpop.xlane.xlu0 %682
      %v684 = vmax.f32 %v640, %v641
      %685 = vmax.xlane.f32.xlu0 %v684
      %v686 = vpop.xlane.xlu0 %685
      %v687 = vmax.f32 %v642, %v643
      %688 = vmax.xlane.f32.xlu0 %v687
      %v689 = vpop.xlane.xlu0 %688
      %v690 = vmax.f32 %v644, %v645
      %691 = vmax.xlane.f32.xlu0 %v690
      %v692 = vpop.xlane.xlu0 %691
      %v693 = vmax.f32 %v646, %v647
      %694 = vmax.xlane.f32.xlu0 %v693
      %v695 = vpop.xlane.xlu0 %694
      %v696 = vsub.f32 %v616, %v650
      %v697 = vsub.f32 %v617, %v650
      %v698 = vsub.f32 %v618, %v653
      %v699 = vsub.f32 %v619, %v653
      %v700 = vsub.f32 %v620, %v656
      %v701 = vsub.f32 %v621, %v656
      %v702 = vsub.f32 %v622, %v659
      %v703 = vsub.f32 %v623, %v659
      %v704 = vsub.f32 %v624, %v662
      %v705 = vsub.f32 %v625, %v662
      %v706 = vsub.f32 %v626, %v665
      %v707 = vsub.f32 %v627, %v665
      %v708 = vsub.f32 %v628, %v668
      %v709 = vsub.f32 %v629, %v668
      %v710 = vsub.f32 %v630, %v671
      %v711 = vsub.f32 %v631, %v671
      %v712 = vsub.f32 %v632, %v674
      %v713 = vsub.f32 %v633, %v674
      %v714 = vsub.f32 %v634, %v677
      %v715 = vsub.f32 %v635, %v677
      %v716 = vsub.f32 %v636, %v680
      %v717 = vsub.f32 %v637, %v680
      %v718 = vsub.f32 %v638, %v683
      %v719 = vsub.f32 %v639, %v683
      %v720 = vsub.f32 %v640, %v686
      %v721 = vsub.f32 %v641, %v686
      %v722 = vsub.f32 %v642, %v689
      %v723 = vsub.f32 %v643, %v689
      %v724 = vsub.f32 %v644, %v692
      %v725 = vsub.f32 %v645, %v692
      %v726 = vsub.f32 %v646, %v695
      %v727 = vsub.f32 %v647, %v695
      %v728 = vmul.f32 %v696, 1.442695
      %v729 = vpow.pop %v728
      %v730 = vmul.f32 %v697, 1.442695
      %v731 = vpow.pop %v730
      %v732 = vmul.f32 %v698, 1.442695
      %v733 = vpow.pop %v732
      %v734 = vmul.f32 %v699, 1.442695
      %v735 = vpow.pop %v734
      %v736 = vmul.f32 %v700, 1.442695
      %v737 = vpow.pop %v736
      %v738 = vmul.f32 %v701, 1.442695
      %v739 = vpow.pop %v738
      %v740 = vmul.f32 %v702, 1.442695
      %v741 = vpow.pop %v740
      %v742 = vmul.f32 %v703, 1.442695
      %v743 = vpow.pop %v742
      %v744 = vmul.f32 %v704, 1.442695
      %v745 = vpow.pop %v744
      %v746 = vmul.f32 %v705, 1.442695
      %v747 = vpow.pop %v746
      %v748 = vmul.f32 %v706, 1.442695
      %v749 = vpow.pop %v748
      %v750 = vmul.f32 %v707, 1.442695
      %v751 = vpow.pop %v750
      %v752 = vmul.f32 %v708, 1.442695
      %v753 = vpow.pop %v752
      %v754 = vmul.f32 %v709, 1.442695
      %v755 = vpow.pop %v754
      %v756 = vmul.f32 %v710, 1.442695
      %v757 = vpow.pop %v756
      %v758 = vmul.f32 %v711, 1.442695
      %v759 = vpow.pop %v758
      %v760 = vmul.f32 %v712, 1.442695
      %v761 = vpow.pop %v760
      %v762 = vmul.f32 %v713, 1.442695
      %v763 = vpow.pop %v762
      %v764 = vmul.f32 %v714, 1.442695
      %v765 = vpow.pop %v764
      %v766 = vmul.f32 %v715, 1.442695
      %v767 = vpow.pop %v766
      %v768 = vmul.f32 %v716, 1.442695
      %v769 = vpow.pop %v768
      %v770 = vmul.f32 %v717, 1.442695
      %v771 = vpow.pop %v770
      %v772 = vmul.f32 %v718, 1.442695
      %v773 = vpow.pop %v772
      %v774 = vmul.f32 %v719, 1.442695
      %v775 = vpow.pop %v774
      %v776 = vmul.f32 %v720, 1.442695
      %v777 = vpow.pop %v776
      %v778 = vmul.f32 %v721, 1.442695
      %v779 = vpow.pop %v778
      %v780 = vmul.f32 %v722, 1.442695
      %v781 = vpow.pop %v780
      %v782 = vmul.f32 %v723, 1.442695
      %v783 = vpow.pop %v782
      %v784 = vmul.f32 %v724, 1.442695
      %v785 = vpow.pop %v784
      %v786 = vmul.f32 %v725, 1.442695
      %v787 = vpow.pop %v786
      %v788 = vmul.f32 %v726, 1.442695
      %v789 = vpow.pop %v788
      %v790 = vmul.f32 %v727, 1.442695
      %v791 = vpow.pop %v790
      %v792 = vadd.f32 %v729, %v731
      %793 = vadd.xlane.f32.xlu0 %v792
      %v794 = vpop.xlane.xlu0 %793
      %v795 = vadd.f32 %v733, %v735
      %796 = vadd.xlane.f32.xlu0 %v795
      %v797 = vpop.xlane.xlu0 %796
      %v798 = vadd.f32 %v737, %v739
      %799 = vadd.xlane.f32.xlu0 %v798
      %v800 = vpop.xlane.xlu0 %799
      %v801 = vadd.f32 %v741, %v743
      %802 = vadd.xlane.f32.xlu0 %v801
      %v803 = vpop.xlane.xlu0 %802
      %v804 = vadd.f32 %v745, %v747
      %805 = vadd.xlane.f32.xlu0 %v804
      %v806 = vpop.xlane.xlu0 %805
      %v807 = vadd.f32 %v749, %v751
      %808 = vadd.xlane.f32.xlu0 %v807
      %v809 = vpop.xlane.xlu0 %808
      %v810 = vadd.f32 %v753, %v755
      %811 = vadd.xlane.f32.xlu0 %v810
      %v812 = vpop.xlane.xlu0 %811
      %v813 = vadd.f32 %v757, %v759
      %814 = vadd.xlane.f32.xlu0 %v813
      %v815 = vpop.xlane.xlu0 %814
      %v816 = vadd.f32 %v761, %v763
      %817 = vadd.xlane.f32.xlu0 %v816
      %v818 = vpop.xlane.xlu0 %817
      %v819 = vadd.f32 %v765, %v767
      %820 = vadd.xlane.f32.xlu0 %v819
      %v821 = vpop.xlane.xlu0 %820
      %v822 = vadd.f32 %v769, %v771
      %823 = vadd.xlane.f32.xlu0 %v822
      %v824 = vpop.xlane.xlu0 %823
      %v825 = vadd.f32 %v773, %v775
      %826 = vadd.xlane.f32.xlu0 %v825
      %v827 = vpop.xlane.xlu0 %826
      %v828 = vadd.f32 %v777, %v779
      %829 = vadd.xlane.f32.xlu0 %v828
      %v830 = vpop.xlane.xlu0 %829
      %v831 = vadd.f32 %v781, %v783
      %832 = vadd.xlane.f32.xlu0 %v831
      %v833 = vpop.xlane.xlu0 %832
      %v834 = vadd.f32 %v785, %v787
      %835 = vadd.xlane.f32.xlu0 %v834
      %v836 = vpop.xlane.xlu0 %835
      %v837 = vadd.f32 %v789, %v791
      %838 = vadd.xlane.f32.xlu0 %v837
      %v839 = vpop.xlane.xlu0 %838
      %vm840 = vcmp.gt.f32.partialorder %v650, -1e+20
      %vm841 = vcmp.gt.f32.partialorder %v653, -1e+20
      %vm842 = vcmp.gt.f32.partialorder %v656, -1e+20
      %vm843 = vcmp.gt.f32.partialorder %v659, -1e+20
      %vm844 = vcmp.gt.f32.partialorder %v662, -1e+20
      %vm845 = vcmp.gt.f32.partialorder %v665, -1e+20
      %vm846 = vcmp.gt.f32.partialorder %v668, -1e+20
      %vm847 = vcmp.gt.f32.partialorder %v671, -1e+20
      %vm848 = vcmp.gt.f32.partialorder %v674, -1e+20
      %vm849 = vcmp.gt.f32.partialorder %v677, -1e+20
      %vm850 = vcmp.gt.f32.partialorder %v680, -1e+20
      %vm851 = vcmp.gt.f32.partialorder %v683, -1e+20
      %vm852 = vcmp.gt.f32.partialorder %v686, -1e+20
      %vm853 = vcmp.gt.f32.partialorder %v689, -1e+20
      %vm854 = vcmp.gt.f32.partialorder %v692, -1e+20
      %vm855 = vcmp.gt.f32.partialorder %v695, -1e+20
      %v856 = vrcp.pop %v794
      %v857 = vrcp.pop %v797
      %v858 = vrcp.pop %v800
      %v859 = vrcp.pop %v803
      %v860 = vrcp.pop %v806
      %v861 = vrcp.pop %v809
      %v862 = vrcp.pop %v812
      %v863 = vrcp.pop %v815
      %v864 = vrcp.pop %v818
      %v865 = vrcp.pop %v821
      %v866 = vrcp.pop %v824
      %v867 = vrcp.pop %v827
      %v868 = vrcp.pop %v830
      %v869 = vrcp.pop %v833
      %v870 = vrcp.pop %v836
      %v871 = vrcp.pop %v839
      %v872 = vsel %vm840, %v856, 0.0
      %v873 = vsel %vm841, %v857, 0.0
      %v874 = vsel %vm842, %v858, 0.0
      %v875 = vsel %vm843, %v859, 0.0
      %v876 = vsel %vm844, %v860, 0.0
      %v877 = vsel %vm845, %v861, 0.0
      %v878 = vsel %vm846, %v862, 0.0
      %v879 = vsel %vm847, %v863, 0.0
      %v880 = vsel %vm848, %v864, 0.0
      %v881 = vsel %vm849, %v865, 0.0
      %v882 = vsel %vm850, %v866, 0.0
      %v883 = vsel %vm851, %v867, 0.0
      %v884 = vsel %vm852, %v868, 0.0
      %v885 = vsel %vm853, %v869, 0.0
      %v886 = vsel %vm854, %v870, 0.0
      %v887 = vsel %vm855, %v871, 0.0
      %v888 = vmul.f32 %v729, %v872
      %v889 = vmul.f32 %v731, %v872
      %v890 = vmul.f32 %v733, %v873
      %v891 = vmul.f32 %v735, %v873
      %v892 = vmul.f32 %v737, %v874
      %v893 = vmul.f32 %v739, %v874
      %v894 = vmul.f32 %v741, %v875
      %v895 = vmul.f32 %v743, %v875
      %v896 = vmul.f32 %v745, %v876
      %v897 = vmul.f32 %v747, %v876
      %v898 = vmul.f32 %v749, %v877
      %v899 = vmul.f32 %v751, %v877
      %v900 = vmul.f32 %v753, %v878
      %v901 = vmul.f32 %v755, %v878
      %v902 = vmul.f32 %v757, %v879
      %v903 = vmul.f32 %v759, %v879
      %v904 = vmul.f32 %v761, %v880
      %v905 = vmul.f32 %v763, %v880
      %v906 = vmul.f32 %v765, %v881
      %v907 = vmul.f32 %v767, %v881
      %v908 = vmul.f32 %v769, %v882
      %v909 = vmul.f32 %v771, %v882
      %v910 = vmul.f32 %v773, %v883
      %v911 = vmul.f32 %v775, %v883
      %v912 = vmul.f32 %v777, %v884
      %v913 = vmul.f32 %v779, %v884
      %v914 = vmul.f32 %v781, %v885
      %v915 = vmul.f32 %v783, %v885
      %v916 = vmul.f32 %v785, %v886
      %v917 = vmul.f32 %v787, %v886
      %v918 = vmul.f32 %v789, %v887
      %v919 = vmul.f32 %v791, %v887
      %v920 = vpack.c.bf16 %v890, %v888
      %v921 = vpack.c.bf16 %v891, %v889
      %v922 = vpack.c.bf16 %v894, %v892
      %v923 = vpack.c.bf16 %v895, %v893
      %v924 = vpack.c.bf16 %v898, %v896
      %v925 = vpack.c.bf16 %v899, %v897
      %v926 = vpack.c.bf16 %v902, %v900
      %v927 = vpack.c.bf16 %v903, %v901
      %v928 = vpack.c.bf16 %v906, %v904
      %v929 = vpack.c.bf16 %v907, %v905
      %v930 = vpack.c.bf16 %v910, %v908
      %v931 = vpack.c.bf16 %v911, %v909
      %v932 = vpack.c.bf16 %v914, %v912
      %v933 = vpack.c.bf16 %v915, %v913
      %v934 = vpack.c.bf16 %v918, %v916
      %v935 = vpack.c.bf16 %v919, %v917
      %v936 = vld [vmem:[%s1] sm:$0xf]
      %v937 = vld [vmem:[%s1 + $0x4] sm:$0xf]
      %v938 = vld [vmem:[%s1 + $0x8] sm:$0xf]
      %v939 = vld [vmem:[%s1 + $0xc] sm:$0xf]
      %v940 = vld [vmem:[%s1 + $0x10] sm:$0xf]
      %v941 = vld [vmem:[%s1 + $0x14] sm:$0xf]
      %v942 = vld [vmem:[%s1 + $0x18] sm:$0xf]
      %v943 = vld [vmem:[%s1 + $0x1c] sm:$0xf]
      %v944 = vld [vmem:[%s1 + $0x20] sm:$0xf]
      %v945 = vld [vmem:[%s1 + $0x24] sm:$0xf]
      %v946 = vld [vmem:[%s1 + $0x28] sm:$0xf]
      %v947 = vld [vmem:[%s1 + $0x2c] sm:$0xf]
      %v948 = vld [vmem:[%s1 + $0x30] sm:$0xf]
      %v949 = vld [vmem:[%s1 + $0x34] sm:$0xf]
      %v950 = vld [vmem:[%s1 + $0x38] sm:$0xf]
      %v951 = vld [vmem:[%s1 + $0x3c] sm:$0xf]
      %v952 = vld [vmem:[%s1 + $0x40] sm:$0xf]
      %v953 = vld [vmem:[%s1 + $0x44] sm:$0xf]
      %v954 = vld [vmem:[%s1 + $0x48] sm:$0xf]
      %v955 = vld [vmem:[%s1 + $0x4c] sm:$0xf]
      %v956 = vld [vmem:[%s1 + $0x50] sm:$0xf]
      %v957 = vld [vmem:[%s1 + $0x54] sm:$0xf]
      %v958 = vld [vmem:[%s1 + $0x58] sm:$0xf]
      %v959 = vld [vmem:[%s1 + $0x5c] sm:$0xf]
      %v960 = vld [vmem:[%s1 + $0x60] sm:$0xf]
      %v961 = vld [vmem:[%s1 + $0x64] sm:$0xf]
      %v962 = vld [vmem:[%s1 + $0x68] sm:$0xf]
      %v963 = vld [vmem:[%s1 + $0x6c] sm:$0xf]
      %v964 = vld [vmem:[%s1 + $0x70] sm:$0xf]
      %v965 = vld [vmem:[%s1 + $0x74] sm:$0xf]
      %v966 = vld [vmem:[%s1 + $0x78] sm:$0xf]
      %v967 = vld [vmem:[%s1 + $0x7c] sm:$0xf]
      %v968 = vld [vmem:[%s267] sm:$0xff]
      %v969 = vld [vmem:[%s267 + $0x8] sm:$0xff]
      %v970 = vld [vmem:[%s267 + $0x10] sm:$0xff]
      %v971 = vld [vmem:[%s267 + $0x18] sm:$0xff]
      %v972 = vld [vmem:[%s267 + $0x20] sm:$0xff]
      %v973 = vld [vmem:[%s267 + $0x28] sm:$0xff]
      %v974 = vld [vmem:[%s267 + $0x30] sm:$0xff]
      %v975 = vld [vmem:[%s267 + $0x38] sm:$0xff]
      %v976 = vld [vmem:[%s267 + $0x40] sm:$0xff]
      %v977 = vld [vmem:[%s267 + $0x48] sm:$0xff]
      %v978 = vld [vmem:[%s267 + $0x50] sm:$0xff]
      %v979 = vld [vmem:[%s267 + $0x58] sm:$0xff]
      %v980 = vld [vmem:[%s267 + $0x60] sm:$0xff]
      %v981 = vld [vmem:[%s267 + $0x68] sm:$0xff]
      %v982 = vld [vmem:[%s267 + $0x70] sm:$0xff]
      %v983 = vld [vmem:[%s267 + $0x78] sm:$0xff]
      %v1016 = vunpack.c.l.b16 %v936
      %v1017 = vunpack.c.l.b16 %v937
      %v1018 = vunpack.c.l.b16 %v938
      %v1019 = vunpack.c.l.b16 %v939
      %v1020 = vunpack.c.l.b16 %v940
      %v1021 = vunpack.c.l.b16 %v941
      %v1022 = vunpack.c.l.b16 %v942
      %v1023 = vunpack.c.l.b16 %v943
      %v1024 = vunpack.c.l.b16 %v944
      %v1025 = vunpack.c.l.b16 %v945
      %v1026 = vunpack.c.l.b16 %v946
      %v1027 = vunpack.c.l.b16 %v947
      %v1028 = vunpack.c.l.b16 %v948
      %v1029 = vunpack.c.l.b16 %v949
      %v1030 = vunpack.c.l.b16 %v950
      %v1031 = vunpack.c.l.b16 %v951
      %v1032 = vunpack.c.l.b16 %v952
      %v1033 = vunpack.c.l.b16 %v953
      %v1034 = vunpack.c.l.b16 %v954
      %v1035 = vunpack.c.l.b16 %v955
      %v1036 = vunpack.c.l.b16 %v956
      %v1037 = vunpack.c.l.b16 %v957
      %v1038 = vunpack.c.l.b16 %v958
      %v1039 = vunpack.c.l.b16 %v959
      %v1040 = vunpack.c.l.b16 %v960
      %v1041 = vunpack.c.l.b16 %v961
      %v1042 = vunpack.c.l.b16 %v962
      %v1043 = vunpack.c.l.b16 %v963
      %v1044 = vunpack.c.l.b16 %v964
      %v1045 = vunpack.c.l.b16 %v965
      %v1046 = vunpack.c.l.b16 %v966
      %v1047 = vunpack.c.l.b16 %v967
      %v1048 = vpack.c.b16 %v1017, %v1016
      %v1049 = vpack.c.b16 %v1019, %v1018
      %v1050 = vpack.c.b16 %v1021, %v1020
      %v1051 = vpack.c.b16 %v1023, %v1022
      %v1052 = vpack.c.b16 %v1025, %v1024
      %v1053 = vpack.c.b16 %v1027, %v1026
      %v1054 = vpack.c.b16 %v1029, %v1028
      %v1055 = vpack.c.b16 %v1031, %v1030
      %v1056 = vpack.c.b16 %v1033, %v1032
      %v1057 = vpack.c.b16 %v1035, %v1034
      %v1058 = vpack.c.b16 %v1037, %v1036
      %v1059 = vpack.c.b16 %v1039, %v1038
      %v1060 = vpack.c.b16 %v1041, %v1040
      %v1061 = vpack.c.b16 %v1043, %v1042
      %v1062 = vpack.c.b16 %v1045, %v1044
      %v1063 = vpack.c.b16 %v1047, %v1046
      %1080 = vmatprep.subr.bf16.mxu0 0
      %1081 = vmatpush1.bf16.msra.mxu0 %v1055
      %1082 = vmatprep.subr.bf16.mxu0 0
      %1083 = vmatpush1.bf16.msra.mxu0 %v1054
      %1084 = vmatprep.subr.bf16.mxu0 0
      %1085 = vmatpush1.bf16.msra.mxu0 %v1053
      %1086 = vmatprep.subr.bf16.mxu0 0
      %1087 = vmatpush1.bf16.msra.mxu0 %v1052
      %1088 = vmatprep.subr.bf16.mxu0 0
      %1089 = vmatpush1.bf16.msra.mxu0 %v1051
      %1090 = vmatprep.subr.bf16.mxu0 0
      %1091 = vmatpush1.bf16.msra.mxu0 %v1050
      %1092 = vmatprep.subr.bf16.mxu0 0
      %1093 = vmatpush1.bf16.msra.mxu0 %v1049
      %1094 = vmatprep.subr.bf16.mxu0 0
      %1095 = vmatpush1.bf16.msra.mxu0 %v1048
      %1096 = vmatprep.subr.bf16.mxu0 0
      %1097 = vmatpush2.bf16.msra.mxu0 %v1063
      %1098 = vmatprep.subr.bf16.mxu0 0
      %1099 = vmatpush2.bf16.msra.mxu0 %v1062
      %1100 = vmatprep.subr.bf16.mxu0 0
      %1101 = vmatpush2.bf16.msra.mxu0 %v1061
      %1102 = vmatprep.subr.bf16.mxu0 0
      %1103 = vmatpush2.bf16.msra.mxu0 %v1060
      %1104 = vmatprep.subr.bf16.mxu0 0
      %1105 = vmatpush2.bf16.msra.mxu0 %v1059
      %1106 = vmatprep.subr.bf16.mxu0 0
      %1107 = vmatpush2.bf16.msra.mxu0 %v1058
      %1108 = vmatprep.subr.bf16.mxu0 0
      %1109 = vmatpush2.bf16.msra.mxu0 %v1057
      %1110 = vmatprep.subr.bf16.mxu0 0
      %1111 = vmatpush2.bf16.msra.mxu0 %v1056
      %1112 = vmatprep.mubr.bf16.mxu0 %v921
      %1113 = vmatmul.mubr.bf16.gmra.mxu0 %v920
      %v1114 = vpop.f32.mrf.mxu0
      %v1115 = vadd.f32 %v968, %v1114
      %v1116 = vpop.f32.mrf.mxu0
      %v1117 = vpop.f32.mrf.mxu0
      %v1118 = vadd.f32 %v969, %v1117
      %v1119 = vpop.f32.mrf.mxu0
      %1120 = vmatprep.mubr.bf16.mxu0 %v923
      %1121 = vmatmul.mubr.bf16.gmra.mxu0 %v922
      %v1122 = vpop.f32.mrf.mxu0
      %v1123 = vadd.f32 %v970, %v1122
      %v1124 = vpop.f32.mrf.mxu0
      %v1125 = vpop.f32.mrf.mxu0
      %v1126 = vadd.f32 %v971, %v1125
      %v1127 = vpop.f32.mrf.mxu0
      %1128 = vmatprep.mubr.bf16.mxu0 %v925
      %1129 = vmatmul.mubr.bf16.gmra.mxu0 %v924
      %v1130 = vpop.f32.mrf.mxu0
      %v1131 = vadd.f32 %v972, %v1130
      %v1132 = vpop.f32.mrf.mxu0
      %v1133 = vpop.f32.mrf.mxu0
      %v1134 = vadd.f32 %v973, %v1133
      %v1135 = vpop.f32.mrf.mxu0
      %1136 = vmatprep.mubr.bf16.mxu0 %v927
      %1137 = vmatmul.mubr.bf16.gmra.mxu0 %v926
      %v1138 = vpop.f32.mrf.mxu0
      %v1139 = vadd.f32 %v974, %v1138
      %v1140 = vpop.f32.mrf.mxu0
      %v1141 = vpop.f32.mrf.mxu0
      %v1142 = vadd.f32 %v975, %v1141
      %v1143 = vpop.f32.mrf.mxu0
      %1144 = vmatprep.mubr.bf16.mxu0 %v929
      %1145 = vmatmul.mubr.bf16.gmra.mxu0 %v928
      %v1146 = vpop.f32.mrf.mxu0
      %v1147 = vadd.f32 %v976, %v1146
      %v1148 = vpop.f32.mrf.mxu0
      %v1149 = vpop.f32.mrf.mxu0
      %v1150 = vadd.f32 %v977, %v1149
      %v1151 = vpop.f32.mrf.mxu0
      %1152 = vmatprep.mubr.bf16.mxu0 %v931
      %1153 = vmatmul.mubr.bf16.gmra.mxu0 %v930
      %v1154 = vpop.f32.mrf.mxu0
      %v1155 = vadd.f32 %v978, %v1154
      %v1156 = vpop.f32.mrf.mxu0
      %v1157 = vpop.f32.mrf.mxu0
      %v1158 = vadd.f32 %v979, %v1157
      %v1159 = vpop.f32.mrf.mxu0
      %1160 = vmatprep.mubr.bf16.mxu0 %v933
      %1161 = vmatmul.mubr.bf16.gmra.mxu0 %v932
      %v1162 = vpop.f32.mrf.mxu0
      %v1163 = vadd.f32 %v980, %v1162
      %v1164 = vpop.f32.mrf.mxu0
      %v1165 = vpop.f32.mrf.mxu0
      %v1166 = vadd.f32 %v981, %v1165
      %v1167 = vpop.f32.mrf.mxu0
      %1168 = vmatprep.mubr.bf16.mxu0 %v935
      %1169 = vmatmul.mubr.bf16.gmra.mxu0 %v934
      %v1170 = vpop.f32.mrf.mxu0
      %v1171 = vadd.f32 %v982, %v1170
      %v1172 = vpop.f32.mrf.mxu0
      %v1173 = vpop.f32.mrf.mxu0
      %v1174 = vadd.f32 %v983, %v1173
      %v1175 = vpop.f32.mrf.mxu0
      %1176 = vdwg.mxu0
      %vm1177 = vcmp.gt.f32.partialorder %v1115, 0.0
      %vm1178 = vcmp.gt.f32.partialorder %v1118, 0.0
      %vm1179 = vcmp.gt.f32.partialorder %v1123, 0.0
      %vm1180 = vcmp.gt.f32.partialorder %v1126, 0.0
      %vm1181 = vcmp.gt.f32.partialorder %v1131, 0.0
      %vm1182 = vcmp.gt.f32.partialorder %v1134, 0.0
      %vm1183 = vcmp.gt.f32.partialorder %v1139, 0.0
      %vm1184 = vcmp.gt.f32.partialorder %v1142, 0.0
      %vm1185 = vcmp.gt.f32.partialorder %v1147, 0.0
      %vm1186 = vcmp.gt.f32.partialorder %v1150, 0.0
      %vm1187 = vcmp.gt.f32.partialorder %v1155, 0.0
      %vm1188 = vcmp.gt.f32.partialorder %v1158, 0.0
      %vm1189 = vcmp.gt.f32.partialorder %v1163, 0.0
      %vm1190 = vcmp.gt.f32.partialorder %v1166, 0.0
      %vm1191 = vcmp.gt.f32.partialorder %v1171, 0.0
      %vm1192 = vcmp.gt.f32.partialorder %v1174, 0.0
      %v1193 = vmin.f32 %v1115, 0.0
      %v1194 = vmin.f32 %v1118, 0.0
      %v1195 = vmin.f32 %v1123, 0.0
      %v1196 = vmin.f32 %v1126, 0.0
      %v1197 = vmin.f32 %v1131, 0.0
      %v1198 = vmin.f32 %v1134, 0.0
      %v1199 = vmin.f32 %v1139, 0.0
      %v1200 = vmin.f32 %v1142, 0.0
      %v1201 = vmin.f32 %v1147, 0.0
      %v1202 = vmin.f32 %v1150, 0.0
      %v1203 = vmin.f32 %v1155, 0.0
      %v1204 = vmin.f32 %v1158, 0.0
      %v1205 = vmin.f32 %v1163, 0.0
      %v1206 = vmin.f32 %v1166, 0.0
      %v1207 = vmin.f32 %v1171, 0.0
      %v1208 = vmin.f32 %v1174, 0.0
      %v1209 = vmul.f32 %v1193, 1.442695
      %v1210 = vpow.pop %v1209
      %v1211 = vmul.f32 %v1194, 1.442695
      %v1212 = vpow.pop %v1211
      %v1213 = vmul.f32 %v1195, 1.442695
      %v1214 = vpow.pop %v1213
      %v1215 = vmul.f32 %v1196, 1.442695
      %v1216 = vpow.pop %v1215
      %v1217 = vmul.f32 %v1197, 1.442695
      %v1218 = vpow.pop %v1217
      %v1219 = vmul.f32 %v1198, 1.442695
      %v1220 = vpow.pop %v1219
      %v1221 = vmul.f32 %v1199, 1.442695
      %v1222 = vpow.pop %v1221
      %v1223 = vmul.f32 %v1200, 1.442695
      %v1224 = vpow.pop %v1223
      %v1225 = vmul.f32 %v1201, 1.442695
      %v1226 = vpow.pop %v1225
      %v1227 = vmul.f32 %v1202, 1.442695
      %v1228 = vpow.pop %v1227
      %v1229 = vmul.f32 %v1203, 1.442695
      %v1230 = vpow.pop %v1229
      %v1231 = vmul.f32 %v1204, 1.442695
      %v1232 = vpow.pop %v1231
      %v1233 = vmul.f32 %v1205, 1.442695
      %v1234 = vpow.pop %v1233
      %v1235 = vmul.f32 %v1206, 1.442695
      %v1236 = vpow.pop %v1235
      %v1237 = vmul.f32 %v1207, 1.442695
      %v1238 = vpow.pop %v1237
      %v1239 = vmul.f32 %v1208, 1.442695
      %v1240 = vpow.pop %v1239
      %v1241 = vsub.f32 %v1210, 1.0
      %v1242 = vsub.f32 %v1212, 1.0
      %v1243 = vsub.f32 %v1214, 1.0
      %v1244 = vsub.f32 %v1216, 1.0
      %v1245 = vsub.f32 %v1218, 1.0
      %v1246 = vsub.f32 %v1220, 1.0
      %v1247 = vsub.f32 %v1222, 1.0
      %v1248 = vsub.f32 %v1224, 1.0
      %v1249 = vsub.f32 %v1226, 1.0
      %v1250 = vsub.f32 %v1228, 1.0
      %v1251 = vsub.f32 %v1230, 1.0
      %v1252 = vsub.f32 %v1232, 1.0
      %v1253 = vsub.f32 %v1234, 1.0
      %v1254 = vsub.f32 %v1236, 1.0
      %v1255 = vsub.f32 %v1238, 1.0
      %v1256 = vsub.f32 %v1240, 1.0
      %v1257 = vsel %vm1177, %v1115, %v1241
      %v1258 = vsel %vm1178, %v1118, %v1242
      %v1259 = vsel %vm1179, %v1123, %v1243
      %v1260 = vsel %vm1180, %v1126, %v1244
      %v1261 = vsel %vm1181, %v1131, %v1245
      %v1262 = vsel %vm1182, %v1134, %v1246
      %v1263 = vsel %vm1183, %v1139, %v1247
      %v1264 = vsel %vm1184, %v1142, %v1248
      %v1265 = vsel %vm1185, %v1147, %v1249
      %v1266 = vsel %vm1186, %v1150, %v1250
      %v1267 = vsel %vm1187, %v1155, %v1251
      %v1268 = vsel %vm1188, %v1158, %v1252
      %v1269 = vsel %vm1189, %v1163, %v1253
      %v1270 = vsel %vm1190, %v1166, %v1254
      %v1271 = vsel %vm1191, %v1171, %v1255
      %v1272 = vsel %vm1192, %v1174, %v1256
      %s1273 = scalar_lea.vmem %s2, 1
      %v1274 = vld [vmem:[%s1273] ss:$8 sm:$0x3]
      %1275 = vset.pattern.permute.xlu0 1
      %1276 = vperm.xlu0 %1275, %v380
      %v1277 = vpop.permute.xlu0 %1276
      %1279 = vset.pattern.permute.xlu0 1
      %1280 = vperm.xlu0 %1279, %v381
      %v1281 = vpop.permute.xlu0 %1280
      %1283 = vset.pattern.permute.xlu0 1
      %1284 = vperm.xlu0 %1283, %v382
      %v1285 = vpop.permute.xlu0 %1284
      %1287 = vset.pattern.permute.xlu0 1
      %1288 = vperm.xlu0 %1287, %v383
      %v1289 = vpop.permute.xlu0 %1288
      %1291 = vset.pattern.permute.xlu0 1
      %1292 = vperm.xlu0 %1291, %v384
      %v1293 = vpop.permute.xlu0 %1292
      %1295 = vset.pattern.permute.xlu0 1
      %1296 = vperm.xlu0 %1295, %v385
      %v1297 = vpop.permute.xlu0 %1296
      %1299 = vset.pattern.permute.xlu0 1
      %1300 = vperm.xlu0 %1299, %v386
      %v1301 = vpop.permute.xlu0 %1300
      %1303 = vset.pattern.permute.xlu0 1
      %1304 = vperm.xlu0 %1303, %v387
      %v1305 = vpop.permute.xlu0 %1304
      %1307 = vset.pattern.permute.xlu0 1
      %1308 = vperm.xlu0 %1307, %v388
      %v1309 = vpop.permute.xlu0 %1308
      %1311 = vset.pattern.permute.xlu0 1
      %1312 = vperm.xlu0 %1311, %v389
      %v1313 = vpop.permute.xlu0 %1312
      %1315 = vset.pattern.permute.xlu0 1
      %1316 = vperm.xlu0 %1315, %v390
      %v1317 = vpop.permute.xlu0 %1316
      %1319 = vset.pattern.permute.xlu0 1
      %1320 = vperm.xlu0 %1319, %v391
      %v1321 = vpop.permute.xlu0 %1320
      %1323 = vset.pattern.permute.xlu0 1
      %1324 = vperm.xlu0 %1323, %v392
      %v1325 = vpop.permute.xlu0 %1324
      %1327 = vset.pattern.permute.xlu0 1
      %1328 = vperm.xlu0 %1327, %v393
      %v1329 = vpop.permute.xlu0 %1328
      %1331 = vset.pattern.permute.xlu0 1
      %1332 = vperm.xlu0 %1331, %v394
      %v1333 = vpop.permute.xlu0 %1332
      %1335 = vset.pattern.permute.xlu0 1
      %1336 = vperm.xlu0 %1335, %v395
      %v1337 = vpop.permute.xlu0 %1336
      %v1340 = vlaneseq
      %v1341 = vshrl.u32 %v1340, 7
      %v1342 = vsub.s32 0, %v1341
      %v1343 = vrot.slane %v1274, %v1342
      %v1344 = vlaneseq
      %v1345 = vshrl.u32 %v1344, 7
      %v1346 = vsub.s32 1, %v1345
      %v1347 = vrot.slane %v1274, %v1346
      %v1350 = vadd.f32 %v1277, %v1343
      %v1351 = vadd.f32 %v1277, %v1347
      %v1352 = vadd.f32 %v1281, %v1343
      %v1353 = vadd.f32 %v1281, %v1347
      %v1354 = vadd.f32 %v1285, %v1343
      %v1355 = vadd.f32 %v1285, %v1347
      %v1356 = vadd.f32 %v1289, %v1343
      %v1357 = vadd.f32 %v1289, %v1347
      %v1358 = vadd.f32 %v1293, %v1343
      %v1359 = vadd.f32 %v1293, %v1347
      %v1360 = vadd.f32 %v1297, %v1343
      %v1361 = vadd.f32 %v1297, %v1347
      %v1362 = vadd.f32 %v1301, %v1343
      %v1363 = vadd.f32 %v1301, %v1347
      %v1364 = vadd.f32 %v1305, %v1343
      %v1365 = vadd.f32 %v1305, %v1347
      %v1366 = vadd.f32 %v1309, %v1343
      %v1367 = vadd.f32 %v1309, %v1347
      %v1368 = vadd.f32 %v1313, %v1343
      %v1369 = vadd.f32 %v1313, %v1347
      %v1370 = vadd.f32 %v1317, %v1343
      %v1371 = vadd.f32 %v1317, %v1347
      %v1372 = vadd.f32 %v1321, %v1343
      %v1373 = vadd.f32 %v1321, %v1347
      %v1374 = vadd.f32 %v1325, %v1343
      %v1375 = vadd.f32 %v1325, %v1347
      %v1376 = vadd.f32 %v1329, %v1343
      %v1377 = vadd.f32 %v1329, %v1347
      %v1378 = vadd.f32 %v1333, %v1343
      %v1379 = vadd.f32 %v1333, %v1347
      %v1380 = vadd.f32 %v1337, %v1343
      %v1381 = vadd.f32 %v1337, %v1347
      %vm1382 = vcmp.gt.f32.partialorder %v1350, 0.0
      %vm1383 = vcmp.gt.f32.partialorder %v1351, 0.0
      %vm1384 = vcmp.gt.f32.partialorder %v1352, 0.0
      %vm1385 = vcmp.gt.f32.partialorder %v1353, 0.0
      %vm1386 = vcmp.gt.f32.partialorder %v1354, 0.0
      %vm1387 = vcmp.gt.f32.partialorder %v1355, 0.0
      %vm1388 = vcmp.gt.f32.partialorder %v1356, 0.0
      %vm1389 = vcmp.gt.f32.partialorder %v1357, 0.0
      %vm1390 = vcmp.gt.f32.partialorder %v1358, 0.0
      %vm1391 = vcmp.gt.f32.partialorder %v1359, 0.0
      %vm1392 = vcmp.gt.f32.partialorder %v1360, 0.0
      %vm1393 = vcmp.gt.f32.partialorder %v1361, 0.0
      %vm1394 = vcmp.gt.f32.partialorder %v1362, 0.0
      %vm1395 = vcmp.gt.f32.partialorder %v1363, 0.0
      %vm1396 = vcmp.gt.f32.partialorder %v1364, 0.0
      %vm1397 = vcmp.gt.f32.partialorder %v1365, 0.0
      %vm1398 = vcmp.gt.f32.partialorder %v1366, 0.0
      %vm1399 = vcmp.gt.f32.partialorder %v1367, 0.0
      %vm1400 = vcmp.gt.f32.partialorder %v1368, 0.0
      %vm1401 = vcmp.gt.f32.partialorder %v1369, 0.0
      %vm1402 = vcmp.gt.f32.partialorder %v1370, 0.0
      %vm1403 = vcmp.gt.f32.partialorder %v1371, 0.0
      %vm1404 = vcmp.gt.f32.partialorder %v1372, 0.0
      %vm1405 = vcmp.gt.f32.partialorder %v1373, 0.0
      %vm1406 = vcmp.gt.f32.partialorder %v1374, 0.0
      %vm1407 = vcmp.gt.f32.partialorder %v1375, 0.0
      %vm1408 = vcmp.gt.f32.partialorder %v1376, 0.0
      %vm1409 = vcmp.gt.f32.partialorder %v1377, 0.0
      %vm1410 = vcmp.gt.f32.partialorder %v1378, 0.0
      %vm1411 = vcmp.gt.f32.partialorder %v1379, 0.0
      %vm1412 = vcmp.gt.f32.partialorder %v1380, 0.0
      %vm1413 = vcmp.gt.f32.partialorder %v1381, 0.0
      %v1414 = vmul.f32 %v1350, 0.2
      %v1415 = vmul.f32 %v1351, 0.2
      %v1416 = vmul.f32 %v1352, 0.2
      %v1417 = vmul.f32 %v1353, 0.2
      %v1418 = vmul.f32 %v1354, 0.2
      %v1419 = vmul.f32 %v1355, 0.2
      %v1420 = vmul.f32 %v1356, 0.2
      %v1421 = vmul.f32 %v1357, 0.2
      %v1422 = vmul.f32 %v1358, 0.2
      %v1423 = vmul.f32 %v1359, 0.2
      %v1424 = vmul.f32 %v1360, 0.2
      %v1425 = vmul.f32 %v1361, 0.2
      %v1426 = vmul.f32 %v1362, 0.2
      %v1427 = vmul.f32 %v1363, 0.2
      %v1428 = vmul.f32 %v1364, 0.2
      %v1429 = vmul.f32 %v1365, 0.2
      %v1430 = vmul.f32 %v1366, 0.2
      %v1431 = vmul.f32 %v1367, 0.2
      %v1432 = vmul.f32 %v1368, 0.2
      %v1433 = vmul.f32 %v1369, 0.2
      %v1434 = vmul.f32 %v1370, 0.2
      %v1435 = vmul.f32 %v1371, 0.2
      %v1436 = vmul.f32 %v1372, 0.2
      %v1437 = vmul.f32 %v1373, 0.2
      %v1438 = vmul.f32 %v1374, 0.2
      %v1439 = vmul.f32 %v1375, 0.2
      %v1440 = vmul.f32 %v1376, 0.2
      %v1441 = vmul.f32 %v1377, 0.2
      %v1442 = vmul.f32 %v1378, 0.2
      %v1443 = vmul.f32 %v1379, 0.2
      %v1444 = vmul.f32 %v1380, 0.2
      %v1445 = vmul.f32 %v1381, 0.2
      %v1446 = vsel %vm1382, %v1350, %v1414
      %v1447 = vsel %vm1383, %v1351, %v1415
      %v1448 = vsel %vm1384, %v1352, %v1416
      %v1449 = vsel %vm1385, %v1353, %v1417
      %v1450 = vsel %vm1386, %v1354, %v1418
      %v1451 = vsel %vm1387, %v1355, %v1419
      %v1452 = vsel %vm1388, %v1356, %v1420
      %v1453 = vsel %vm1389, %v1357, %v1421
      %v1454 = vsel %vm1390, %v1358, %v1422
      %v1455 = vsel %vm1391, %v1359, %v1423
      %v1456 = vsel %vm1392, %v1360, %v1424
      %v1457 = vsel %vm1393, %v1361, %v1425
      %v1458 = vsel %vm1394, %v1362, %v1426
      %v1459 = vsel %vm1395, %v1363, %v1427
      %v1460 = vsel %vm1396, %v1364, %v1428
      %v1461 = vsel %vm1397, %v1365, %v1429
      %v1462 = vsel %vm1398, %v1366, %v1430
      %v1463 = vsel %vm1399, %v1367, %v1431
      %v1464 = vsel %vm1400, %v1368, %v1432
      %v1465 = vsel %vm1401, %v1369, %v1433
      %v1466 = vsel %vm1402, %v1370, %v1434
      %v1467 = vsel %vm1403, %v1371, %v1435
      %v1468 = vsel %vm1404, %v1372, %v1436
      %v1469 = vsel %vm1405, %v1373, %v1437
      %v1470 = vsel %vm1406, %v1374, %v1438
      %v1471 = vsel %vm1407, %v1375, %v1439
      %v1472 = vsel %vm1408, %v1376, %v1440
      %v1473 = vsel %vm1409, %v1377, %v1441
      %v1474 = vsel %vm1410, %v1378, %v1442
      %v1475 = vsel %vm1411, %v1379, %v1443
      %v1476 = vsel %vm1412, %v1380, %v1444
      %v1477 = vsel %vm1413, %v1381, %v1445
      %v1478 = vadd.f32 %v1446, %v348
      %v1479 = vadd.f32 %v1447, %v349
      %v1480 = vadd.f32 %v1448, %v350
      %v1481 = vadd.f32 %v1449, %v351
      %v1482 = vadd.f32 %v1450, %v352
      %v1483 = vadd.f32 %v1451, %v353
      %v1484 = vadd.f32 %v1452, %v354
      %v1485 = vadd.f32 %v1453, %v355
      %v1486 = vadd.f32 %v1454, %v356
      %v1487 = vadd.f32 %v1455, %v357
      %v1488 = vadd.f32 %v1456, %v358
      %v1489 = vadd.f32 %v1457, %v359
      %v1490 = vadd.f32 %v1458, %v360
      %v1491 = vadd.f32 %v1459, %v361
      %v1492 = vadd.f32 %v1460, %v362
      %v1493 = vadd.f32 %v1461, %v363
      %v1494 = vadd.f32 %v1462, %v364
      %v1495 = vadd.f32 %v1463, %v365
      %v1496 = vadd.f32 %v1464, %v366
      %v1497 = vadd.f32 %v1465, %v367
      %v1498 = vadd.f32 %v1466, %v368
      %v1499 = vadd.f32 %v1467, %v369
      %v1500 = vadd.f32 %v1468, %v370
      %v1501 = vadd.f32 %v1469, %v371
      %v1502 = vadd.f32 %v1470, %v372
      %v1503 = vadd.f32 %v1471, %v373
      %v1504 = vadd.f32 %v1472, %v374
      %v1505 = vadd.f32 %v1473, %v375
      %v1506 = vadd.f32 %v1474, %v376
      %v1507 = vadd.f32 %v1475, %v377
      %v1508 = vadd.f32 %v1476, %v378
      %v1509 = vadd.f32 %v1477, %v379
      %v1510 = vmax.f32 %v1478, %v1479
      %1511 = vmax.xlane.f32.xlu0 %v1510
      %v1512 = vpop.xlane.xlu0 %1511
      %v1513 = vmax.f32 %v1480, %v1481
      %1514 = vmax.xlane.f32.xlu0 %v1513
      %v1515 = vpop.xlane.xlu0 %1514
      %v1516 = vmax.f32 %v1482, %v1483
      %1517 = vmax.xlane.f32.xlu0 %v1516
      %v1518 = vpop.xlane.xlu0 %1517
      %v1519 = vmax.f32 %v1484, %v1485
      %1520 = vmax.xlane.f32.xlu0 %v1519
      %v1521 = vpop.xlane.xlu0 %1520
      %v1522 = vmax.f32 %v1486, %v1487
      %1523 = vmax.xlane.f32.xlu0 %v1522
      %v1524 = vpop.xlane.xlu0 %1523
      %v1525 = vmax.f32 %v1488, %v1489
      %1526 = vmax.xlane.f32.xlu0 %v1525
      %v1527 = vpop.xlane.xlu0 %1526
      %v1528 = vmax.f32 %v1490, %v1491
      %1529 = vmax.xlane.f32.xlu0 %v1528
      %v1530 = vpop.xlane.xlu0 %1529
      %v1531 = vmax.f32 %v1492, %v1493
      %1532 = vmax.xlane.f32.xlu0 %v1531
      %v1533 = vpop.xlane.xlu0 %1532
      %v1534 = vmax.f32 %v1494, %v1495
      %1535 = vmax.xlane.f32.xlu0 %v1534
      %v1536 = vpop.xlane.xlu0 %1535
      %v1537 = vmax.f32 %v1496, %v1497
      %1538 = vmax.xlane.f32.xlu0 %v1537
      %v1539 = vpop.xlane.xlu0 %1538
      %v1540 = vmax.f32 %v1498, %v1499
      %1541 = vmax.xlane.f32.xlu0 %v1540
      %v1542 = vpop.xlane.xlu0 %1541
      %v1543 = vmax.f32 %v1500, %v1501
      %1544 = vmax.xlane.f32.xlu0 %v1543
      %v1545 = vpop.xlane.xlu0 %1544
      %v1546 = vmax.f32 %v1502, %v1503
      %1547 = vmax.xlane.f32.xlu0 %v1546
      %v1548 = vpop.xlane.xlu0 %1547
      %v1549 = vmax.f32 %v1504, %v1505
      %1550 = vmax.xlane.f32.xlu0 %v1549
      %v1551 = vpop.xlane.xlu0 %1550
      %v1552 = vmax.f32 %v1506, %v1507
      %1553 = vmax.xlane.f32.xlu0 %v1552
      %v1554 = vpop.xlane.xlu0 %1553
      %v1555 = vmax.f32 %v1508, %v1509
      %1556 = vmax.xlane.f32.xlu0 %v1555
      %v1557 = vpop.xlane.xlu0 %1556
      %v1558 = vsub.f32 %v1478, %v1512
      %v1559 = vsub.f32 %v1479, %v1512
      %v1560 = vsub.f32 %v1480, %v1515
      %v1561 = vsub.f32 %v1481, %v1515
      %v1562 = vsub.f32 %v1482, %v1518
      %v1563 = vsub.f32 %v1483, %v1518
      %v1564 = vsub.f32 %v1484, %v1521
      %v1565 = vsub.f32 %v1485, %v1521
      %v1566 = vsub.f32 %v1486, %v1524
      %v1567 = vsub.f32 %v1487, %v1524
      %v1568 = vsub.f32 %v1488, %v1527
      %v1569 = vsub.f32 %v1489, %v1527
      %v1570 = vsub.f32 %v1490, %v1530
      %v1571 = vsub.f32 %v1491, %v1530
      %v1572 = vsub.f32 %v1492, %v1533
      %v1573 = vsub.f32 %v1493, %v1533
      %v1574 = vsub.f32 %v1494, %v1536
      %v1575 = vsub.f32 %v1495, %v1536
      %v1576 = vsub.f32 %v1496, %v1539
      %v1577 = vsub.f32 %v1497, %v1539
      %v1578 = vsub.f32 %v1498, %v1542
      %v1579 = vsub.f32 %v1499, %v1542
      %v1580 = vsub.f32 %v1500, %v1545
      %v1581 = vsub.f32 %v1501, %v1545
      %v1582 = vsub.f32 %v1502, %v1548
      %v1583 = vsub.f32 %v1503, %v1548
      %v1584 = vsub.f32 %v1504, %v1551
      %v1585 = vsub.f32 %v1505, %v1551
      %v1586 = vsub.f32 %v1506, %v1554
      %v1587 = vsub.f32 %v1507, %v1554
      %v1588 = vsub.f32 %v1508, %v1557
      %v1589 = vsub.f32 %v1509, %v1557
      %v1590 = vmul.f32 %v1558, 1.442695
      %v1591 = vpow.pop %v1590
      %v1592 = vmul.f32 %v1559, 1.442695
      %v1593 = vpow.pop %v1592
      %v1594 = vmul.f32 %v1560, 1.442695
      %v1595 = vpow.pop %v1594
      %v1596 = vmul.f32 %v1561, 1.442695
      %v1597 = vpow.pop %v1596
      %v1598 = vmul.f32 %v1562, 1.442695
      %v1599 = vpow.pop %v1598
      %v1600 = vmul.f32 %v1563, 1.442695
      %v1601 = vpow.pop %v1600
      %v1602 = vmul.f32 %v1564, 1.442695
      %v1603 = vpow.pop %v1602
      %v1604 = vmul.f32 %v1565, 1.442695
      %v1605 = vpow.pop %v1604
      %v1606 = vmul.f32 %v1566, 1.442695
      %v1607 = vpow.pop %v1606
      %v1608 = vmul.f32 %v1567, 1.442695
      %v1609 = vpow.pop %v1608
      %v1610 = vmul.f32 %v1568, 1.442695
      %v1611 = vpow.pop %v1610
      %v1612 = vmul.f32 %v1569, 1.442695
      %v1613 = vpow.pop %v1612
      %v1614 = vmul.f32 %v1570, 1.442695
      %v1615 = vpow.pop %v1614
      %v1616 = vmul.f32 %v1571, 1.442695
      %v1617 = vpow.pop %v1616
      %v1618 = vmul.f32 %v1572, 1.442695
      %v1619 = vpow.pop %v1618
      %v1620 = vmul.f32 %v1573, 1.442695
      %v1621 = vpow.pop %v1620
      %v1622 = vmul.f32 %v1574, 1.442695
      %v1623 = vpow.pop %v1622
      %v1624 = vmul.f32 %v1575, 1.442695
      %v1625 = vpow.pop %v1624
      %v1626 = vmul.f32 %v1576, 1.442695
      %v1627 = vpow.pop %v1626
      %v1628 = vmul.f32 %v1577, 1.442695
      %v1629 = vpow.pop %v1628
      %v1630 = vmul.f32 %v1578, 1.442695
      %v1631 = vpow.pop %v1630
      %v1632 = vmul.f32 %v1579, 1.442695
      %v1633 = vpow.pop %v1632
      %v1634 = vmul.f32 %v1580, 1.442695
      %v1635 = vpow.pop %v1634
      %v1636 = vmul.f32 %v1581, 1.442695
      %v1637 = vpow.pop %v1636
      %v1638 = vmul.f32 %v1582, 1.442695
      %v1639 = vpow.pop %v1638
      %v1640 = vmul.f32 %v1583, 1.442695
      %v1641 = vpow.pop %v1640
      %v1642 = vmul.f32 %v1584, 1.442695
      %v1643 = vpow.pop %v1642
      %v1644 = vmul.f32 %v1585, 1.442695
      %v1645 = vpow.pop %v1644
      %v1646 = vmul.f32 %v1586, 1.442695
      %v1647 = vpow.pop %v1646
      %v1648 = vmul.f32 %v1587, 1.442695
      %v1649 = vpow.pop %v1648
      %v1650 = vmul.f32 %v1588, 1.442695
      %v1651 = vpow.pop %v1650
      %v1652 = vmul.f32 %v1589, 1.442695
      %v1653 = vpow.pop %v1652
      %v1654 = vadd.f32 %v1591, %v1593
      %1655 = vadd.xlane.f32.xlu0 %v1654
      %v1656 = vpop.xlane.xlu0 %1655
      %v1657 = vadd.f32 %v1595, %v1597
      %1658 = vadd.xlane.f32.xlu0 %v1657
      %v1659 = vpop.xlane.xlu0 %1658
      %v1660 = vadd.f32 %v1599, %v1601
      %1661 = vadd.xlane.f32.xlu0 %v1660
      %v1662 = vpop.xlane.xlu0 %1661
      %v1663 = vadd.f32 %v1603, %v1605
      %1664 = vadd.xlane.f32.xlu0 %v1663
      %v1665 = vpop.xlane.xlu0 %1664
      %v1666 = vadd.f32 %v1607, %v1609
      %1667 = vadd.xlane.f32.xlu0 %v1666
      %v1668 = vpop.xlane.xlu0 %1667
      %v1669 = vadd.f32 %v1611, %v1613
      %1670 = vadd.xlane.f32.xlu0 %v1669
      %v1671 = vpop.xlane.xlu0 %1670
      %v1672 = vadd.f32 %v1615, %v1617
      %1673 = vadd.xlane.f32.xlu0 %v1672
      %v1674 = vpop.xlane.xlu0 %1673
      %v1675 = vadd.f32 %v1619, %v1621
      %1676 = vadd.xlane.f32.xlu0 %v1675
      %v1677 = vpop.xlane.xlu0 %1676
      %v1678 = vadd.f32 %v1623, %v1625
      %1679 = vadd.xlane.f32.xlu0 %v1678
      %v1680 = vpop.xlane.xlu0 %1679
      %v1681 = vadd.f32 %v1627, %v1629
      %1682 = vadd.xlane.f32.xlu0 %v1681
      %v1683 = vpop.xlane.xlu0 %1682
      %v1684 = vadd.f32 %v1631, %v1633
      %1685 = vadd.xlane.f32.xlu0 %v1684
      %v1686 = vpop.xlane.xlu0 %1685
      %v1687 = vadd.f32 %v1635, %v1637
      %1688 = vadd.xlane.f32.xlu0 %v1687
      %v1689 = vpop.xlane.xlu0 %1688
      %v1690 = vadd.f32 %v1639, %v1641
      %1691 = vadd.xlane.f32.xlu0 %v1690
      %v1692 = vpop.xlane.xlu0 %1691
      %v1693 = vadd.f32 %v1643, %v1645
      %1694 = vadd.xlane.f32.xlu0 %v1693
      %v1695 = vpop.xlane.xlu0 %1694
      %v1696 = vadd.f32 %v1647, %v1649
      %1697 = vadd.xlane.f32.xlu0 %v1696
      %v1698 = vpop.xlane.xlu0 %1697
      %v1699 = vadd.f32 %v1651, %v1653
      %1700 = vadd.xlane.f32.xlu0 %v1699
      %v1701 = vpop.xlane.xlu0 %1700
      %vm1702 = vcmp.gt.f32.partialorder %v1512, -1e+20
      %vm1703 = vcmp.gt.f32.partialorder %v1515, -1e+20
      %vm1704 = vcmp.gt.f32.partialorder %v1518, -1e+20
      %vm1705 = vcmp.gt.f32.partialorder %v1521, -1e+20
      %vm1706 = vcmp.gt.f32.partialorder %v1524, -1e+20
      %vm1707 = vcmp.gt.f32.partialorder %v1527, -1e+20
      %vm1708 = vcmp.gt.f32.partialorder %v1530, -1e+20
      %vm1709 = vcmp.gt.f32.partialorder %v1533, -1e+20
      %vm1710 = vcmp.gt.f32.partialorder %v1536, -1e+20
      %vm1711 = vcmp.gt.f32.partialorder %v1539, -1e+20
      %vm1712 = vcmp.gt.f32.partialorder %v1542, -1e+20
      %vm1713 = vcmp.gt.f32.partialorder %v1545, -1e+20
      %vm1714 = vcmp.gt.f32.partialorder %v1548, -1e+20
      %vm1715 = vcmp.gt.f32.partialorder %v1551, -1e+20
      %vm1716 = vcmp.gt.f32.partialorder %v1554, -1e+20
      %vm1717 = vcmp.gt.f32.partialorder %v1557, -1e+20
      %v1718 = vrcp.pop %v1656
      %v1719 = vrcp.pop %v1659
      %v1720 = vrcp.pop %v1662
      %v1721 = vrcp.pop %v1665
      %v1722 = vrcp.pop %v1668
      %v1723 = vrcp.pop %v1671
      %v1724 = vrcp.pop %v1674
      %v1725 = vrcp.pop %v1677
      %v1726 = vrcp.pop %v1680
      %v1727 = vrcp.pop %v1683
      %v1728 = vrcp.pop %v1686
      %v1729 = vrcp.pop %v1689
      %v1730 = vrcp.pop %v1692
      %v1731 = vrcp.pop %v1695
      %v1732 = vrcp.pop %v1698
      %v1733 = vrcp.pop %v1701
      %v1734 = vsel %vm1702, %v1718, 0.0
      %v1735 = vsel %vm1703, %v1719, 0.0
      %v1736 = vsel %vm1704, %v1720, 0.0
      %v1737 = vsel %vm1705, %v1721, 0.0
      %v1738 = vsel %vm1706, %v1722, 0.0
      %v1739 = vsel %vm1707, %v1723, 0.0
      %v1740 = vsel %vm1708, %v1724, 0.0
      %v1741 = vsel %vm1709, %v1725, 0.0
      %v1742 = vsel %vm1710, %v1726, 0.0
      %v1743 = vsel %vm1711, %v1727, 0.0
      %v1744 = vsel %vm1712, %v1728, 0.0
      %v1745 = vsel %vm1713, %v1729, 0.0
      %v1746 = vsel %vm1714, %v1730, 0.0
      %v1747 = vsel %vm1715, %v1731, 0.0
      %v1748 = vsel %vm1716, %v1732, 0.0
      %v1749 = vsel %vm1717, %v1733, 0.0
      %v1750 = vmul.f32 %v1591, %v1734
      %v1751 = vmul.f32 %v1593, %v1734
      %v1752 = vmul.f32 %v1595, %v1735
      %v1753 = vmul.f32 %v1597, %v1735
      %v1754 = vmul.f32 %v1599, %v1736
      %v1755 = vmul.f32 %v1601, %v1736
      %v1756 = vmul.f32 %v1603, %v1737
      %v1757 = vmul.f32 %v1605, %v1737
      %v1758 = vmul.f32 %v1607, %v1738
      %v1759 = vmul.f32 %v1609, %v1738
      %v1760 = vmul.f32 %v1611, %v1739
      %v1761 = vmul.f32 %v1613, %v1739
      %v1762 = vmul.f32 %v1615, %v1740
      %v1763 = vmul.f32 %v1617, %v1740
      %v1764 = vmul.f32 %v1619, %v1741
      %v1765 = vmul.f32 %v1621, %v1741
      %v1766 = vmul.f32 %v1623, %v1742
      %v1767 = vmul.f32 %v1625, %v1742
      %v1768 = vmul.f32 %v1627, %v1743
      %v1769 = vmul.f32 %v1629, %v1743
      %v1770 = vmul.f32 %v1631, %v1744
      %v1771 = vmul.f32 %v1633, %v1744
      %v1772 = vmul.f32 %v1635, %v1745
      %v1773 = vmul.f32 %v1637, %v1745
      %v1774 = vmul.f32 %v1639, %v1746
      %v1775 = vmul.f32 %v1641, %v1746
      %v1776 = vmul.f32 %v1643, %v1747
      %v1777 = vmul.f32 %v1645, %v1747
      %v1778 = vmul.f32 %v1647, %v1748
      %v1779 = vmul.f32 %v1649, %v1748
      %v1780 = vmul.f32 %v1651, %v1749
      %v1781 = vmul.f32 %v1653, %v1749
      %v1782 = vpack.c.bf16 %v1752, %v1750
      %v1783 = vpack.c.bf16 %v1753, %v1751
      %v1784 = vpack.c.bf16 %v1756, %v1754
      %v1785 = vpack.c.bf16 %v1757, %v1755
      %v1786 = vpack.c.bf16 %v1760, %v1758
      %v1787 = vpack.c.bf16 %v1761, %v1759
      %v1788 = vpack.c.bf16 %v1764, %v1762
      %v1789 = vpack.c.bf16 %v1765, %v1763
      %v1790 = vpack.c.bf16 %v1768, %v1766
      %v1791 = vpack.c.bf16 %v1769, %v1767
      %v1792 = vpack.c.bf16 %v1772, %v1770
      %v1793 = vpack.c.bf16 %v1773, %v1771
      %v1794 = vpack.c.bf16 %v1776, %v1774
      %v1795 = vpack.c.bf16 %v1777, %v1775
      %v1796 = vpack.c.bf16 %v1780, %v1778
      %v1797 = vpack.c.bf16 %v1781, %v1779
      %1798 = vrot.lane.b32.xlu0 %v1048, 120
      %v1799 = vpop.permute.xlu0 %1798
      %1800 = vrot.lane.b32.xlu0 %v1049, 120
      %v1801 = vpop.permute.xlu0 %1800
      %1802 = vrot.lane.b32.xlu0 %v1050, 120
      %v1803 = vpop.permute.xlu0 %1802
      %1804 = vrot.lane.b32.xlu0 %v1051, 120
      %v1805 = vpop.permute.xlu0 %1804
      %1806 = vrot.lane.b32.xlu0 %v1052, 120
      %v1807 = vpop.permute.xlu0 %1806
      %1808 = vrot.lane.b32.xlu0 %v1053, 120
      %v1809 = vpop.permute.xlu0 %1808
      %1810 = vrot.lane.b32.xlu0 %v1054, 120
      %v1811 = vpop.permute.xlu0 %1810
      %1812 = vrot.lane.b32.xlu0 %v1055, 120
      %v1813 = vpop.permute.xlu0 %1812
      %1814 = vrot.lane.b32.xlu0 %v1056, 120
      %v1815 = vpop.permute.xlu0 %1814
      %1816 = vrot.lane.b32.xlu0 %v1057, 120
      %v1817 = vpop.permute.xlu0 %1816
      %1818 = vrot.lane.b32.xlu0 %v1058, 120
      %v1819 = vpop.permute.xlu0 %1818
      %1820 = vrot.lane.b32.xlu0 %v1059, 120
      %v1821 = vpop.permute.xlu0 %1820
      %1822 = vrot.lane.b32.xlu0 %v1060, 120
      %v1823 = vpop.permute.xlu0 %1822
      %1824 = vrot.lane.b32.xlu0 %v1061, 120
      %v1825 = vpop.permute.xlu0 %1824
      %1826 = vrot.lane.b32.xlu0 %v1062, 120
      %v1827 = vpop.permute.xlu0 %1826
      %1828 = vrot.lane.b32.xlu0 %v1063, 120
      %v1829 = vpop.permute.xlu0 %1828
      %1862 = vrot.lane.b32.xlu0 %v968, 120
      %v1863 = vpop.permute.xlu0 %1862
      %1864 = vrot.lane.b32.xlu0 %v969, 120
      %v1865 = vpop.permute.xlu0 %1864
      %1866 = vrot.lane.b32.xlu0 %v970, 120
      %v1867 = vpop.permute.xlu0 %1866
      %1868 = vrot.lane.b32.xlu0 %v971, 120
      %v1869 = vpop.permute.xlu0 %1868
      %1870 = vrot.lane.b32.xlu0 %v972, 120
      %v1871 = vpop.permute.xlu0 %1870
      %1872 = vrot.lane.b32.xlu0 %v973, 120
      %v1873 = vpop.permute.xlu0 %1872
      %1874 = vrot.lane.b32.xlu0 %v974, 120
      %v1875 = vpop.permute.xlu0 %1874
      %1876 = vrot.lane.b32.xlu0 %v975, 120
      %v1877 = vpop.permute.xlu0 %1876
      %1878 = vrot.lane.b32.xlu0 %v976, 120
      %v1879 = vpop.permute.xlu0 %1878
      %1880 = vrot.lane.b32.xlu0 %v977, 120
      %v1881 = vpop.permute.xlu0 %1880
      %1882 = vrot.lane.b32.xlu0 %v978, 120
      %v1883 = vpop.permute.xlu0 %1882
      %1884 = vrot.lane.b32.xlu0 %v979, 120
      %v1885 = vpop.permute.xlu0 %1884
      %1886 = vrot.lane.b32.xlu0 %v980, 120
      %v1887 = vpop.permute.xlu0 %1886
      %1888 = vrot.lane.b32.xlu0 %v981, 120
      %v1889 = vpop.permute.xlu0 %1888
      %1890 = vrot.lane.b32.xlu0 %v982, 120
      %v1891 = vpop.permute.xlu0 %1890
      %1892 = vrot.lane.b32.xlu0 %v983, 120
      %v1893 = vpop.permute.xlu0 %1892
      %1910 = vmatprep.subr.bf16.mxu0 0
      %1911 = vmatpush1.bf16.msra.mxu0 %v1813
      %1912 = vmatprep.subr.bf16.mxu0 0
      %1913 = vmatpush1.bf16.msra.mxu0 %v1811
      %1914 = vmatprep.subr.bf16.mxu0 0
      %1915 = vmatpush1.bf16.msra.mxu0 %v1809
      %1916 = vmatprep.subr.bf16.mxu0 0
      %1917 = vmatpush1.bf16.msra.mxu0 %v1807
      %1918 = vmatprep.subr.bf16.mxu0 0
      %1919 = vmatpush1.bf16.msra.mxu0 %v1805
      %1920 = vmatprep.subr.bf16.mxu0 0
      %1921 = vmatpush1.bf16.msra.mxu0 %v1803
      %1922 = vmatprep.subr.bf16.mxu0 0
      %1923 = vmatpush1.bf16.msra.mxu0 %v1801
      %1924 = vmatprep.subr.bf16.mxu0 0
      %1925 = vmatpush1.bf16.msra.mxu0 %v1799
      %1926 = vmatprep.subr.bf16.mxu0 0
      %1927 = vmatpush2.bf16.msra.mxu0 %v1829
      %1928 = vmatprep.subr.bf16.mxu0 0
      %1929 = vmatpush2.bf16.msra.mxu0 %v1827
      %1930 = vmatprep.subr.bf16.mxu0 0
      %1931 = vmatpush2.bf16.msra.mxu0 %v1825
      %1932 = vmatprep.subr.bf16.mxu0 0
      %1933 = vmatpush2.bf16.msra.mxu0 %v1823
      %1934 = vmatprep.subr.bf16.mxu0 0
      %1935 = vmatpush2.bf16.msra.mxu0 %v1821
      %1936 = vmatprep.subr.bf16.mxu0 0
      %1937 = vmatpush2.bf16.msra.mxu0 %v1819
      %1938 = vmatprep.subr.bf16.mxu0 0
      %1939 = vmatpush2.bf16.msra.mxu0 %v1817
      %1940 = vmatprep.subr.bf16.mxu0 0
      %1941 = vmatpush2.bf16.msra.mxu0 %v1815
      %1942 = vmatprep.mubr.bf16.mxu0 %v1783
      %1943 = vmatmul.mubr.bf16.gmra.mxu0 %v1782
      %v1944 = vpop.f32.mrf.mxu0
      %v1945 = vadd.f32 %v1863, %v1944
      %v1946 = vpop.f32.mrf.mxu0
      %v1947 = vpop.f32.mrf.mxu0
      %v1948 = vadd.f32 %v1865, %v1947
      %v1949 = vpop.f32.mrf.mxu0
      %1950 = vmatprep.mubr.bf16.mxu0 %v1785
      %1951 = vmatmul.mubr.bf16.gmra.mxu0 %v1784
      %v1952 = vpop.f32.mrf.mxu0
      %v1953 = vadd.f32 %v1867, %v1952
      %v1954 = vpop.f32.mrf.mxu0
      %v1955 = vpop.f32.mrf.mxu0
      %v1956 = vadd.f32 %v1869, %v1955
      %v1957 = vpop.f32.mrf.mxu0
      %1958 = vmatprep.mubr.bf16.mxu0 %v1787
      %1959 = vmatmul.mubr.bf16.gmra.mxu0 %v1786
      %v1960 = vpop.f32.mrf.mxu0
      %v1961 = vadd.f32 %v1871, %v1960
      %v1962 = vpop.f32.mrf.mxu0
      %v1963 = vpop.f32.mrf.mxu0
      %v1964 = vadd.f32 %v1873, %v1963
      %v1965 = vpop.f32.mrf.mxu0
      %1966 = vmatprep.mubr.bf16.mxu0 %v1789
      %1967 = vmatmul.mubr.bf16.gmra.mxu0 %v1788
      %v1968 = vpop.f32.mrf.mxu0
      %v1969 = vadd.f32 %v1875, %v1968
      %v1970 = vpop.f32.mrf.mxu0
      %v1971 = vpop.f32.mrf.mxu0
      %v1972 = vadd.f32 %v1877, %v1971
      %v1973 = vpop.f32.mrf.mxu0
      %1974 = vmatprep.mubr.bf16.mxu0 %v1791
      %1975 = vmatmul.mubr.bf16.gmra.mxu0 %v1790
      %v1976 = vpop.f32.mrf.mxu0
      %v1977 = vadd.f32 %v1879, %v1976
      %v1978 = vpop.f32.mrf.mxu0
      %v1979 = vpop.f32.mrf.mxu0
      %v1980 = vadd.f32 %v1881, %v1979
      %v1981 = vpop.f32.mrf.mxu0
      %1982 = vmatprep.mubr.bf16.mxu0 %v1793
      %1983 = vmatmul.mubr.bf16.gmra.mxu0 %v1792
      %v1984 = vpop.f32.mrf.mxu0
      %v1985 = vadd.f32 %v1883, %v1984
      %v1986 = vpop.f32.mrf.mxu0
      %v1987 = vpop.f32.mrf.mxu0
      %v1988 = vadd.f32 %v1885, %v1987
      %v1989 = vpop.f32.mrf.mxu0
      %1990 = vmatprep.mubr.bf16.mxu0 %v1795
      %1991 = vmatmul.mubr.bf16.gmra.mxu0 %v1794
      %v1992 = vpop.f32.mrf.mxu0
      %v1993 = vadd.f32 %v1887, %v1992
      %v1994 = vpop.f32.mrf.mxu0
      %v1995 = vpop.f32.mrf.mxu0
      %v1996 = vadd.f32 %v1889, %v1995
      %v1997 = vpop.f32.mrf.mxu0
      %1998 = vmatprep.mubr.bf16.mxu0 %v1797
      %1999 = vmatmul.mubr.bf16.gmra.mxu0 %v1796
      %v2000 = vpop.f32.mrf.mxu0
      %v2001 = vadd.f32 %v1891, %v2000
      %v2002 = vpop.f32.mrf.mxu0
      %v2003 = vpop.f32.mrf.mxu0
      %v2004 = vadd.f32 %v1893, %v2003
      %v2005 = vpop.f32.mrf.mxu0
      %2006 = vdwg.mxu0
      %vm2007 = vcmp.gt.f32.partialorder %v1945, 0.0
      %vm2008 = vcmp.gt.f32.partialorder %v1948, 0.0
      %vm2009 = vcmp.gt.f32.partialorder %v1953, 0.0
      %vm2010 = vcmp.gt.f32.partialorder %v1956, 0.0
      %vm2011 = vcmp.gt.f32.partialorder %v1961, 0.0
      %vm2012 = vcmp.gt.f32.partialorder %v1964, 0.0
      %vm2013 = vcmp.gt.f32.partialorder %v1969, 0.0
      %vm2014 = vcmp.gt.f32.partialorder %v1972, 0.0
      %vm2015 = vcmp.gt.f32.partialorder %v1977, 0.0
      %vm2016 = vcmp.gt.f32.partialorder %v1980, 0.0
      %vm2017 = vcmp.gt.f32.partialorder %v1985, 0.0
      %vm2018 = vcmp.gt.f32.partialorder %v1988, 0.0
      %vm2019 = vcmp.gt.f32.partialorder %v1993, 0.0
      %vm2020 = vcmp.gt.f32.partialorder %v1996, 0.0
      %vm2021 = vcmp.gt.f32.partialorder %v2001, 0.0
      %vm2022 = vcmp.gt.f32.partialorder %v2004, 0.0
      %v2023 = vmin.f32 %v1945, 0.0
      %v2024 = vmin.f32 %v1948, 0.0
      %v2025 = vmin.f32 %v1953, 0.0
      %v2026 = vmin.f32 %v1956, 0.0
      %v2027 = vmin.f32 %v1961, 0.0
      %v2028 = vmin.f32 %v1964, 0.0
      %v2029 = vmin.f32 %v1969, 0.0
      %v2030 = vmin.f32 %v1972, 0.0
      %v2031 = vmin.f32 %v1977, 0.0
      %v2032 = vmin.f32 %v1980, 0.0
      %v2033 = vmin.f32 %v1985, 0.0
      %v2034 = vmin.f32 %v1988, 0.0
      %v2035 = vmin.f32 %v1993, 0.0
      %v2036 = vmin.f32 %v1996, 0.0
      %v2037 = vmin.f32 %v2001, 0.0
      %v2038 = vmin.f32 %v2004, 0.0
      %v2039 = vmul.f32 %v2023, 1.442695
      %v2040 = vpow.pop %v2039
      %v2041 = vmul.f32 %v2024, 1.442695
      %v2042 = vpow.pop %v2041
      %v2043 = vmul.f32 %v2025, 1.442695
      %v2044 = vpow.pop %v2043
      %v2045 = vmul.f32 %v2026, 1.442695
      %v2046 = vpow.pop %v2045
      %v2047 = vmul.f32 %v2027, 1.442695
      %v2048 = vpow.pop %v2047
      %v2049 = vmul.f32 %v2028, 1.442695
      %v2050 = vpow.pop %v2049
      %v2051 = vmul.f32 %v2029, 1.442695
      %v2052 = vpow.pop %v2051
      %v2053 = vmul.f32 %v2030, 1.442695
      %v2054 = vpow.pop %v2053
      %v2055 = vmul.f32 %v2031, 1.442695
      %v2056 = vpow.pop %v2055
      %v2057 = vmul.f32 %v2032, 1.442695
      %v2058 = vpow.pop %v2057
      %v2059 = vmul.f32 %v2033, 1.442695
      %v2060 = vpow.pop %v2059
      %v2061 = vmul.f32 %v2034, 1.442695
      %v2062 = vpow.pop %v2061
      %v2063 = vmul.f32 %v2035, 1.442695
      %v2064 = vpow.pop %v2063
      %v2065 = vmul.f32 %v2036, 1.442695
      %v2066 = vpow.pop %v2065
      %v2067 = vmul.f32 %v2037, 1.442695
      %v2068 = vpow.pop %v2067
      %v2069 = vmul.f32 %v2038, 1.442695
      %v2070 = vpow.pop %v2069
      %v2071 = vsub.f32 %v2040, 1.0
      %v2072 = vsub.f32 %v2042, 1.0
      %v2073 = vsub.f32 %v2044, 1.0
      %v2074 = vsub.f32 %v2046, 1.0
      %v2075 = vsub.f32 %v2048, 1.0
      %v2076 = vsub.f32 %v2050, 1.0
      %v2077 = vsub.f32 %v2052, 1.0
      %v2078 = vsub.f32 %v2054, 1.0
      %v2079 = vsub.f32 %v2056, 1.0
      %v2080 = vsub.f32 %v2058, 1.0
      %v2081 = vsub.f32 %v2060, 1.0
      %v2082 = vsub.f32 %v2062, 1.0
      %v2083 = vsub.f32 %v2064, 1.0
      %v2084 = vsub.f32 %v2066, 1.0
      %v2085 = vsub.f32 %v2068, 1.0
      %v2086 = vsub.f32 %v2070, 1.0
      %v2087 = vsel %vm2007, %v1945, %v2071
      %v2088 = vsel %vm2008, %v1948, %v2072
      %v2089 = vsel %vm2009, %v1953, %v2073
      %v2090 = vsel %vm2010, %v1956, %v2074
      %v2091 = vsel %vm2011, %v1961, %v2075
      %v2092 = vsel %vm2012, %v1964, %v2076
      %v2093 = vsel %vm2013, %v1969, %v2077
      %v2094 = vsel %vm2014, %v1972, %v2078
      %v2095 = vsel %vm2015, %v1977, %v2079
      %v2096 = vsel %vm2016, %v1980, %v2080
      %v2097 = vsel %vm2017, %v1985, %v2081
      %v2098 = vsel %vm2018, %v1988, %v2082
      %v2099 = vsel %vm2019, %v1993, %v2083
      %v2100 = vsel %vm2020, %v1996, %v2084
      %v2101 = vsel %vm2021, %v2001, %v2085
      %v2102 = vsel %vm2022, %v2004, %v2086
      %2119 = vrot.lane.b32.xlu0 %v2087, 8
      %v2120 = vpop.permute.xlu0 %2119
      %2121 = vrot.lane.b32.xlu0 %v2088, 8
      %v2122 = vpop.permute.xlu0 %2121
      %2123 = vrot.lane.b32.xlu0 %v2089, 8
      %v2124 = vpop.permute.xlu0 %2123
      %2125 = vrot.lane.b32.xlu0 %v2090, 8
      %v2126 = vpop.permute.xlu0 %2125
      %2127 = vrot.lane.b32.xlu0 %v2091, 8
      %v2128 = vpop.permute.xlu0 %2127
      %2129 = vrot.lane.b32.xlu0 %v2092, 8
      %v2130 = vpop.permute.xlu0 %2129
      %2131 = vrot.lane.b32.xlu0 %v2093, 8
      %v2132 = vpop.permute.xlu0 %2131
      %2133 = vrot.lane.b32.xlu0 %v2094, 8
      %v2134 = vpop.permute.xlu0 %2133
      %2135 = vrot.lane.b32.xlu0 %v2095, 8
      %v2136 = vpop.permute.xlu0 %2135
      %2137 = vrot.lane.b32.xlu0 %v2096, 8
      %v2138 = vpop.permute.xlu0 %2137
      %2139 = vrot.lane.b32.xlu0 %v2097, 8
      %v2140 = vpop.permute.xlu0 %2139
      %2141 = vrot.lane.b32.xlu0 %v2098, 8
      %v2142 = vpop.permute.xlu0 %2141
      %2143 = vrot.lane.b32.xlu0 %v2099, 8
      %v2144 = vpop.permute.xlu0 %2143
      %2145 = vrot.lane.b32.xlu0 %v2100, 8
      %v2146 = vpop.permute.xlu0 %2145
      %2147 = vrot.lane.b32.xlu0 %v2101, 8
      %v2148 = vpop.permute.xlu0 %2147
      %2149 = vrot.lane.b32.xlu0 %v2102, 8
      %v2150 = vpop.permute.xlu0 %2149
      %vm2167 = vcmask 64512
      %v2168 = vsel %vm2167, %v1257, %v2120
      %v2169 = vsel %vm2167, %v1258, %v2122
      %v2170 = vsel %vm2167, %v1259, %v2124
      %v2171 = vsel %vm2167, %v1260, %v2126
      %v2172 = vsel %vm2167, %v1261, %v2128
      %v2173 = vsel %vm2167, %v1262, %v2130
      %v2174 = vsel %vm2167, %v1263, %v2132
      %v2175 = vsel %vm2167, %v1264, %v2134
      %v2176 = vsel %vm2167, %v1265, %v2136
      %v2177 = vsel %vm2167, %v1266, %v2138
      %v2178 = vsel %vm2167, %v1267, %v2140
      %v2179 = vsel %vm2167, %v1268, %v2142
      %v2180 = vsel %vm2167, %v1269, %v2144
      %v2181 = vsel %vm2167, %v1270, %v2146
      %v2182 = vsel %vm2167, %v1271, %v2148
      %v2183 = vsel %vm2167, %v1272, %v2150
      %vm2184 = vcmask 130048
      %v2185 = vsel %vm2184, %v2168, 0.0
      %v2186 = vsel %vm2184, %v2169, 0.0
      %v2187 = vsel %vm2184, %v2170, 0.0
      %v2188 = vsel %vm2184, %v2171, 0.0
      %v2189 = vsel %vm2184, %v2172, 0.0
      %v2190 = vsel %vm2184, %v2173, 0.0
      %v2191 = vsel %vm2184, %v2174, 0.0
      %v2192 = vsel %vm2184, %v2175, 0.0
      %v2193 = vsel %vm2184, %v2176, 0.0
      %v2194 = vsel %vm2184, %v2177, 0.0
      %v2195 = vsel %vm2184, %v2178, 0.0
      %v2196 = vsel %vm2184, %v2179, 0.0
      %v2197 = vsel %vm2184, %v2180, 0.0
      %v2198 = vsel %vm2184, %v2181, 0.0
      %v2199 = vsel %vm2184, %v2182, 0.0
      %v2200 = vsel %vm2184, %v2183, 0.0
      %2201 = vst [vmem:[%s273] sm:$0xff] %v2185
      %2202 = vst [vmem:[%s273 + $0x8] sm:$0xff] %v2186
      %2203 = vst [vmem:[%s273 + $0x10] sm:$0xff] %v2187
      %2204 = vst [vmem:[%s273 + $0x18] sm:$0xff] %v2188
      %2205 = vst [vmem:[%s273 + $0x20] sm:$0xff] %v2189
      %2206 = vst [vmem:[%s273 + $0x28] sm:$0xff] %v2190
      %2207 = vst [vmem:[%s273 + $0x30] sm:$0xff] %v2191
      %2208 = vst [vmem:[%s273 + $0x38] sm:$0xff] %v2192
      %2209 = vst [vmem:[%s273 + $0x40] sm:$0xff] %v2193
      %2210 = vst [vmem:[%s273 + $0x48] sm:$0xff] %v2194
      %2211 = vst [vmem:[%s273 + $0x50] sm:$0xff] %v2195
      %2212 = vst [vmem:[%s273 + $0x58] sm:$0xff] %v2196
      %2213 = vst [vmem:[%s273 + $0x60] sm:$0xff] %v2197
      %2214 = vst [vmem:[%s273 + $0x68] sm:$0xff] %v2198
      %2215 = vst [vmem:[%s273 + $0x70] sm:$0xff] %v2199
      %2216 = vst [vmem:[%s273 + $0x78] sm:$0xff] %v2200
      %s2217 = smul.u32 16, %s16
      %p2218 = scmp.lt.s32.totalorder %s2217, 31
      %s2219 = scalar_select %p2218, %s2217, 31
      %s2220 = smul.addr %s2219, 8
      %s2221 = scalar_lea.vmem %s5, %s2220
      // Predicated region
      $region41: #{gat_body_forward.4} parent=39 // pred_check
        %p2222 = pneg %p154
      $region42: #{gat_body_forward.4} parent=39 // pred_check_branch
        %2224 = sbr.rel (%p2222) target = $region44
      $region43: #{gat_body_forward.4} parent=39 // pred_region
        %s2225 = smul.u32 16, %s16
      $region44: #{gat_body_forward.4} parent=39 // pred_fallthru
        _
    $region40: #{gat_body_forward.4} parent=5 // pred_fallthru
      _
    %p2226 = scmp.le.s32.totalorder 2, %s11
    // Predicated region
    $region45: #{gat_body_forward.4} parent=5 // pred_check
      %p2227 = pneg %p2226
    $region46: #{gat_body_forward.4} parent=5 // pred_check_branch
      %2229 = sbr.rel (%p2227) target = $region48
    $region47: #{gat_body_forward.4} parent=5 // pred_region
      %s2230 = ssub.s32 %s11, 2
      // Predicated region
      $region49: #{gat_body_forward.4} parent=47 // pred_check
        %p2231 = pneg %p160
      $region50: #{gat_body_forward.4} parent=47 // pred_check_branch
        %2233 = sbr.rel (%p2231) target = $region52
      $region51: #{gat_body_forward.4} parent=47 // pred_region
        %s2234 = smul.u32 16, %s17
        %p2235 = scmp.lt.s32.totalorder %s2234, 31
        %s2236 = scalar_select %p2235, %s2234, 31
        %s2237 = smul.addr %s2236, 8
        %s2238 = scalar_lea.vmem %s5, %s2237
      $region52: #{gat_body_forward.4} parent=47 // pred_fallthru
        _
    $region48: #{gat_body_forward.4} parent=5 // pred_fallthru
      _
  $region6: #{gat_body_forward.4} parent=0 // loop_footer
    %s15 = sadd.s32 1, %s11
  $region7: #{gat_body_forward.4} parent=0 // loop_footer_branch
    %10 = sbr.rel target = $region3
  $region8: #{gat_body_forward.4} parent=0 // loop_exit
    _

// kernel: gat_body_forward.3
$region0: #{gat_body_forward.3}
  #allocation0 [shape = 'u32[]', space=smem, size = 0x4, offset = 0x4, fixed_abs, tag = 'smem constant byte address 0x4 - core index']
  #allocation1 [shape = 'u32[144,128]{1,0:T(1,128)}', space=vmem, size = 0x12000, scoped, tag = 'internal scratch']
  %s0 = inlined_call_operand.vmem [shape: s8[256,256], index: 0, kind: input, shape index: {}]
  %s1 = inlined_call_operand.vmem [shape: bf16[256,16], index: 1, kind: input, shape index: {}]
  %s2 = inlined_call_operand.vmem [shape: f32[8,256], index: 2, kind: input, shape index: {}]
  %s3 = inlined_call_operand.vmem [shape: f32[256,2], index: 3, kind: input, shape index: {}]
  %s4 = inlined_call_operand.vmem [shape: f32[256,128], index: 4, kind: output, shape index: {}]
  %s5 = sld [smem:[#allocation0]]
  $region49: #{gat_body_forward.3} parent=0
    _
  %s7 = ssub.s32 1, %s5
  %s8 = scalar_select 0, %s7, %s5
  loop: start=0, step=1, limit=4
  $region2: #{gat_body_forward.3} parent=0 // loop_pre_header
    _
  $region3: #{gat_body_forward.3} parent=0 // loop_header
    %s10 = sphi 0, %s14
    %p11 = scmp.ge.s32.totalorder %s10, 4
    %s20 = sphi 0, %s22
    %s23 = sphi 0, %s20
    %s24 = sphi 0, %s23
    %s40 = sphi 0, %s24
    %s44 = sphi 0, %s44
    %s46 = sphi 0, %s44
    %s47 = sphi 0, %s46
    %s61 = sphi 0, %s47
    %s65 = sphi 0, %s65
    %s67 = sphi 0, %s65
    %s68 = sphi 0, %s67
    %s82 = sphi 0, %s68
    %s88 = sphi 0, %s90
    %s91 = sphi 0, %s88
    %s92 = sphi 0, %s91
    %s108 = sphi 0, %s92
    %s114 = sphi 0, %s116
    %s117 = sphi 0, %s114
    %s118 = sphi 0, %s117
    %s134 = sphi 0, %s118
  $region4: #{gat_body_forward.3} parent=0 // loop_header_branch
    %13 = sbr.rel (%p11) target = $region8
  $region5: #{gat_body_forward.3} parent=0 // loop_body
    %s15 = ssub.s32 %s10, 1
    %s16 = ssub.s32 %s10, 2
    %s17 = sadd.s32 %s10, 1
    %s18 = ssub.s32 %s10, %s17
    %p19 = scmp.eq.s32.totalorder %s18, 0
    %s21 = sadd.s32 %s20, 1
    %s22 = scalar_select %p19, %s20, %s21
    %p25 = pneg %p19
    %p26 = scmp.eq.s32.totalorder %s10, 1
    %p27 = por %p25, %p26
    %p28 = scmp.ne.s32.totalorder %s20, %s23
    %p29 = scmp.eq.s32.totalorder %s10, 0
    %p30 = por %p28, %p29
    %p31 = scmp.ne.s32.totalorder %s20, %s23
    %p32 = scmp.eq.s32.totalorder %s15, 1
    %p33 = por %p31, %p32
    %p34 = scmp.ne.s32.totalorder %s23, %s24
    %p35 = scmp.eq.s32.totalorder %s15, 0
    %p36 = por %p34, %p35
    %p37 = scmp.ne.s32.totalorder %s23, %s24
    %p38 = scmp.eq.s32.totalorder %s16, 1
    %p39 = por %p37, %p38
    %p41 = scmp.ne.s32.totalorder %s24, %s40
    %p42 = scmp.eq.s32.totalorder %s16, 0
    %p43 = por %p41, %p42
    %s45 = sadd.s32 %s44, 1
    %p48 = scmp.eq.s32.totalorder %s10, 1
    %p49 = scmp.ne.s32.totalorder %s44, %s46
    %p50 = scmp.eq.s32.totalorder %s10, 0
    %p51 = por %p49, %p50
    %p52 = scmp.ne.s32.totalorder %s44, %s46
    %p53 = scmp.eq.s32.totalorder %s15, 1
    %p54 = por %p52, %p53
    %p55 = scmp.ne.s32.totalorder %s46, %s47
    %p56 = scmp.eq.s32.totalorder %s15, 0
    %p57 = por %p55, %p56
    %p58 = scmp.ne.s32.totalorder %s46, %s47
    %p59 = scmp.eq.s32.totalorder %s16, 1
    %p60 = por %p58, %p59
    %p62 = scmp.ne.s32.totalorder %s47, %s61
    %p63 = scmp.eq.s32.totalorder %s16, 0
    %p64 = por %p62, %p63
    %s66 = sadd.s32 %s65, 1
    %p69 = scmp.eq.s32.totalorder %s10, 1
    %p70 = scmp.ne.s32.totalorder %s65, %s67
    %p71 = scmp.eq.s32.totalorder %s10, 0
    %p72 = por %p70, %p71
    %p73 = scmp.ne.s32.totalorder %s65, %s67
    %p74 = scmp.eq.s32.totalorder %s15, 1
    %p75 = por %p73, %p74
    %p76 = scmp.ne.s32.totalorder %s67, %s68
    %p77 = scmp.eq.s32.totalorder %s15, 0
    %p78 = por %p76, %p77
    %p79 = scmp.ne.s32.totalorder %s67, %s68
    %p80 = scmp.eq.s32.totalorder %s16, 1
    %p81 = por %p79, %p80
    %p83 = scmp.ne.s32.totalorder %s68, %s82
    %p84 = scmp.eq.s32.totalorder %s16, 0
    %p85 = por %p83, %p84
    %s86 = ssub.s32 %s10, %s17
    %p87 = scmp.eq.s32.totalorder %s86, 0
    %s89 = sadd.s32 %s88, 1
    %s90 = scalar_select %p87, %s88, %s89
    %p93 = pneg %p87
    %p94 = scmp.eq.s32.totalorder %s10, 1
    %p95 = por %p93, %p94
    %p96 = scmp.ne.s32.totalorder %s88, %s91
    %p97 = scmp.eq.s32.totalorder %s10, 0
    %p98 = por %p96, %p97
    %p99 = scmp.ne.s32.totalorder %s88, %s91
    %p100 = scmp.eq.s32.totalorder %s15, 1
    %p101 = por %p99, %p100
    %p102 = scmp.ne.s32.totalorder %s91, %s92
    %p103 = scmp.eq.s32.totalorder %s15, 0
    %p104 = por %p102, %p103
    %p105 = scmp.ne.s32.totalorder %s91, %s92
    %p106 = scmp.eq.s32.totalorder %s16, 1
    %p107 = por %p105, %p106
    %p109 = scmp.ne.s32.totalorder %s92, %s108
    %p110 = scmp.eq.s32.totalorder %s16, 0
    %p111 = por %p109, %p110
    %s112 = ssub.s32 %s10, %s17
    %p113 = scmp.eq.s32.totalorder %s112, 0
    %s115 = sadd.s32 %s114, 1
    %s116 = scalar_select %p113, %s114, %s115
    %p119 = pneg %p113
    %p120 = scmp.eq.s32.totalorder %s10, 1
    %p121 = por %p119, %p120
    %p122 = scmp.ne.s32.totalorder %s114, %s117
    %p123 = scmp.eq.s32.totalorder %s10, 0
    %p124 = por %p122, %p123
    %p125 = scmp.ne.s32.totalorder %s114, %s117
    %p126 = scmp.eq.s32.totalorder %s15, 1
    %p127 = por %p125, %p126
    %p128 = scmp.ne.s32.totalorder %s117, %s118
    %p129 = scmp.eq.s32.totalorder %s15, 0
    %p130 = por %p128, %p129
    %p131 = scmp.ne.s32.totalorder %s117, %s118
    %p132 = scmp.eq.s32.totalorder %s16, 1
    %p133 = por %p131, %p132
    %p135 = scmp.ne.s32.totalorder %s118, %s134
    %p136 = scmp.eq.s32.totalorder %s16, 0
    %p137 = por %p135, %p136
    %p138 = scmp.le.s32.totalorder 1, %s10
    %p139 = scmp.lt.s32.totalorder %s10, 3
    %p140 = pnand %p138, %p139
    %p141 = pneg %p140
    // Predicated region
    $region9: #{gat_body_forward.3} parent=5 // pred_check
      _
    $region10: #{gat_body_forward.3} parent=5 // pred_check_branch
      %143 = sbr.rel (%p140) target = $region12
    $region11: #{gat_body_forward.3} parent=5 // pred_region
      %s144 = ssub.s32 %s10, 1
      // Predicated region
      $region13: #{gat_body_forward.3} parent=11 // pred_check
        %p145 = pneg %p57
      $region14: #{gat_body_forward.3} parent=11 // pred_check_branch
        %147 = sbr.rel (%p145) target = $region16
      $region15: #{gat_body_forward.3} parent=11 // pred_region
        _
      $region16: #{gat_body_forward.3} parent=11 // pred_fallthru
        _
      // Predicated region
      $region17: #{gat_body_forward.3} parent=11 // pred_check
        %p148 = pneg %p78
      $region18: #{gat_body_forward.3} parent=11 // pred_check_branch
        %150 = sbr.rel (%p148) target = $region20
      $region19: #{gat_body_forward.3} parent=11 // pred_region
        _
      $region20: #{gat_body_forward.3} parent=11 // pred_fallthru
        _
    $region12: #{gat_body_forward.3} parent=5 // pred_fallthru
      _
    %p151 = scmp.lt.s32.totalorder %s10, 2
    // Predicated region
    $region21: #{gat_body_forward.3} parent=5 // pred_check
      %p152 = pneg %p151
    $region22: #{gat_body_forward.3} parent=5 // pred_check_branch
      %154 = sbr.rel (%p152) target = $region24
    $region23: #{gat_body_forward.3} parent=5 // pred_region
      // Predicated region
      $region25: #{gat_body_forward.3} parent=23 // pred_check
        %p155 = pneg %p30
      $region26: #{gat_body_forward.3} parent=23 // pred_check_branch
        %157 = sbr.rel (%p155) target = $region28
      $region27: #{gat_body_forward.3} parent=23 // pred_region
        %s158 = smul.u32 4, %s10
        %p159 = scmp.lt.s32.totalorder %s158, 7
        %s160 = scalar_select %p159, %s158, 7
        %s161 = smul.addr %s160, 2
        %s162 = smul.addr %s161, 8
        %s163 = scalar_lea.vmem %s0, %s162
        %s164 = smul.u32 4, %s10
      $region28: #{gat_body_forward.3} parent=23 // pred_fallthru
        _
      // Predicated region
      $region29: #{gat_body_forward.3} parent=23 // pred_check
        %p165 = pneg %p98
      $region30: #{gat_body_forward.3} parent=23 // pred_check_branch
        %167 = sbr.rel (%p165) target = $region32
      $region31: #{gat_body_forward.3} parent=23 // pred_region
        %s168 = smul.u32 16, %s10
        %p169 = scmp.lt.s32.totalorder %s168, 31
        %s170 = scalar_select %p169, %s168, 31
        %s171 = smul.addr %s170, 8
        %s172 = scalar_lea.vmem %s3, %s171
        %s173 = smul.u32 16, %s10
      $region32: #{gat_body_forward.3} parent=23 // pred_fallthru
        _
    $region24: #{gat_body_forward.3} parent=5 // pred_fallthru
      _
    %p174 = scmp.le.s32.totalorder 1, %s10
    %p175 = scmp.lt.s32.totalorder %s10, 3
    %p176 = pnand %p174, %p175
    %p177 = pneg %p176
    // Predicated region
    $region33: #{gat_body_forward.3} parent=5 // pred_check
      _
    $region34: #{gat_body_forward.3} parent=5 // pred_check_branch
      %179 = sbr.rel (%p176) target = $region36
    $region35: #{gat_body_forward.3} parent=5 // pred_region
      %s180 = ssub.s32 %s10, 1
      %s181 = smul.u32 4, %s15
      %p182 = scmp.lt.s32.totalorder %s181, 7
      %s183 = scalar_select %p182, %s181, 7
      %s184 = smul.addr %s183, 2
      %s185 = smul.addr %s184, 8
      %s186 = scalar_lea.vmem %s0, %s185
      %p187 = pneg %p36
      %p188 = pneg %p33
      %p189 = pneg %p57
      %p190 = pneg %p54
      %p191 = pneg %p78
      %p192 = pneg %p75
      %s193 = smul.u32 16, %s15
      %p194 = scmp.lt.s32.totalorder %s193, 31
      %s195 = scalar_select %p194, %s193, 31
      %s196 = smul.addr %s195, 8
      %s197 = scalar_lea.vmem %s3, %s196
      %p198 = pneg %p104
      %p199 = pneg %p101
      %p200 = pneg %p130
      %p201 = pneg %p127
      %s202 = smul.u32 16, %s15
      %p203 = scmp.lt.s32.totalorder %s202, 31
      %s204 = scalar_select %p203, %s202, 31
      %s205 = smul.addr %s204, 8
      %s206 = scalar_lea.vmem %s4, %s205
      %s207 = smul.u32 4, %s15
      %p208 = scmp.lt.s32.totalorder %s207, 7
      %s209 = scalar_select %p208, %s207, 7
      %s210 = smul.addr %s209, 2
      %s211 = smul.addr %s210, 8
      %s212 = scalar_lea.vmem %s0, %s211
      %s213 = smul.u32 4, %s15
      %s214 = smul.u32 16, %s15
      %p215 = scmp.lt.s32.totalorder %s214, 31
      %s216 = scalar_select %p215, %s214, 31
      %s217 = smul.addr %s216, 8
      %s218 = scalar_lea.vmem %s3, %s217
      %s219 = smul.u32 16, %s15
      %s220 = smul.u32 16, %s15
      %p221 = scmp.lt.s32.totalorder %s220, 31
      %s222 = scalar_select %p221, %s220, 31
      %s223 = smul.addr %s222, 8
      %s224 = scalar_lea.vmem %s4, %s223
      %s225 = smul.u32 16, %s15
      %v227 = vld [vmem:[%s212] sm:$0xff]
      %v228 = vld [vmem:[%s212 + $0x8] sm:$0xff]
      %v229 = vld [vmem:[%s212 + $0x10] sm:$0xff]
      %v230 = vld [vmem:[%s212 + $0x18] sm:$0xff]
      %v231 = vld [vmem:[%s212 + $0x20] sm:$0xff]
      %v232 = vld [vmem:[%s212 + $0x28] sm:$0xff]
      %v233 = vld [vmem:[%s212 + $0x30] sm:$0xff]
      %v234 = vld [vmem:[%s212 + $0x38] sm:$0xff]
      %v235 = vunpack.c.0.s8 %v227
      %v236 = vunpack.c.0.s8 %v228
      %v237 = vunpack.c.1.s8 %v227
      %v238 = vunpack.c.1.s8 %v228
      %v239 = vunpack.c.2.s8 %v227
      %v240 = vunpack.c.2.s8 %v228
      %v241 = vunpack.c.3.s8 %v227
      %v242 = vunpack.c.3.s8 %v228
      %v243 = vunpack.c.0.s8 %v229
      %v244 = vunpack.c.0.s8 %v230
      %v245 = vunpack.c.1.s8 %v229
      %v246 = vunpack.c.1.s8 %v230
      %v247 = vunpack.c.2.s8 %v229
      %v248 = vunpack.c.2.s8 %v230
      %v249 = vunpack.c.3.s8 %v229
      %v250 = vunpack.c.3.s8 %v230
      %v251 = vunpack.c.0.s8 %v231
      %v252 = vunpack.c.0.s8 %v232
      %v253 = vunpack.c.1.s8 %v231
      %v254 = vunpack.c.1.s8 %v232
      %v255 = vunpack.c.2.s8 %v231
      %v256 = vunpack.c.2.s8 %v232
      %v257 = vunpack.c.3.s8 %v231
      %v258 = vunpack.c.3.s8 %v232
      %v259 = vunpack.c.0.s8 %v233
      %v260 = vunpack.c.0.s8 %v234
      %v261 = vunpack.c.1.s8 %v233
      %v262 = vunpack.c.1.s8 %v234
      %v263 = vunpack.c.2.s8 %v233
      %v264 = vunpack.c.2.s8 %v234
      %v265 = vunpack.c.3.s8 %v233
      %v266 = vunpack.c.3.s8 %v234
      %vm267 = vcmp.gt.s32.totalorder %v235, 0
      %vm268 = vcmp.gt.s32.totalorder %v236, 0
      %vm269 = vcmp.gt.s32.totalorder %v237, 0
      %vm270 = vcmp.gt.s32.totalorder %v238, 0
      %vm271 = vcmp.gt.s32.totalorder %v239, 0
      %vm272 = vcmp.gt.s32.totalorder %v240, 0
      %vm273 = vcmp.gt.s32.totalorder %v241, 0
      %vm274 = vcmp.gt.s32.totalorder %v242, 0
      %vm275 = vcmp.gt.s32.totalorder %v243, 0
      %vm276 = vcmp.gt.s32.totalorder %v244, 0
      %vm277 = vcmp.gt.s32.totalorder %v245, 0
      %vm278 = vcmp.gt.s32.totalorder %v246, 0
      %vm279 = vcmp.gt.s32.totalorder %v247, 0
      %vm280 = vcmp.gt.s32.totalorder %v248, 0
      %vm281 = vcmp.gt.s32.totalorder %v249, 0
      %vm282 = vcmp.gt.s32.totalorder %v250, 0
      %vm283 = vcmp.gt.s32.totalorder %v251, 0
      %vm284 = vcmp.gt.s32.totalorder %v252, 0
      %vm285 = vcmp.gt.s32.totalorder %v253, 0
      %vm286 = vcmp.gt.s32.totalorder %v254, 0
      %vm287 = vcmp.gt.s32.totalorder %v255, 0
      %vm288 = vcmp.gt.s32.totalorder %v256, 0
      %vm289 = vcmp.gt.s32.totalorder %v257, 0
      %vm290 = vcmp.gt.s32.totalorder %v258, 0
      %vm291 = vcmp.gt.s32.totalorder %v259, 0
      %vm292 = vcmp.gt.s32.totalorder %v260, 0
      %vm293 = vcmp.gt.s32.totalorder %v261, 0
      %vm294 = vcmp.gt.s32.totalorder %v262, 0
      %vm295 = vcmp.gt.s32.totalorder %v263, 0
      %vm296 = vcmp.gt.s32.totalorder %v264, 0
      %vm297 = vcmp.gt.s32.totalorder %v265, 0
      %vm298 = vcmp.gt.s32.totalorder %v266, 0
      %v299 = vsel %vm267, 0.0, -1e+30
      %v300 = vsel %vm268, 0.0, -1e+30
      %v301 = vsel %vm269, 0.0, -1e+30
      %v302 = vsel %vm270, 0.0, -1e+30
      %v303 = vsel %vm271, 0.0, -1e+30
      %v304 = vsel %vm272, 0.0, -1e+30
      %v305 = vsel %vm273, 0.0, -1e+30
      %v306 = vsel %vm274, 0.0, -1e+30
      %v307 = vsel %vm275, 0.0, -1e+30
      %v308 = vsel %vm276, 0.0, -1e+30
      %v309 = vsel %vm277, 0.0, -1e+30
      %v310 = vsel %vm278, 0.0, -1e+30
      %v311 = vsel %vm279, 0.0, -1e+30
      %v312 = vsel %vm280, 0.0, -1e+30
      %v313 = vsel %vm281, 0.0, -1e+30
      %v314 = vsel %vm282, 0.0, -1e+30
      %v315 = vsel %vm283, 0.0, -1e+30
      %v316 = vsel %vm284, 0.0, -1e+30
      %v317 = vsel %vm285, 0.0, -1e+30
      %v318 = vsel %vm286, 0.0, -1e+30
      %v319 = vsel %vm287, 0.0, -1e+30
      %v320 = vsel %vm288, 0.0, -1e+30
      %v321 = vsel %vm289, 0.0, -1e+30
      %v322 = vsel %vm290, 0.0, -1e+30
      %v323 = vsel %vm291, 0.0, -1e+30
      %v324 = vsel %vm292, 0.0, -1e+30
      %v325 = vsel %vm293, 0.0, -1e+30
      %v326 = vsel %vm294, 0.0, -1e+30
      %v327 = vsel %vm295, 0.0, -1e+30
      %v328 = vsel %vm296, 0.0, -1e+30
      %v329 = vsel %vm297, 0.0, -1e+30
      %v330 = vsel %vm298, 0.0, -1e+30
      %v331 = vld [vmem:[%s218] sm:$0xff]
      %v332 = vld [vmem:[%s218 + $0x8] sm:$0xff]
      %v333 = vld [vmem:[%s218 + $0x10] sm:$0xff]
      %v334 = vld [vmem:[%s218 + $0x18] sm:$0xff]
      %v335 = vld [vmem:[%s218 + $0x20] sm:$0xff]
      %v336 = vld [vmem:[%s218 + $0x28] sm:$0xff]
      %v337 = vld [vmem:[%s218 + $0x30] sm:$0xff]
      %v338 = vld [vmem:[%s218 + $0x38] sm:$0xff]
      %v339 = vld [vmem:[%s218 + $0x40] sm:$0xff]
      %v340 = vld [vmem:[%s218 + $0x48] sm:$0xff]
      %v341 = vld [vmem:[%s218 + $0x50] sm:$0xff]
      %v342 = vld [vmem:[%s218 + $0x58] sm:$0xff]
      %v343 = vld [vmem:[%s218 + $0x60] sm:$0xff]
      %v344 = vld [vmem:[%s218 + $0x68] sm:$0xff]
      %v345 = vld [vmem:[%s218 + $0x70] sm:$0xff]
      %v346 = vld [vmem:[%s218 + $0x78] sm:$0xff]
      %v347 = vld [vmem:[%s2] ss:$8 sm:$0x3]
      %349 = vset.pattern.permute.xlu0 0
      %350 = vperm.xlu0 %349, %v331
      %v351 = vpop.permute.xlu0 %350
      %354 = vset.pattern.permute.xlu0 0
      %355 = vperm.xlu0 %354, %v332
      %v356 = vpop.permute.xlu0 %355
      %359 = vset.pattern.permute.xlu0 0
      %360 = vperm.xlu0 %359, %v333
      %v361 = vpop.permute.xlu0 %360
      %364 = vset.pattern.permute.xlu0 0
      %365 = vperm.xlu0 %364, %v334
      %v366 = vpop.permute.xlu0 %365
      %369 = vset.pattern.permute.xlu0 0
      %370 = vperm.xlu0 %369, %v335
      %v371 = vpop.permute.xlu0 %370
      %374 = vset.pattern.permute.xlu0 0
      %375 = vperm.xlu0 %374, %v336
      %v376 = vpop.permute.xlu0 %375
      %379 = vset.pattern.permute.xlu0 0
      %380 = vperm.xlu0 %379, %v337
      %v381 = vpop.permute.xlu0 %380
      %384 = vset.pattern.permute.xlu0 0
      %385 = vperm.xlu0 %384, %v338
      %v386 = vpop.permute.xlu0 %385
      %389 = vset.pattern.permute.xlu0 0
      %390 = vperm.xlu0 %389, %v339
      %v391 = vpop.permute.xlu0 %390
      %394 = vset.pattern.permute.xlu0 0
      %395 = vperm.xlu0 %394, %v340
      %v396 = vpop.permute.xlu0 %395
      %399 = vset.pattern.permute.xlu0 0
      %400 = vperm.xlu0 %399, %v341
      %v401 = vpop.permute.xlu0 %400
      %404 = vset.pattern.permute.xlu0 0
      %405 = vperm.xlu0 %404, %v342
      %v406 = vpop.permute.xlu0 %405
      %409 = vset.pattern.permute.xlu0 0
      %410 = vperm.xlu0 %409, %v343
      %v411 = vpop.permute.xlu0 %410
      %414 = vset.pattern.permute.xlu0 0
      %415 = vperm.xlu0 %414, %v344
      %v416 = vpop.permute.xlu0 %415
      %419 = vset.pattern.permute.xlu0 0
      %420 = vperm.xlu0 %419, %v345
      %v421 = vpop.permute.xlu0 %420
      %424 = vset.pattern.permute.xlu0 0
      %425 = vperm.xlu0 %424, %v346
      %v426 = vpop.permute.xlu0 %425
      %v429 = vlaneseq
      %v430 = vshrl.u32 %v429, 7
      %v431 = vsub.s32 0, %v430
      %v432 = vrot.slane %v347, %v431
      %v433 = vlaneseq
      %v434 = vshrl.u32 %v433, 7
      %v435 = vsub.s32 1, %v434
      %v436 = vrot.slane %v347, %v435
      %v439 = vadd.f32 %v351, %v432
      %v440 = vadd.f32 %v351, %v436
      %v441 = vadd.f32 %v356, %v432
      %v442 = vadd.f32 %v356, %v436
      %v443 = vadd.f32 %v361, %v432
      %v444 = vadd.f32 %v361, %v436
      %v445 = vadd.f32 %v366, %v432
      %v446 = vadd.f32 %v366, %v436
      %v447 = vadd.f32 %v371, %v432
      %v448 = vadd.f32 %v371, %v436
      %v449 = vadd.f32 %v376, %v432
      %v450 = vadd.f32 %v376, %v436
      %v451 = vadd.f32 %v381, %v432
      %v452 = vadd.f32 %v381, %v436
      %v453 = vadd.f32 %v386, %v432
      %v454 = vadd.f32 %v386, %v436
      %v455 = vadd.f32 %v391, %v432
      %v456 = vadd.f32 %v391, %v436
      %v457 = vadd.f32 %v396, %v432
      %v458 = vadd.f32 %v396, %v436
      %v459 = vadd.f32 %v401, %v432
      %v460 = vadd.f32 %v401, %v436
      %v461 = vadd.f32 %v406, %v432
      %v462 = vadd.f32 %v406, %v436
      %v463 = vadd.f32 %v411, %v432
      %v464 = vadd.f32 %v411, %v436
      %v465 = vadd.f32 %v416, %v432
      %v466 = vadd.f32 %v416, %v436
      %v467 = vadd.f32 %v421, %v432
      %v468 = vadd.f32 %v421, %v436
      %v469 = vadd.f32 %v426, %v432
      %v470 = vadd.f32 %v426, %v436
      %vm471 = vcmp.gt.f32.partialorder %v439, 0.0
      %vm472 = vcmp.gt.f32.partialorder %v440, 0.0
      %vm473 = vcmp.gt.f32.partialorder %v441, 0.0
      %vm474 = vcmp.gt.f32.partialorder %v442, 0.0
      %vm475 = vcmp.gt.f32.partialorder %v443, 0.0
      %vm476 = vcmp.gt.f32.partialorder %v444, 0.0
      %vm477 = vcmp.gt.f32.partialorder %v445, 0.0
      %vm478 = vcmp.gt.f32.partialorder %v446, 0.0
      %vm479 = vcmp.gt.f32.partialorder %v447, 0.0
      %vm480 = vcmp.gt.f32.partialorder %v448, 0.0
      %vm481 = vcmp.gt.f32.partialorder %v449, 0.0
      %vm482 = vcmp.gt.f32.partialorder %v450, 0.0
      %vm483 = vcmp.gt.f32.partialorder %v451, 0.0
      %vm484 = vcmp.gt.f32.partialorder %v452, 0.0
      %vm485 = vcmp.gt.f32.partialorder %v453, 0.0
      %vm486 = vcmp.gt.f32.partialorder %v454, 0.0
      %vm487 = vcmp.gt.f32.partialorder %v455, 0.0
      %vm488 = vcmp.gt.f32.partialorder %v456, 0.0
      %vm489 = vcmp.gt.f32.partialorder %v457, 0.0
      %vm490 = vcmp.gt.f32.partialorder %v458, 0.0
      %vm491 = vcmp.gt.f32.partialorder %v459, 0.0
      %vm492 = vcmp.gt.f32.partialorder %v460, 0.0
      %vm493 = vcmp.gt.f32.partialorder %v461, 0.0
      %vm494 = vcmp.gt.f32.partialorder %v462, 0.0
      %vm495 = vcmp.gt.f32.partialorder %v463, 0.0
      %vm496 = vcmp.gt.f32.partialorder %v464, 0.0
      %vm497 = vcmp.gt.f32.partialorder %v465, 0.0
      %vm498 = vcmp.gt.f32.partialorder %v466, 0.0
      %vm499 = vcmp.gt.f32.partialorder %v467, 0.0
      %vm500 = vcmp.gt.f32.partialorder %v468, 0.0
      %vm501 = vcmp.gt.f32.partialorder %v469, 0.0
      %vm502 = vcmp.gt.f32.partialorder %v470, 0.0
      %v503 = vmul.f32 %v439, 0.2
      %v504 = vmul.f32 %v440, 0.2
      %v505 = vmul.f32 %v441, 0.2
      %v506 = vmul.f32 %v442, 0.2
      %v507 = vmul.f32 %v443, 0.2
      %v508 = vmul.f32 %v444, 0.2
      %v509 = vmul.f32 %v445, 0.2
      %v510 = vmul.f32 %v446, 0.2
      %v511 = vmul.f32 %v447, 0.2
      %v512 = vmul.f32 %v448, 0.2
      %v513 = vmul.f32 %v449, 0.2
      %v514 = vmul.f32 %v450, 0.2
      %v515 = vmul.f32 %v451, 0.2
      %v516 = vmul.f32 %v452, 0.2
      %v517 = vmul.f32 %v453, 0.2
      %v518 = vmul.f32 %v454, 0.2
      %v519 = vmul.f32 %v455, 0.2
      %v520 = vmul.f32 %v456, 0.2
      %v521 = vmul.f32 %v457, 0.2
      %v522 = vmul.f32 %v458, 0.2
      %v523 = vmul.f32 %v459, 0.2
      %v524 = vmul.f32 %v460, 0.2
      %v525 = vmul.f32 %v461, 0.2
      %v526 = vmul.f32 %v462, 0.2
      %v527 = vmul.f32 %v463, 0.2
      %v528 = vmul.f32 %v464, 0.2
      %v529 = vmul.f32 %v465, 0.2
      %v530 = vmul.f32 %v466, 0.2
      %v531 = vmul.f32 %v467, 0.2
      %v532 = vmul.f32 %v468, 0.2
      %v533 = vmul.f32 %v469, 0.2
      %v534 = vmul.f32 %v470, 0.2
      %v535 = vsel %vm471, %v439, %v503
      %v536 = vsel %vm472, %v440, %v504
      %v537 = vsel %vm473, %v441, %v505
      %v538 = vsel %vm474, %v442, %v506
      %v539 = vsel %vm475, %v443, %v507
      %v540 = vsel %vm476, %v444, %v508
      %v541 = vsel %vm477, %v445, %v509
      %v542 = vsel %vm478, %v446, %v510
      %v543 = vsel %vm479, %v447, %v511
      %v544 = vsel %vm480, %v448, %v512
      %v545 = vsel %vm481, %v449, %v513
      %v546 = vsel %vm482, %v450, %v514
      %v547 = vsel %vm483, %v451, %v515
      %v548 = vsel %vm484, %v452, %v516
      %v549 = vsel %vm485, %v453, %v517
      %v550 = vsel %vm486, %v454, %v518
      %v551 = vsel %vm487, %v455, %v519
      %v552 = vsel %vm488, %v456, %v520
      %v553 = vsel %vm489, %v457, %v521
      %v554 = vsel %vm490, %v458, %v522
      %v555 = vsel %vm491, %v459, %v523
      %v556 = vsel %vm492, %v460, %v524
      %v557 = vsel %vm493, %v461, %v525
      %v558 = vsel %vm494, %v462, %v526
      %v559 = vsel %vm495, %v463, %v527
      %v560 = vsel %vm496, %v464, %v528
      %v561 = vsel %vm497, %v465, %v529
      %v562 = vsel %vm498, %v466, %v530
      %v563 = vsel %vm499, %v467, %v531
      %v564 = vsel %vm500, %v468, %v532
      %v565 = vsel %vm501, %v469, %v533
      %v566 = vsel %vm502, %v470, %v534
      %v567 = vadd.f32 %v535, %v299
      %v568 = vadd.f32 %v536, %v300
      %v569 = vadd.f32 %v537, %v301
      %v570 = vadd.f32 %v538, %v302
      %v571 = vadd.f32 %v539, %v303
      %v572 = vadd.f32 %v540, %v304
      %v573 = vadd.f32 %v541, %v305
      %v574 = vadd.f32 %v542, %v306
      %v575 = vadd.f32 %v543, %v307
      %v576 = vadd.f32 %v544, %v308
      %v577 = vadd.f32 %v545, %v309
      %v578 = vadd.f32 %v546, %v310
      %v579 = vadd.f32 %v547, %v311
      %v580 = vadd.f32 %v548, %v312
      %v581 = vadd.f32 %v549, %v313
      %v582 = vadd.f32 %v550, %v314
      %v583 = vadd.f32 %v551, %v315
      %v584 = vadd.f32 %v552, %v316
      %v585 = vadd.f32 %v553, %v317
      %v586 = vadd.f32 %v554, %v318
      %v587 = vadd.f32 %v555, %v319
      %v588 = vadd.f32 %v556, %v320
      %v589 = vadd.f32 %v557, %v321
      %v590 = vadd.f32 %v558, %v322
      %v591 = vadd.f32 %v559, %v323
      %v592 = vadd.f32 %v560, %v324
      %v593 = vadd.f32 %v561, %v325
      %v594 = vadd.f32 %v562, %v326
      %v595 = vadd.f32 %v563, %v327
      %v596 = vadd.f32 %v564, %v328
      %v597 = vadd.f32 %v565, %v329
      %v598 = vadd.f32 %v566, %v330
      %v599 = vmax.f32 %v567, %v568
      %600 = vmax.xlane.f32.xlu0 %v599
      %v601 = vpop.xlane.xlu0 %600
      %v602 = vmax.f32 %v569, %v570
      %603 = vmax.xlane.f32.xlu0 %v602
      %v604 = vpop.xlane.xlu0 %603
      %v605 = vmax.f32 %v571, %v572
      %606 = vmax.xlane.f32.xlu0 %v605
      %v607 = vpop.xlane.xlu0 %606
      %v608 = vmax.f32 %v573, %v574
      %609 = vmax.xlane.f32.xlu0 %v608
      %v610 = vpop.xlane.xlu0 %609
      %v611 = vmax.f32 %v575, %v576
      %612 = vmax.xlane.f32.xlu0 %v611
      %v613 = vpop.xlane.xlu0 %612
      %v614 = vmax.f32 %v577, %v578
      %615 = vmax.xlane.f32.xlu0 %v614
      %v616 = vpop.xlane.xlu0 %615
      %v617 = vmax.f32 %v579, %v580
      %618 = vmax.xlane.f32.xlu0 %v617
      %v619 = vpop.xlane.xlu0 %618
      %v620 = vmax.f32 %v581, %v582
      %621 = vmax.xlane.f32.xlu0 %v620
      %v622 = vpop.xlane.xlu0 %621
      %v623 = vmax.f32 %v583, %v584
      %624 = vmax.xlane.f32.xlu0 %v623
      %v625 = vpop.xlane.xlu0 %624
      %v626 = vmax.f32 %v585, %v586
      %627 = vmax.xlane.f32.xlu0 %v626
      %v628 = vpop.xlane.xlu0 %627
      %v629 = vmax.f32 %v587, %v588
      %630 = vmax.xlane.f32.xlu0 %v629
      %v631 = vpop.xlane.xlu0 %630
      %v632 = vmax.f32 %v589, %v590
      %633 = vmax.xlane.f32.xlu0 %v632
      %v634 = vpop.xlane.xlu0 %633
      %v635 = vmax.f32 %v591, %v592
      %636 = vmax.xlane.f32.xlu0 %v635
      %v637 = vpop.xlane.xlu0 %636
      %v638 = vmax.f32 %v593, %v594
      %639 = vmax.xlane.f32.xlu0 %v638
      %v640 = vpop.xlane.xlu0 %639
      %v641 = vmax.f32 %v595, %v596
      %642 = vmax.xlane.f32.xlu0 %v641
      %v643 = vpop.xlane.xlu0 %642
      %v644 = vmax.f32 %v597, %v598
      %645 = vmax.xlane.f32.xlu0 %v644
      %v646 = vpop.xlane.xlu0 %645
      %v647 = vsub.f32 %v567, %v601
      %v648 = vsub.f32 %v568, %v601
      %v649 = vsub.f32 %v569, %v604
      %v650 = vsub.f32 %v570, %v604
      %v651 = vsub.f32 %v571, %v607
      %v652 = vsub.f32 %v572, %v607
      %v653 = vsub.f32 %v573, %v610
      %v654 = vsub.f32 %v574, %v610
      %v655 = vsub.f32 %v575, %v613
      %v656 = vsub.f32 %v576, %v613
      %v657 = vsub.f32 %v577, %v616
      %v658 = vsub.f32 %v578, %v616
      %v659 = vsub.f32 %v579, %v619
      %v660 = vsub.f32 %v580, %v619
      %v661 = vsub.f32 %v581, %v622
      %v662 = vsub.f32 %v582, %v622
      %v663 = vsub.f32 %v583, %v625
      %v664 = vsub.f32 %v584, %v625
      %v665 = vsub.f32 %v585, %v628
      %v666 = vsub.f32 %v586, %v628
      %v667 = vsub.f32 %v587, %v631
      %v668 = vsub.f32 %v588, %v631
      %v669 = vsub.f32 %v589, %v634
      %v670 = vsub.f32 %v590, %v634
      %v671 = vsub.f32 %v591, %v637
      %v672 = vsub.f32 %v592, %v637
      %v673 = vsub.f32 %v593, %v640
      %v674 = vsub.f32 %v594, %v640
      %v675 = vsub.f32 %v595, %v643
      %v676 = vsub.f32 %v596, %v643
      %v677 = vsub.f32 %v597, %v646
      %v678 = vsub.f32 %v598, %v646
      %v679 = vmul.f32 %v647, 1.442695
      %v680 = vpow.pop %v679
      %v681 = vmul.f32 %v648, 1.442695
      %v682 = vpow.pop %v681
      %v683 = vmul.f32 %v649, 1.442695
      %v684 = vpow.pop %v683
      %v685 = vmul.f32 %v650, 1.442695
      %v686 = vpow.pop %v685
      %v687 = vmul.f32 %v651, 1.442695
      %v688 = vpow.pop %v687
      %v689 = vmul.f32 %v652, 1.442695
      %v690 = vpow.pop %v689
      %v691 = vmul.f32 %v653, 1.442695
      %v692 = vpow.pop %v691
      %v693 = vmul.f32 %v654, 1.442695
      %v694 = vpow.pop %v693
      %v695 = vmul.f32 %v655, 1.442695
      %v696 = vpow.pop %v695
      %v697 = vmul.f32 %v656, 1.442695
      %v698 = vpow.pop %v697
      %v699 = vmul.f32 %v657, 1.442695
      %v700 = vpow.pop %v699
      %v701 = vmul.f32 %v658, 1.442695
      %v702 = vpow.pop %v701
      %v703 = vmul.f32 %v659, 1.442695
      %v704 = vpow.pop %v703
      %v705 = vmul.f32 %v660, 1.442695
      %v706 = vpow.pop %v705
      %v707 = vmul.f32 %v661, 1.442695
      %v708 = vpow.pop %v707
      %v709 = vmul.f32 %v662, 1.442695
      %v710 = vpow.pop %v709
      %v711 = vmul.f32 %v663, 1.442695
      %v712 = vpow.pop %v711
      %v713 = vmul.f32 %v664, 1.442695
      %v714 = vpow.pop %v713
      %v715 = vmul.f32 %v665, 1.442695
      %v716 = vpow.pop %v715
      %v717 = vmul.f32 %v666, 1.442695
      %v718 = vpow.pop %v717
      %v719 = vmul.f32 %v667, 1.442695
      %v720 = vpow.pop %v719
      %v721 = vmul.f32 %v668, 1.442695
      %v722 = vpow.pop %v721
      %v723 = vmul.f32 %v669, 1.442695
      %v724 = vpow.pop %v723
      %v725 = vmul.f32 %v670, 1.442695
      %v726 = vpow.pop %v725
      %v727 = vmul.f32 %v671, 1.442695
      %v728 = vpow.pop %v727
      %v729 = vmul.f32 %v672, 1.442695
      %v730 = vpow.pop %v729
      %v731 = vmul.f32 %v673, 1.442695
      %v732 = vpow.pop %v731
      %v733 = vmul.f32 %v674, 1.442695
      %v734 = vpow.pop %v733
      %v735 = vmul.f32 %v675, 1.442695
      %v736 = vpow.pop %v735
      %v737 = vmul.f32 %v676, 1.442695
      %v738 = vpow.pop %v737
      %v739 = vmul.f32 %v677, 1.442695
      %v740 = vpow.pop %v739
      %v741 = vmul.f32 %v678, 1.442695
      %v742 = vpow.pop %v741
      %v743 = vadd.f32 %v680, %v682
      %744 = vadd.xlane.f32.xlu0 %v743
      %v745 = vpop.xlane.xlu0 %744
      %v746 = vadd.f32 %v684, %v686
      %747 = vadd.xlane.f32.xlu0 %v746
      %v748 = vpop.xlane.xlu0 %747
      %v749 = vadd.f32 %v688, %v690
      %750 = vadd.xlane.f32.xlu0 %v749
      %v751 = vpop.xlane.xlu0 %750
      %v752 = vadd.f32 %v692, %v694
      %753 = vadd.xlane.f32.xlu0 %v752
      %v754 = vpop.xlane.xlu0 %753
      %v755 = vadd.f32 %v696, %v698
      %756 = vadd.xlane.f32.xlu0 %v755
      %v757 = vpop.xlane.xlu0 %756
      %v758 = vadd.f32 %v700, %v702
      %759 = vadd.xlane.f32.xlu0 %v758
      %v760 = vpop.xlane.xlu0 %759
      %v761 = vadd.f32 %v704, %v706
      %762 = vadd.xlane.f32.xlu0 %v761
      %v763 = vpop.xlane.xlu0 %762
      %v764 = vadd.f32 %v708, %v710
      %765 = vadd.xlane.f32.xlu0 %v764
      %v766 = vpop.xlane.xlu0 %765
      %v767 = vadd.f32 %v712, %v714
      %768 = vadd.xlane.f32.xlu0 %v767
      %v769 = vpop.xlane.xlu0 %768
      %v770 = vadd.f32 %v716, %v718
      %771 = vadd.xlane.f32.xlu0 %v770
      %v772 = vpop.xlane.xlu0 %771
      %v773 = vadd.f32 %v720, %v722
      %774 = vadd.xlane.f32.xlu0 %v773
      %v775 = vpop.xlane.xlu0 %774
      %v776 = vadd.f32 %v724, %v726
      %777 = vadd.xlane.f32.xlu0 %v776
      %v778 = vpop.xlane.xlu0 %777
      %v779 = vadd.f32 %v728, %v730
      %780 = vadd.xlane.f32.xlu0 %v779
      %v781 = vpop.xlane.xlu0 %780
      %v782 = vadd.f32 %v732, %v734
      %783 = vadd.xlane.f32.xlu0 %v782
      %v784 = vpop.xlane.xlu0 %783
      %v785 = vadd.f32 %v736, %v738
      %786 = vadd.xlane.f32.xlu0 %v785
      %v787 = vpop.xlane.xlu0 %786
      %v788 = vadd.f32 %v740, %v742
      %789 = vadd.xlane.f32.xlu0 %v788
      %v790 = vpop.xlane.xlu0 %789
      %vm791 = vcmp.gt.f32.partialorder %v601, -1e+20
      %vm792 = vcmp.gt.f32.partialorder %v604, -1e+20
      %vm793 = vcmp.gt.f32.partialorder %v607, -1e+20
      %vm794 = vcmp.gt.f32.partialorder %v610, -1e+20
      %vm795 = vcmp.gt.f32.partialorder %v613, -1e+20
      %vm796 = vcmp.gt.f32.partialorder %v616, -1e+20
      %vm797 = vcmp.gt.f32.partialorder %v619, -1e+20
      %vm798 = vcmp.gt.f32.partialorder %v622, -1e+20
      %vm799 = vcmp.gt.f32.partialorder %v625, -1e+20
      %vm800 = vcmp.gt.f32.partialorder %v628, -1e+20
      %vm801 = vcmp.gt.f32.partialorder %v631, -1e+20
      %vm802 = vcmp.gt.f32.partialorder %v634, -1e+20
      %vm803 = vcmp.gt.f32.partialorder %v637, -1e+20
      %vm804 = vcmp.gt.f32.partialorder %v640, -1e+20
      %vm805 = vcmp.gt.f32.partialorder %v643, -1e+20
      %vm806 = vcmp.gt.f32.partialorder %v646, -1e+20
      %v807 = vrcp.pop %v745
      %v808 = vrcp.pop %v748
      %v809 = vrcp.pop %v751
      %v810 = vrcp.pop %v754
      %v811 = vrcp.pop %v757
      %v812 = vrcp.pop %v760
      %v813 = vrcp.pop %v763
      %v814 = vrcp.pop %v766
      %v815 = vrcp.pop %v769
      %v816 = vrcp.pop %v772
      %v817 = vrcp.pop %v775
      %v818 = vrcp.pop %v778
      %v819 = vrcp.pop %v781
      %v820 = vrcp.pop %v784
      %v821 = vrcp.pop %v787
      %v822 = vrcp.pop %v790
      %v823 = vsel %vm791, %v807, 0.0
      %v824 = vsel %vm792, %v808, 0.0
      %v825 = vsel %vm793, %v809, 0.0
      %v826 = vsel %vm794, %v810, 0.0
      %v827 = vsel %vm795, %v811, 0.0
      %v828 = vsel %vm796, %v812, 0.0
      %v829 = vsel %vm797, %v813, 0.0
      %v830 = vsel %vm798, %v814, 0.0
      %v831 = vsel %vm799, %v815, 0.0
      %v832 = vsel %vm800, %v816, 0.0
      %v833 = vsel %vm801, %v817, 0.0
      %v834 = vsel %vm802, %v818, 0.0
      %v835 = vsel %vm803, %v819, 0.0
      %v836 = vsel %vm804, %v820, 0.0
      %v837 = vsel %vm805, %v821, 0.0
      %v838 = vsel %vm806, %v822, 0.0
      %v839 = vmul.f32 %v680, %v823
      %v840 = vmul.f32 %v682, %v823
      %v841 = vmul.f32 %v684, %v824
      %v842 = vmul.f32 %v686, %v824
      %v843 = vmul.f32 %v688, %v825
      %v844 = vmul.f32 %v690, %v825
      %v845 = vmul.f32 %v692, %v826
      %v846 = vmul.f32 %v694, %v826
      %v847 = vmul.f32 %v696, %v827
      %v848 = vmul.f32 %v698, %v827
      %v849 = vmul.f32 %v700, %v828
      %v850 = vmul.f32 %v702, %v828
      %v851 = vmul.f32 %v704, %v829
      %v852 = vmul.f32 %v706, %v829
      %v853 = vmul.f32 %v708, %v830
      %v854 = vmul.f32 %v710, %v830
      %v855 = vmul.f32 %v712, %v831
      %v856 = vmul.f32 %v714, %v831
      %v857 = vmul.f32 %v716, %v832
      %v858 = vmul.f32 %v718, %v832
      %v859 = vmul.f32 %v720, %v833
      %v860 = vmul.f32 %v722, %v833
      %v861 = vmul.f32 %v724, %v834
      %v862 = vmul.f32 %v726, %v834
      %v863 = vmul.f32 %v728, %v835
      %v864 = vmul.f32 %v730, %v835
      %v865 = vmul.f32 %v732, %v836
      %v866 = vmul.f32 %v734, %v836
      %v867 = vmul.f32 %v736, %v837
      %v868 = vmul.f32 %v738, %v837
      %v869 = vmul.f32 %v740, %v838
      %v870 = vmul.f32 %v742, %v838
      %v871 = vpack.c.bf16 %v841, %v839
      %v872 = vpack.c.bf16 %v842, %v840
      %v873 = vpack.c.bf16 %v845, %v843
      %v874 = vpack.c.bf16 %v846, %v844
      %v875 = vpack.c.bf16 %v849, %v847
      %v876 = vpack.c.bf16 %v850, %v848
      %v877 = vpack.c.bf16 %v853, %v851
      %v878 = vpack.c.bf16 %v854, %v852
      %v879 = vpack.c.bf16 %v857, %v855
      %v880 = vpack.c.bf16 %v858, %v856
      %v881 = vpack.c.bf16 %v861, %v859
      %v882 = vpack.c.bf16 %v862, %v860
      %v883 = vpack.c.bf16 %v865, %v863
      %v884 = vpack.c.bf16 %v866, %v864
      %v885 = vpack.c.bf16 %v869, %v867
      %v886 = vpack.c.bf16 %v870, %v868
      %v887 = vld [vmem:[%s1] sm:$0xf]
      %v888 = vld [vmem:[%s1 + $0x4] sm:$0xf]
      %v889 = vld [vmem:[%s1 + $0x8] sm:$0xf]
      %v890 = vld [vmem:[%s1 + $0xc] sm:$0xf]
      %v891 = vld [vmem:[%s1 + $0x10] sm:$0xf]
      %v892 = vld [vmem:[%s1 + $0x14] sm:$0xf]
      %v893 = vld [vmem:[%s1 + $0x18] sm:$0xf]
      %v894 = vld [vmem:[%s1 + $0x1c] sm:$0xf]
      %v895 = vld [vmem:[%s1 + $0x20] sm:$0xf]
      %v896 = vld [vmem:[%s1 + $0x24] sm:$0xf]
      %v897 = vld [vmem:[%s1 + $0x28] sm:$0xf]
      %v898 = vld [vmem:[%s1 + $0x2c] sm:$0xf]
      %v899 = vld [vmem:[%s1 + $0x30] sm:$0xf]
      %v900 = vld [vmem:[%s1 + $0x34] sm:$0xf]
      %v901 = vld [vmem:[%s1 + $0x38] sm:$0xf]
      %v902 = vld [vmem:[%s1 + $0x3c] sm:$0xf]
      %v903 = vld [vmem:[%s1 + $0x40] sm:$0xf]
      %v904 = vld [vmem:[%s1 + $0x44] sm:$0xf]
      %v905 = vld [vmem:[%s1 + $0x48] sm:$0xf]
      %v906 = vld [vmem:[%s1 + $0x4c] sm:$0xf]
      %v907 = vld [vmem:[%s1 + $0x50] sm:$0xf]
      %v908 = vld [vmem:[%s1 + $0x54] sm:$0xf]
      %v909 = vld [vmem:[%s1 + $0x58] sm:$0xf]
      %v910 = vld [vmem:[%s1 + $0x5c] sm:$0xf]
      %v911 = vld [vmem:[%s1 + $0x60] sm:$0xf]
      %v912 = vld [vmem:[%s1 + $0x64] sm:$0xf]
      %v913 = vld [vmem:[%s1 + $0x68] sm:$0xf]
      %v914 = vld [vmem:[%s1 + $0x6c] sm:$0xf]
      %v915 = vld [vmem:[%s1 + $0x70] sm:$0xf]
      %v916 = vld [vmem:[%s1 + $0x74] sm:$0xf]
      %v917 = vld [vmem:[%s1 + $0x78] sm:$0xf]
      %v918 = vld [vmem:[%s1 + $0x7c] sm:$0xf]
      %v951 = vunpack.c.l.b16 %v887
      %v952 = vunpack.c.l.b16 %v888
      %v953 = vunpack.c.l.b16 %v889
      %v954 = vunpack.c.l.b16 %v890
      %v955 = vunpack.c.l.b16 %v891
      %v956 = vunpack.c.l.b16 %v892
      %v957 = vunpack.c.l.b16 %v893
      %v958 = vunpack.c.l.b16 %v894
      %v959 = vunpack.c.l.b16 %v895
      %v960 = vunpack.c.l.b16 %v896
      %v961 = vunpack.c.l.b16 %v897
      %v962 = vunpack.c.l.b16 %v898
      %v963 = vunpack.c.l.b16 %v899
      %v964 = vunpack.c.l.b16 %v900
      %v965 = vunpack.c.l.b16 %v901
      %v966 = vunpack.c.l.b16 %v902
      %v967 = vunpack.c.l.b16 %v903
      %v968 = vunpack.c.l.b16 %v904
      %v969 = vunpack.c.l.b16 %v905
      %v970 = vunpack.c.l.b16 %v906
      %v971 = vunpack.c.l.b16 %v907
      %v972 = vunpack.c.l.b16 %v908
      %v973 = vunpack.c.l.b16 %v909
      %v974 = vunpack.c.l.b16 %v910
      %v975 = vunpack.c.l.b16 %v911
      %v976 = vunpack.c.l.b16 %v912
      %v977 = vunpack.c.l.b16 %v913
      %v978 = vunpack.c.l.b16 %v914
      %v979 = vunpack.c.l.b16 %v915
      %v980 = vunpack.c.l.b16 %v916
      %v981 = vunpack.c.l.b16 %v917
      %v982 = vunpack.c.l.b16 %v918
      %v983 = vpack.c.b16 %v952, %v951
      %v984 = vpack.c.b16 %v954, %v953
      %v985 = vpack.c.b16 %v956, %v955
      %v986 = vpack.c.b16 %v958, %v957
      %v987 = vpack.c.b16 %v960, %v959
      %v988 = vpack.c.b16 %v962, %v961
      %v989 = vpack.c.b16 %v964, %v963
      %v990 = vpack.c.b16 %v966, %v965
      %v991 = vpack.c.b16 %v968, %v967
      %v992 = vpack.c.b16 %v970, %v969
      %v993 = vpack.c.b16 %v972, %v971
      %v994 = vpack.c.b16 %v974, %v973
      %v995 = vpack.c.b16 %v976, %v975
      %v996 = vpack.c.b16 %v978, %v977
      %v997 = vpack.c.b16 %v980, %v979
      %v998 = vpack.c.b16 %v982, %v981
      %1015 = vmatprep.subr.bf16.mxu0 0
      %1016 = vmatpush1.bf16.msra.mxu0 %v990
      %1017 = vmatprep.subr.bf16.mxu0 0
      %1018 = vmatpush1.bf16.msra.mxu0 %v989
      %1019 = vmatprep.subr.bf16.mxu0 0
      %1020 = vmatpush1.bf16.msra.mxu0 %v988
      %1021 = vmatprep.subr.bf16.mxu0 0
      %1022 = vmatpush1.bf16.msra.mxu0 %v987
      %1023 = vmatprep.subr.bf16.mxu0 0
      %1024 = vmatpush1.bf16.msra.mxu0 %v986
      %1025 = vmatprep.subr.bf16.mxu0 0
      %1026 = vmatpush1.bf16.msra.mxu0 %v985
      %1027 = vmatprep.subr.bf16.mxu0 0
      %1028 = vmatpush1.bf16.msra.mxu0 %v984
      %1029 = vmatprep.subr.bf16.mxu0 0
      %1030 = vmatpush1.bf16.msra.mxu0 %v983
      %1031 = vmatprep.subr.bf16.mxu0 0
      %1032 = vmatpush2.bf16.msra.mxu0 %v998
      %1033 = vmatprep.subr.bf16.mxu0 0
      %1034 = vmatpush2.bf16.msra.mxu0 %v997
      %1035 = vmatprep.subr.bf16.mxu0 0
      %1036 = vmatpush2.bf16.msra.mxu0 %v996
      %1037 = vmatprep.subr.bf16.mxu0 0
      %1038 = vmatpush2.bf16.msra.mxu0 %v995
      %1039 = vmatprep.subr.bf16.mxu0 0
      %1040 = vmatpush2.bf16.msra.mxu0 %v994
      %1041 = vmatprep.subr.bf16.mxu0 0
      %1042 = vmatpush2.bf16.msra.mxu0 %v993
      %1043 = vmatprep.subr.bf16.mxu0 0
      %1044 = vmatpush2.bf16.msra.mxu0 %v992
      %1045 = vmatprep.subr.bf16.mxu0 0
      %1046 = vmatpush2.bf16.msra.mxu0 %v991
      %1047 = vmatprep.mubr.bf16.mxu0 %v872
      %1048 = vmatmul.mubr.bf16.gmra.mxu0 %v871
      %v1049 = vpop.f32.mrf.mxu0
      %v1050 = vadd.f32 0.0, %v1049
      %v1051 = vpop.f32.mrf.mxu0
      %v1052 = vpop.f32.mrf.mxu0
      %v1053 = vadd.f32 0.0, %v1052
      %v1054 = vpop.f32.mrf.mxu0
      %1055 = vmatprep.mubr.bf16.mxu0 %v874
      %1056 = vmatmul.mubr.bf16.gmra.mxu0 %v873
      %v1057 = vpop.f32.mrf.mxu0
      %v1058 = vadd.f32 0.0, %v1057
      %v1059 = vpop.f32.mrf.mxu0
      %v1060 = vpop.f32.mrf.mxu0
      %v1061 = vadd.f32 0.0, %v1060
      %v1062 = vpop.f32.mrf.mxu0
      %1063 = vmatprep.mubr.bf16.mxu0 %v876
      %1064 = vmatmul.mubr.bf16.gmra.mxu0 %v875
      %v1065 = vpop.f32.mrf.mxu0
      %v1066 = vadd.f32 0.0, %v1065
      %v1067 = vpop.f32.mrf.mxu0
      %v1068 = vpop.f32.mrf.mxu0
      %v1069 = vadd.f32 0.0, %v1068
      %v1070 = vpop.f32.mrf.mxu0
      %1071 = vmatprep.mubr.bf16.mxu0 %v878
      %1072 = vmatmul.mubr.bf16.gmra.mxu0 %v877
      %v1073 = vpop.f32.mrf.mxu0
      %v1074 = vadd.f32 0.0, %v1073
      %v1075 = vpop.f32.mrf.mxu0
      %v1076 = vpop.f32.mrf.mxu0
      %v1077 = vadd.f32 0.0, %v1076
      %v1078 = vpop.f32.mrf.mxu0
      %1079 = vmatprep.mubr.bf16.mxu0 %v880
      %1080 = vmatmul.mubr.bf16.gmra.mxu0 %v879
      %v1081 = vpop.f32.mrf.mxu0
      %v1082 = vadd.f32 0.0, %v1081
      %v1083 = vpop.f32.mrf.mxu0
      %v1084 = vpop.f32.mrf.mxu0
      %v1085 = vadd.f32 0.0, %v1084
      %v1086 = vpop.f32.mrf.mxu0
      %1087 = vmatprep.mubr.bf16.mxu0 %v882
      %1088 = vmatmul.mubr.bf16.gmra.mxu0 %v881
      %v1089 = vpop.f32.mrf.mxu0
      %v1090 = vadd.f32 0.0, %v1089
      %v1091 = vpop.f32.mrf.mxu0
      %v1092 = vpop.f32.mrf.mxu0
      %v1093 = vadd.f32 0.0, %v1092
      %v1094 = vpop.f32.mrf.mxu0
      %1095 = vmatprep.mubr.bf16.mxu0 %v884
      %1096 = vmatmul.mubr.bf16.gmra.mxu0 %v883
      %v1097 = vpop.f32.mrf.mxu0
      %v1098 = vadd.f32 0.0, %v1097
      %v1099 = vpop.f32.mrf.mxu0
      %v1100 = vpop.f32.mrf.mxu0
      %v1101 = vadd.f32 0.0, %v1100
      %v1102 = vpop.f32.mrf.mxu0
      %1103 = vmatprep.mubr.bf16.mxu0 %v886
      %1104 = vmatmul.mubr.bf16.gmra.mxu0 %v885
      %v1105 = vpop.f32.mrf.mxu0
      %v1106 = vadd.f32 0.0, %v1105
      %v1107 = vpop.f32.mrf.mxu0
      %v1108 = vpop.f32.mrf.mxu0
      %v1109 = vadd.f32 0.0, %v1108
      %v1110 = vpop.f32.mrf.mxu0
      %1111 = vdwg.mxu0
      %vm1112 = vcmp.gt.f32.partialorder %v1050, 0.0
      %vm1113 = vcmp.gt.f32.partialorder %v1053, 0.0
      %vm1114 = vcmp.gt.f32.partialorder %v1058, 0.0
      %vm1115 = vcmp.gt.f32.partialorder %v1061, 0.0
      %vm1116 = vcmp.gt.f32.partialorder %v1066, 0.0
      %vm1117 = vcmp.gt.f32.partialorder %v1069, 0.0
      %vm1118 = vcmp.gt.f32.partialorder %v1074, 0.0
      %vm1119 = vcmp.gt.f32.partialorder %v1077, 0.0
      %vm1120 = vcmp.gt.f32.partialorder %v1082, 0.0
      %vm1121 = vcmp.gt.f32.partialorder %v1085, 0.0
      %vm1122 = vcmp.gt.f32.partialorder %v1090, 0.0
      %vm1123 = vcmp.gt.f32.partialorder %v1093, 0.0
      %vm1124 = vcmp.gt.f32.partialorder %v1098, 0.0
      %vm1125 = vcmp.gt.f32.partialorder %v1101, 0.0
      %vm1126 = vcmp.gt.f32.partialorder %v1106, 0.0
      %vm1127 = vcmp.gt.f32.partialorder %v1109, 0.0
      %v1128 = vmin.f32 %v1050, 0.0
      %v1129 = vmin.f32 %v1053, 0.0
      %v1130 = vmin.f32 %v1058, 0.0
      %v1131 = vmin.f32 %v1061, 0.0
      %v1132 = vmin.f32 %v1066, 0.0
      %v1133 = vmin.f32 %v1069, 0.0
      %v1134 = vmin.f32 %v1074, 0.0
      %v1135 = vmin.f32 %v1077, 0.0
      %v1136 = vmin.f32 %v1082, 0.0
      %v1137 = vmin.f32 %v1085, 0.0
      %v1138 = vmin.f32 %v1090, 0.0
      %v1139 = vmin.f32 %v1093, 0.0
      %v1140 = vmin.f32 %v1098, 0.0
      %v1141 = vmin.f32 %v1101, 0.0
      %v1142 = vmin.f32 %v1106, 0.0
      %v1143 = vmin.f32 %v1109, 0.0
      %v1144 = vmul.f32 %v1128, 1.442695
      %v1145 = vpow.pop %v1144
      %v1146 = vmul.f32 %v1129, 1.442695
      %v1147 = vpow.pop %v1146
      %v1148 = vmul.f32 %v1130, 1.442695
      %v1149 = vpow.pop %v1148
      %v1150 = vmul.f32 %v1131, 1.442695
      %v1151 = vpow.pop %v1150
      %v1152 = vmul.f32 %v1132, 1.442695
      %v1153 = vpow.pop %v1152
      %v1154 = vmul.f32 %v1133, 1.442695
      %v1155 = vpow.pop %v1154
      %v1156 = vmul.f32 %v1134, 1.442695
      %v1157 = vpow.pop %v1156
      %v1158 = vmul.f32 %v1135, 1.442695
      %v1159 = vpow.pop %v1158
      %v1160 = vmul.f32 %v1136, 1.442695
      %v1161 = vpow.pop %v1160
      %v1162 = vmul.f32 %v1137, 1.442695
      %v1163 = vpow.pop %v1162
      %v1164 = vmul.f32 %v1138, 1.442695
      %v1165 = vpow.pop %v1164
      %v1166 = vmul.f32 %v1139, 1.442695
      %v1167 = vpow.pop %v1166
      %v1168 = vmul.f32 %v1140, 1.442695
      %v1169 = vpow.pop %v1168
      %v1170 = vmul.f32 %v1141, 1.442695
      %v1171 = vpow.pop %v1170
      %v1172 = vmul.f32 %v1142, 1.442695
      %v1173 = vpow.pop %v1172
      %v1174 = vmul.f32 %v1143, 1.442695
      %v1175 = vpow.pop %v1174
      %v1176 = vsub.f32 %v1145, 1.0
      %v1177 = vsub.f32 %v1147, 1.0
      %v1178 = vsub.f32 %v1149, 1.0
      %v1179 = vsub.f32 %v1151, 1.0
      %v1180 = vsub.f32 %v1153, 1.0
      %v1181 = vsub.f32 %v1155, 1.0
      %v1182 = vsub.f32 %v1157, 1.0
      %v1183 = vsub.f32 %v1159, 1.0
      %v1184 = vsub.f32 %v1161, 1.0
      %v1185 = vsub.f32 %v1163, 1.0
      %v1186 = vsub.f32 %v1165, 1.0
      %v1187 = vsub.f32 %v1167, 1.0
      %v1188 = vsub.f32 %v1169, 1.0
      %v1189 = vsub.f32 %v1171, 1.0
      %v1190 = vsub.f32 %v1173, 1.0
      %v1191 = vsub.f32 %v1175, 1.0
      %v1192 = vsel %vm1112, %v1050, %v1176
      %v1193 = vsel %vm1113, %v1053, %v1177
      %v1194 = vsel %vm1114, %v1058, %v1178
      %v1195 = vsel %vm1115, %v1061, %v1179
      %v1196 = vsel %vm1116, %v1066, %v1180
      %v1197 = vsel %vm1117, %v1069, %v1181
      %v1198 = vsel %vm1118, %v1074, %v1182
      %v1199 = vsel %vm1119, %v1077, %v1183
      %v1200 = vsel %vm1120, %v1082, %v1184
      %v1201 = vsel %vm1121, %v1085, %v1185
      %v1202 = vsel %vm1122, %v1090, %v1186
      %v1203 = vsel %vm1123, %v1093, %v1187
      %v1204 = vsel %vm1124, %v1098, %v1188
      %v1205 = vsel %vm1125, %v1101, %v1189
      %v1206 = vsel %vm1126, %v1106, %v1190
      %v1207 = vsel %vm1127, %v1109, %v1191
      %s1208 = scalar_lea.vmem %s2, 1
      %v1209 = vld [vmem:[%s1208] ss:$8 sm:$0x3]
      %1210 = vset.pattern.permute.xlu0 1
      %1211 = vperm.xlu0 %1210, %v331
      %v1212 = vpop.permute.xlu0 %1211
      %1214 = vset.pattern.permute.xlu0 1
      %1215 = vperm.xlu0 %1214, %v332
      %v1216 = vpop.permute.xlu0 %1215
      %1218 = vset.pattern.permute.xlu0 1
      %1219 = vperm.xlu0 %1218, %v333
      %v1220 = vpop.permute.xlu0 %1219
      %1222 = vset.pattern.permute.xlu0 1
      %1223 = vperm.xlu0 %1222, %v334
      %v1224 = vpop.permute.xlu0 %1223
      %1226 = vset.pattern.permute.xlu0 1
      %1227 = vperm.xlu0 %1226, %v335
      %v1228 = vpop.permute.xlu0 %1227
      %1230 = vset.pattern.permute.xlu0 1
      %1231 = vperm.xlu0 %1230, %v336
      %v1232 = vpop.permute.xlu0 %1231
      %1234 = vset.pattern.permute.xlu0 1
      %1235 = vperm.xlu0 %1234, %v337
      %v1236 = vpop.permute.xlu0 %1235
      %1238 = vset.pattern.permute.xlu0 1
      %1239 = vperm.xlu0 %1238, %v338
      %v1240 = vpop.permute.xlu0 %1239
      %1242 = vset.pattern.permute.xlu0 1
      %1243 = vperm.xlu0 %1242, %v339
      %v1244 = vpop.permute.xlu0 %1243
      %1246 = vset.pattern.permute.xlu0 1
      %1247 = vperm.xlu0 %1246, %v340
      %v1248 = vpop.permute.xlu0 %1247
      %1250 = vset.pattern.permute.xlu0 1
      %1251 = vperm.xlu0 %1250, %v341
      %v1252 = vpop.permute.xlu0 %1251
      %1254 = vset.pattern.permute.xlu0 1
      %1255 = vperm.xlu0 %1254, %v342
      %v1256 = vpop.permute.xlu0 %1255
      %1258 = vset.pattern.permute.xlu0 1
      %1259 = vperm.xlu0 %1258, %v343
      %v1260 = vpop.permute.xlu0 %1259
      %1262 = vset.pattern.permute.xlu0 1
      %1263 = vperm.xlu0 %1262, %v344
      %v1264 = vpop.permute.xlu0 %1263
      %1266 = vset.pattern.permute.xlu0 1
      %1267 = vperm.xlu0 %1266, %v345
      %v1268 = vpop.permute.xlu0 %1267
      %1270 = vset.pattern.permute.xlu0 1
      %1271 = vperm.xlu0 %1270, %v346
      %v1272 = vpop.permute.xlu0 %1271
      %v1275 = vlaneseq
      %v1276 = vshrl.u32 %v1275, 7
      %v1277 = vsub.s32 0, %v1276
      %v1278 = vrot.slane %v1209, %v1277
      %v1279 = vlaneseq
      %v1280 = vshrl.u32 %v1279, 7
      %v1281 = vsub.s32 1, %v1280
      %v1282 = vrot.slane %v1209, %v1281
      %v1285 = vadd.f32 %v1212, %v1278
      %v1286 = vadd.f32 %v1212, %v1282
      %v1287 = vadd.f32 %v1216, %v1278
      %v1288 = vadd.f32 %v1216, %v1282
      %v1289 = vadd.f32 %v1220, %v1278
      %v1290 = vadd.f32 %v1220, %v1282
      %v1291 = vadd.f32 %v1224, %v1278
      %v1292 = vadd.f32 %v1224, %v1282
      %v1293 = vadd.f32 %v1228, %v1278
      %v1294 = vadd.f32 %v1228, %v1282
      %v1295 = vadd.f32 %v1232, %v1278
      %v1296 = vadd.f32 %v1232, %v1282
      %v1297 = vadd.f32 %v1236, %v1278
      %v1298 = vadd.f32 %v1236, %v1282
      %v1299 = vadd.f32 %v1240, %v1278
      %v1300 = vadd.f32 %v1240, %v1282
      %v1301 = vadd.f32 %v1244, %v1278
      %v1302 = vadd.f32 %v1244, %v1282
      %v1303 = vadd.f32 %v1248, %v1278
      %v1304 = vadd.f32 %v1248, %v1282
      %v1305 = vadd.f32 %v1252, %v1278
      %v1306 = vadd.f32 %v1252, %v1282
      %v1307 = vadd.f32 %v1256, %v1278
      %v1308 = vadd.f32 %v1256, %v1282
      %v1309 = vadd.f32 %v1260, %v1278
      %v1310 = vadd.f32 %v1260, %v1282
      %v1311 = vadd.f32 %v1264, %v1278
      %v1312 = vadd.f32 %v1264, %v1282
      %v1313 = vadd.f32 %v1268, %v1278
      %v1314 = vadd.f32 %v1268, %v1282
      %v1315 = vadd.f32 %v1272, %v1278
      %v1316 = vadd.f32 %v1272, %v1282
      %vm1317 = vcmp.gt.f32.partialorder %v1285, 0.0
      %vm1318 = vcmp.gt.f32.partialorder %v1286, 0.0
      %vm1319 = vcmp.gt.f32.partialorder %v1287, 0.0
      %vm1320 = vcmp.gt.f32.partialorder %v1288, 0.0
      %vm1321 = vcmp.gt.f32.partialorder %v1289, 0.0
      %vm1322 = vcmp.gt.f32.partialorder %v1290, 0.0
      %vm1323 = vcmp.gt.f32.partialorder %v1291, 0.0
      %vm1324 = vcmp.gt.f32.partialorder %v1292, 0.0
      %vm1325 = vcmp.gt.f32.partialorder %v1293, 0.0
      %vm1326 = vcmp.gt.f32.partialorder %v1294, 0.0
      %vm1327 = vcmp.gt.f32.partialorder %v1295, 0.0
      %vm1328 = vcmp.gt.f32.partialorder %v1296, 0.0
      %vm1329 = vcmp.gt.f32.partialorder %v1297, 0.0
      %vm1330 = vcmp.gt.f32.partialorder %v1298, 0.0
      %vm1331 = vcmp.gt.f32.partialorder %v1299, 0.0
      %vm1332 = vcmp.gt.f32.partialorder %v1300, 0.0
      %vm1333 = vcmp.gt.f32.partialorder %v1301, 0.0
      %vm1334 = vcmp.gt.f32.partialorder %v1302, 0.0
      %vm1335 = vcmp.gt.f32.partialorder %v1303, 0.0
      %vm1336 = vcmp.gt.f32.partialorder %v1304, 0.0
      %vm1337 = vcmp.gt.f32.partialorder %v1305, 0.0
      %vm1338 = vcmp.gt.f32.partialorder %v1306, 0.0
      %vm1339 = vcmp.gt.f32.partialorder %v1307, 0.0
      %vm1340 = vcmp.gt.f32.partialorder %v1308, 0.0
      %vm1341 = vcmp.gt.f32.partialorder %v1309, 0.0
      %vm1342 = vcmp.gt.f32.partialorder %v1310, 0.0
      %vm1343 = vcmp.gt.f32.partialorder %v1311, 0.0
      %vm1344 = vcmp.gt.f32.partialorder %v1312, 0.0
      %vm1345 = vcmp.gt.f32.partialorder %v1313, 0.0
      %vm1346 = vcmp.gt.f32.partialorder %v1314, 0.0
      %vm1347 = vcmp.gt.f32.partialorder %v1315, 0.0
      %vm1348 = vcmp.gt.f32.partialorder %v1316, 0.0
      %v1349 = vmul.f32 %v1285, 0.2
      %v1350 = vmul.f32 %v1286, 0.2
      %v1351 = vmul.f32 %v1287, 0.2
      %v1352 = vmul.f32 %v1288, 0.2
      %v1353 = vmul.f32 %v1289, 0.2
      %v1354 = vmul.f32 %v1290, 0.2
      %v1355 = vmul.f32 %v1291, 0.2
      %v1356 = vmul.f32 %v1292, 0.2
      %v1357 = vmul.f32 %v1293, 0.2
      %v1358 = vmul.f32 %v1294, 0.2
      %v1359 = vmul.f32 %v1295, 0.2
      %v1360 = vmul.f32 %v1296, 0.2
      %v1361 = vmul.f32 %v1297, 0.2
      %v1362 = vmul.f32 %v1298, 0.2
      %v1363 = vmul.f32 %v1299, 0.2
      %v1364 = vmul.f32 %v1300, 0.2
      %v1365 = vmul.f32 %v1301, 0.2
      %v1366 = vmul.f32 %v1302, 0.2
      %v1367 = vmul.f32 %v1303, 0.2
      %v1368 = vmul.f32 %v1304, 0.2
      %v1369 = vmul.f32 %v1305, 0.2
      %v1370 = vmul.f32 %v1306, 0.2
      %v1371 = vmul.f32 %v1307, 0.2
      %v1372 = vmul.f32 %v1308, 0.2
      %v1373 = vmul.f32 %v1309, 0.2
      %v1374 = vmul.f32 %v1310, 0.2
      %v1375 = vmul.f32 %v1311, 0.2
      %v1376 = vmul.f32 %v1312, 0.2
      %v1377 = vmul.f32 %v1313, 0.2
      %v1378 = vmul.f32 %v1314, 0.2
      %v1379 = vmul.f32 %v1315, 0.2
      %v1380 = vmul.f32 %v1316, 0.2
      %v1381 = vsel %vm1317, %v1285, %v1349
      %v1382 = vsel %vm1318, %v1286, %v1350
      %v1383 = vsel %vm1319, %v1287, %v1351
      %v1384 = vsel %vm1320, %v1288, %v1352
      %v1385 = vsel %vm1321, %v1289, %v1353
      %v1386 = vsel %vm1322, %v1290, %v1354
      %v1387 = vsel %vm1323, %v1291, %v1355
      %v1388 = vsel %vm1324, %v1292, %v1356
      %v1389 = vsel %vm1325, %v1293, %v1357
      %v1390 = vsel %vm1326, %v1294, %v1358
      %v1391 = vsel %vm1327, %v1295, %v1359
      %v1392 = vsel %vm1328, %v1296, %v1360
      %v1393 = vsel %vm1329, %v1297, %v1361
      %v1394 = vsel %vm1330, %v1298, %v1362
      %v1395 = vsel %vm1331, %v1299, %v1363
      %v1396 = vsel %vm1332, %v1300, %v1364
      %v1397 = vsel %vm1333, %v1301, %v1365
      %v1398 = vsel %vm1334, %v1302, %v1366
      %v1399 = vsel %vm1335, %v1303, %v1367
      %v1400 = vsel %vm1336, %v1304, %v1368
      %v1401 = vsel %vm1337, %v1305, %v1369
      %v1402 = vsel %vm1338, %v1306, %v1370
      %v1403 = vsel %vm1339, %v1307, %v1371
      %v1404 = vsel %vm1340, %v1308, %v1372
      %v1405 = vsel %vm1341, %v1309, %v1373
      %v1406 = vsel %vm1342, %v1310, %v1374
      %v1407 = vsel %vm1343, %v1311, %v1375
      %v1408 = vsel %vm1344, %v1312, %v1376
      %v1409 = vsel %vm1345, %v1313, %v1377
      %v1410 = vsel %vm1346, %v1314, %v1378
      %v1411 = vsel %vm1347, %v1315, %v1379
      %v1412 = vsel %vm1348, %v1316, %v1380
      %v1413 = vadd.f32 %v1381, %v299
      %v1414 = vadd.f32 %v1382, %v300
      %v1415 = vadd.f32 %v1383, %v301
      %v1416 = vadd.f32 %v1384, %v302
      %v1417 = vadd.f32 %v1385, %v303
      %v1418 = vadd.f32 %v1386, %v304
      %v1419 = vadd.f32 %v1387, %v305
      %v1420 = vadd.f32 %v1388, %v306
      %v1421 = vadd.f32 %v1389, %v307
      %v1422 = vadd.f32 %v1390, %v308
      %v1423 = vadd.f32 %v1391, %v309
      %v1424 = vadd.f32 %v1392, %v310
      %v1425 = vadd.f32 %v1393, %v311
      %v1426 = vadd.f32 %v1394, %v312
      %v1427 = vadd.f32 %v1395, %v313
      %v1428 = vadd.f32 %v1396, %v314
      %v1429 = vadd.f32 %v1397, %v315
      %v1430 = vadd.f32 %v1398, %v316
      %v1431 = vadd.f32 %v1399, %v317
      %v1432 = vadd.f32 %v1400, %v318
      %v1433 = vadd.f32 %v1401, %v319
      %v1434 = vadd.f32 %v1402, %v320
      %v1435 = vadd.f32 %v1403, %v321
      %v1436 = vadd.f32 %v1404, %v322
      %v1437 = vadd.f32 %v1405, %v323
      %v1438 = vadd.f32 %v1406, %v324
      %v1439 = vadd.f32 %v1407, %v325
      %v1440 = vadd.f32 %v1408, %v326
      %v1441 = vadd.f32 %v1409, %v327
      %v1442 = vadd.f32 %v1410, %v328
      %v1443 = vadd.f32 %v1411, %v329
      %v1444 = vadd.f32 %v1412, %v330
      %v1445 = vmax.f32 %v1413, %v1414
      %1446 = vmax.xlane.f32.xlu0 %v1445
      %v1447 = vpop.xlane.xlu0 %1446
      %v1448 = vmax.f32 %v1415, %v1416
      %1449 = vmax.xlane.f32.xlu0 %v1448
      %v1450 = vpop.xlane.xlu0 %1449
      %v1451 = vmax.f32 %v1417, %v1418
      %1452 = vmax.xlane.f32.xlu0 %v1451
      %v1453 = vpop.xlane.xlu0 %1452
      %v1454 = vmax.f32 %v1419, %v1420
      %1455 = vmax.xlane.f32.xlu0 %v1454
      %v1456 = vpop.xlane.xlu0 %1455
      %v1457 = vmax.f32 %v1421, %v1422
      %1458 = vmax.xlane.f32.xlu0 %v1457
      %v1459 = vpop.xlane.xlu0 %1458
      %v1460 = vmax.f32 %v1423, %v1424
      %1461 = vmax.xlane.f32.xlu0 %v1460
      %v1462 = vpop.xlane.xlu0 %1461
      %v1463 = vmax.f32 %v1425, %v1426
      %1464 = vmax.xlane.f32.xlu0 %v1463
      %v1465 = vpop.xlane.xlu0 %1464
      %v1466 = vmax.f32 %v1427, %v1428
      %1467 = vmax.xlane.f32.xlu0 %v1466
      %v1468 = vpop.xlane.xlu0 %1467
      %v1469 = vmax.f32 %v1429, %v1430
      %1470 = vmax.xlane.f32.xlu0 %v1469
      %v1471 = vpop.xlane.xlu0 %1470
      %v1472 = vmax.f32 %v1431, %v1432
      %1473 = vmax.xlane.f32.xlu0 %v1472
      %v1474 = vpop.xlane.xlu0 %1473
      %v1475 = vmax.f32 %v1433, %v1434
      %1476 = vmax.xlane.f32.xlu0 %v1475
      %v1477 = vpop.xlane.xlu0 %1476
      %v1478 = vmax.f32 %v1435, %v1436
      %1479 = vmax.xlane.f32.xlu0 %v1478
      %v1480 = vpop.xlane.xlu0 %1479
      %v1481 = vmax.f32 %v1437, %v1438
      %1482 = vmax.xlane.f32.xlu0 %v1481
      %v1483 = vpop.xlane.xlu0 %1482
      %v1484 = vmax.f32 %v1439, %v1440
      %1485 = vmax.xlane.f32.xlu0 %v1484
      %v1486 = vpop.xlane.xlu0 %1485
      %v1487 = vmax.f32 %v1441, %v1442
      %1488 = vmax.xlane.f32.xlu0 %v1487
      %v1489 = vpop.xlane.xlu0 %1488
      %v1490 = vmax.f32 %v1443, %v1444
      %1491 = vmax.xlane.f32.xlu0 %v1490
      %v1492 = vpop.xlane.xlu0 %1491
      %v1493 = vsub.f32 %v1413, %v1447
      %v1494 = vsub.f32 %v1414, %v1447
      %v1495 = vsub.f32 %v1415, %v1450
      %v1496 = vsub.f32 %v1416, %v1450
      %v1497 = vsub.f32 %v1417, %v1453
      %v1498 = vsub.f32 %v1418, %v1453
      %v1499 = vsub.f32 %v1419, %v1456
      %v1500 = vsub.f32 %v1420, %v1456
      %v1501 = vsub.f32 %v1421, %v1459
      %v1502 = vsub.f32 %v1422, %v1459
      %v1503 = vsub.f32 %v1423, %v1462
      %v1504 = vsub.f32 %v1424, %v1462
      %v1505 = vsub.f32 %v1425, %v1465
      %v1506 = vsub.f32 %v1426, %v1465
      %v1507 = vsub.f32 %v1427, %v1468
      %v1508 = vsub.f32 %v1428, %v1468
      %v1509 = vsub.f32 %v1429, %v1471
      %v1510 = vsub.f32 %v1430, %v1471
      %v1511 = vsub.f32 %v1431, %v1474
      %v1512 = vsub.f32 %v1432, %v1474
      %v1513 = vsub.f32 %v1433, %v1477
      %v1514 = vsub.f32 %v1434, %v1477
      %v1515 = vsub.f32 %v1435, %v1480
      %v1516 = vsub.f32 %v1436, %v1480
      %v1517 = vsub.f32 %v1437, %v1483
      %v1518 = vsub.f32 %v1438, %v1483
      %v1519 = vsub.f32 %v1439, %v1486
      %v1520 = vsub.f32 %v1440, %v1486
      %v1521 = vsub.f32 %v1441, %v1489
      %v1522 = vsub.f32 %v1442, %v1489
      %v1523 = vsub.f32 %v1443, %v1492
      %v1524 = vsub.f32 %v1444, %v1492
      %v1525 = vmul.f32 %v1493, 1.442695
      %v1526 = vpow.pop %v1525
      %v1527 = vmul.f32 %v1494, 1.442695
      %v1528 = vpow.pop %v1527
      %v1529 = vmul.f32 %v1495, 1.442695
      %v1530 = vpow.pop %v1529
      %v1531 = vmul.f32 %v1496, 1.442695
      %v1532 = vpow.pop %v1531
      %v1533 = vmul.f32 %v1497, 1.442695
      %v1534 = vpow.pop %v1533
      %v1535 = vmul.f32 %v1498, 1.442695
      %v1536 = vpow.pop %v1535
      %v1537 = vmul.f32 %v1499, 1.442695
      %v1538 = vpow.pop %v1537
      %v1539 = vmul.f32 %v1500, 1.442695
      %v1540 = vpow.pop %v1539
      %v1541 = vmul.f32 %v1501, 1.442695
      %v1542 = vpow.pop %v1541
      %v1543 = vmul.f32 %v1502, 1.442695
      %v1544 = vpow.pop %v1543
      %v1545 = vmul.f32 %v1503, 1.442695
      %v1546 = vpow.pop %v1545
      %v1547 = vmul.f32 %v1504, 1.442695
      %v1548 = vpow.pop %v1547
      %v1549 = vmul.f32 %v1505, 1.442695
      %v1550 = vpow.pop %v1549
      %v1551 = vmul.f32 %v1506, 1.442695
      %v1552 = vpow.pop %v1551
      %v1553 = vmul.f32 %v1507, 1.442695
      %v1554 = vpow.pop %v1553
      %v1555 = vmul.f32 %v1508, 1.442695
      %v1556 = vpow.pop %v1555
      %v1557 = vmul.f32 %v1509, 1.442695
      %v1558 = vpow.pop %v1557
      %v1559 = vmul.f32 %v1510, 1.442695
      %v1560 = vpow.pop %v1559
      %v1561 = vmul.f32 %v1511, 1.442695
      %v1562 = vpow.pop %v1561
      %v1563 = vmul.f32 %v1512, 1.442695
      %v1564 = vpow.pop %v1563
      %v1565 = vmul.f32 %v1513, 1.442695
      %v1566 = vpow.pop %v1565
      %v1567 = vmul.f32 %v1514, 1.442695
      %v1568 = vpow.pop %v1567
      %v1569 = vmul.f32 %v1515, 1.442695
      %v1570 = vpow.pop %v1569
      %v1571 = vmul.f32 %v1516, 1.442695
      %v1572 = vpow.pop %v1571
      %v1573 = vmul.f32 %v1517, 1.442695
      %v1574 = vpow.pop %v1573
      %v1575 = vmul.f32 %v1518, 1.442695
      %v1576 = vpow.pop %v1575
      %v1577 = vmul.f32 %v1519, 1.442695
      %v1578 = vpow.pop %v1577
      %v1579 = vmul.f32 %v1520, 1.442695
      %v1580 = vpow.pop %v1579
      %v1581 = vmul.f32 %v1521, 1.442695
      %v1582 = vpow.pop %v1581
      %v1583 = vmul.f32 %v1522, 1.442695
      %v1584 = vpow.pop %v1583
      %v1585 = vmul.f32 %v1523, 1.442695
      %v1586 = vpow.pop %v1585
      %v1587 = vmul.f32 %v1524, 1.442695
      %v1588 = vpow.pop %v1587
      %v1589 = vadd.f32 %v1526, %v1528
      %1590 = vadd.xlane.f32.xlu0 %v1589
      %v1591 = vpop.xlane.xlu0 %1590
      %v1592 = vadd.f32 %v1530, %v1532
      %1593 = vadd.xlane.f32.xlu0 %v1592
      %v1594 = vpop.xlane.xlu0 %1593
      %v1595 = vadd.f32 %v1534, %v1536
      %1596 = vadd.xlane.f32.xlu0 %v1595
      %v1597 = vpop.xlane.xlu0 %1596
      %v1598 = vadd.f32 %v1538, %v1540
      %1599 = vadd.xlane.f32.xlu0 %v1598
      %v1600 = vpop.xlane.xlu0 %1599
      %v1601 = vadd.f32 %v1542, %v1544
      %1602 = vadd.xlane.f32.xlu0 %v1601
      %v1603 = vpop.xlane.xlu0 %1602
      %v1604 = vadd.f32 %v1546, %v1548
      %1605 = vadd.xlane.f32.xlu0 %v1604
      %v1606 = vpop.xlane.xlu0 %1605
      %v1607 = vadd.f32 %v1550, %v1552
      %1608 = vadd.xlane.f32.xlu0 %v1607
      %v1609 = vpop.xlane.xlu0 %1608
      %v1610 = vadd.f32 %v1554, %v1556
      %1611 = vadd.xlane.f32.xlu0 %v1610
      %v1612 = vpop.xlane.xlu0 %1611
      %v1613 = vadd.f32 %v1558, %v1560
      %1614 = vadd.xlane.f32.xlu0 %v1613
      %v1615 = vpop.xlane.xlu0 %1614
      %v1616 = vadd.f32 %v1562, %v1564
      %1617 = vadd.xlane.f32.xlu0 %v1616
      %v1618 = vpop.xlane.xlu0 %1617
      %v1619 = vadd.f32 %v1566, %v1568
      %1620 = vadd.xlane.f32.xlu0 %v1619
      %v1621 = vpop.xlane.xlu0 %1620
      %v1622 = vadd.f32 %v1570, %v1572
      %1623 = vadd.xlane.f32.xlu0 %v1622
      %v1624 = vpop.xlane.xlu0 %1623
      %v1625 = vadd.f32 %v1574, %v1576
      %1626 = vadd.xlane.f32.xlu0 %v1625
      %v1627 = vpop.xlane.xlu0 %1626
      %v1628 = vadd.f32 %v1578, %v1580
      %1629 = vadd.xlane.f32.xlu0 %v1628
      %v1630 = vpop.xlane.xlu0 %1629
      %v1631 = vadd.f32 %v1582, %v1584
      %1632 = vadd.xlane.f32.xlu0 %v1631
      %v1633 = vpop.xlane.xlu0 %1632
      %v1634 = vadd.f32 %v1586, %v1588
      %1635 = vadd.xlane.f32.xlu0 %v1634
      %v1636 = vpop.xlane.xlu0 %1635
      %vm1637 = vcmp.gt.f32.partialorder %v1447, -1e+20
      %vm1638 = vcmp.gt.f32.partialorder %v1450, -1e+20
      %vm1639 = vcmp.gt.f32.partialorder %v1453, -1e+20
      %vm1640 = vcmp.gt.f32.partialorder %v1456, -1e+20
      %vm1641 = vcmp.gt.f32.partialorder %v1459, -1e+20
      %vm1642 = vcmp.gt.f32.partialorder %v1462, -1e+20
      %vm1643 = vcmp.gt.f32.partialorder %v1465, -1e+20
      %vm1644 = vcmp.gt.f32.partialorder %v1468, -1e+20
      %vm1645 = vcmp.gt.f32.partialorder %v1471, -1e+20
      %vm1646 = vcmp.gt.f32.partialorder %v1474, -1e+20
      %vm1647 = vcmp.gt.f32.partialorder %v1477, -1e+20
      %vm1648 = vcmp.gt.f32.partialorder %v1480, -1e+20
      %vm1649 = vcmp.gt.f32.partialorder %v1483, -1e+20
      %vm1650 = vcmp.gt.f32.partialorder %v1486, -1e+20
      %vm1651 = vcmp.gt.f32.partialorder %v1489, -1e+20
      %vm1652 = vcmp.gt.f32.partialorder %v1492, -1e+20
      %v1653 = vrcp.pop %v1591
      %v1654 = vrcp.pop %v1594
      %v1655 = vrcp.pop %v1597
      %v1656 = vrcp.pop %v1600
      %v1657 = vrcp.pop %v1603
      %v1658 = vrcp.pop %v1606
      %v1659 = vrcp.pop %v1609
      %v1660 = vrcp.pop %v1612
      %v1661 = vrcp.pop %v1615
      %v1662 = vrcp.pop %v1618
      %v1663 = vrcp.pop %v1621
      %v1664 = vrcp.pop %v1624
      %v1665 = vrcp.pop %v1627
      %v1666 = vrcp.pop %v1630
      %v1667 = vrcp.pop %v1633
      %v1668 = vrcp.pop %v1636
      %v1669 = vsel %vm1637, %v1653, 0.0
      %v1670 = vsel %vm1638, %v1654, 0.0
      %v1671 = vsel %vm1639, %v1655, 0.0
      %v1672 = vsel %vm1640, %v1656, 0.0
      %v1673 = vsel %vm1641, %v1657, 0.0
      %v1674 = vsel %vm1642, %v1658, 0.0
      %v1675 = vsel %vm1643, %v1659, 0.0
      %v1676 = vsel %vm1644, %v1660, 0.0
      %v1677 = vsel %vm1645, %v1661, 0.0
      %v1678 = vsel %vm1646, %v1662, 0.0
      %v1679 = vsel %vm1647, %v1663, 0.0
      %v1680 = vsel %vm1648, %v1664, 0.0
      %v1681 = vsel %vm1649, %v1665, 0.0
      %v1682 = vsel %vm1650, %v1666, 0.0
      %v1683 = vsel %vm1651, %v1667, 0.0
      %v1684 = vsel %vm1652, %v1668, 0.0
      %v1685 = vmul.f32 %v1526, %v1669
      %v1686 = vmul.f32 %v1528, %v1669
      %v1687 = vmul.f32 %v1530, %v1670
      %v1688 = vmul.f32 %v1532, %v1670
      %v1689 = vmul.f32 %v1534, %v1671
      %v1690 = vmul.f32 %v1536, %v1671
      %v1691 = vmul.f32 %v1538, %v1672
      %v1692 = vmul.f32 %v1540, %v1672
      %v1693 = vmul.f32 %v1542, %v1673
      %v1694 = vmul.f32 %v1544, %v1673
      %v1695 = vmul.f32 %v1546, %v1674
      %v1696 = vmul.f32 %v1548, %v1674
      %v1697 = vmul.f32 %v1550, %v1675
      %v1698 = vmul.f32 %v1552, %v1675
      %v1699 = vmul.f32 %v1554, %v1676
      %v1700 = vmul.f32 %v1556, %v1676
      %v1701 = vmul.f32 %v1558, %v1677
      %v1702 = vmul.f32 %v1560, %v1677
      %v1703 = vmul.f32 %v1562, %v1678
      %v1704 = vmul.f32 %v1564, %v1678
      %v1705 = vmul.f32 %v1566, %v1679
      %v1706 = vmul.f32 %v1568, %v1679
      %v1707 = vmul.f32 %v1570, %v1680
      %v1708 = vmul.f32 %v1572, %v1680
      %v1709 = vmul.f32 %v1574, %v1681
      %v1710 = vmul.f32 %v1576, %v1681
      %v1711 = vmul.f32 %v1578, %v1682
      %v1712 = vmul.f32 %v1580, %v1682
      %v1713 = vmul.f32 %v1582, %v1683
      %v1714 = vmul.f32 %v1584, %v1683
      %v1715 = vmul.f32 %v1586, %v1684
      %v1716 = vmul.f32 %v1588, %v1684
      %v1717 = vpack.c.bf16 %v1687, %v1685
      %v1718 = vpack.c.bf16 %v1688, %v1686
      %v1719 = vpack.c.bf16 %v1691, %v1689
      %v1720 = vpack.c.bf16 %v1692, %v1690
      %v1721 = vpack.c.bf16 %v1695, %v1693
      %v1722 = vpack.c.bf16 %v1696, %v1694
      %v1723 = vpack.c.bf16 %v1699, %v1697
      %v1724 = vpack.c.bf16 %v1700, %v1698
      %v1725 = vpack.c.bf16 %v1703, %v1701
      %v1726 = vpack.c.bf16 %v1704, %v1702
      %v1727 = vpack.c.bf16 %v1707, %v1705
      %v1728 = vpack.c.bf16 %v1708, %v1706
      %v1729 = vpack.c.bf16 %v1711, %v1709
      %v1730 = vpack.c.bf16 %v1712, %v1710
      %v1731 = vpack.c.bf16 %v1715, %v1713
      %v1732 = vpack.c.bf16 %v1716, %v1714
      %1733 = vrot.lane.b32.xlu0 %v983, 120
      %v1734 = vpop.permute.xlu0 %1733
      %1735 = vrot.lane.b32.xlu0 %v984, 120
      %v1736 = vpop.permute.xlu0 %1735
      %1737 = vrot.lane.b32.xlu0 %v985, 120
      %v1738 = vpop.permute.xlu0 %1737
      %1739 = vrot.lane.b32.xlu0 %v986, 120
      %v1740 = vpop.permute.xlu0 %1739
      %1741 = vrot.lane.b32.xlu0 %v987, 120
      %v1742 = vpop.permute.xlu0 %1741
      %1743 = vrot.lane.b32.xlu0 %v988, 120
      %v1744 = vpop.permute.xlu0 %1743
      %1745 = vrot.lane.b32.xlu0 %v989, 120
      %v1746 = vpop.permute.xlu0 %1745
      %1747 = vrot.lane.b32.xlu0 %v990, 120
      %v1748 = vpop.permute.xlu0 %1747
      %1749 = vrot.lane.b32.xlu0 %v991, 120
      %v1750 = vpop.permute.xlu0 %1749
      %1751 = vrot.lane.b32.xlu0 %v992, 120
      %v1752 = vpop.permute.xlu0 %1751
      %1753 = vrot.lane.b32.xlu0 %v993, 120
      %v1754 = vpop.permute.xlu0 %1753
      %1755 = vrot.lane.b32.xlu0 %v994, 120
      %v1756 = vpop.permute.xlu0 %1755
      %1757 = vrot.lane.b32.xlu0 %v995, 120
      %v1758 = vpop.permute.xlu0 %1757
      %1759 = vrot.lane.b32.xlu0 %v996, 120
      %v1760 = vpop.permute.xlu0 %1759
      %1761 = vrot.lane.b32.xlu0 %v997, 120
      %v1762 = vpop.permute.xlu0 %1761
      %1763 = vrot.lane.b32.xlu0 %v998, 120
      %v1764 = vpop.permute.xlu0 %1763
      %1781 = vmatprep.subr.bf16.mxu0 0
      %1782 = vmatpush1.bf16.msra.mxu0 %v1748
      %1783 = vmatprep.subr.bf16.mxu0 0
      %1784 = vmatpush1.bf16.msra.mxu0 %v1746
      %1785 = vmatprep.subr.bf16.mxu0 0
      %1786 = vmatpush1.bf16.msra.mxu0 %v1744
      %1787 = vmatprep.subr.bf16.mxu0 0
      %1788 = vmatpush1.bf16.msra.mxu0 %v1742
      %1789 = vmatprep.subr.bf16.mxu0 0
      %1790 = vmatpush1.bf16.msra.mxu0 %v1740
      %1791 = vmatprep.subr.bf16.mxu0 0
      %1792 = vmatpush1.bf16.msra.mxu0 %v1738
      %1793 = vmatprep.subr.bf16.mxu0 0
      %1794 = vmatpush1.bf16.msra.mxu0 %v1736
      %1795 = vmatprep.subr.bf16.mxu0 0
      %1796 = vmatpush1.bf16.msra.mxu0 %v1734
      %1797 = vmatprep.subr.bf16.mxu0 0
      %1798 = vmatpush2.bf16.msra.mxu0 %v1764
      %1799 = vmatprep.subr.bf16.mxu0 0
      %1800 = vmatpush2.bf16.msra.mxu0 %v1762
      %1801 = vmatprep.subr.bf16.mxu0 0
      %1802 = vmatpush2.bf16.msra.mxu0 %v1760
      %1803 = vmatprep.subr.bf16.mxu0 0
      %1804 = vmatpush2.bf16.msra.mxu0 %v1758
      %1805 = vmatprep.subr.bf16.mxu0 0
      %1806 = vmatpush2.bf16.msra.mxu0 %v1756
      %1807 = vmatprep.subr.bf16.mxu0 0
      %1808 = vmatpush2.bf16.msra.mxu0 %v1754
      %1809 = vmatprep.subr.bf16.mxu0 0
      %1810 = vmatpush2.bf16.msra.mxu0 %v1752
      %1811 = vmatprep.subr.bf16.mxu0 0
      %1812 = vmatpush2.bf16.msra.mxu0 %v1750
      %1813 = vmatprep.mubr.bf16.mxu0 %v1718
      %1814 = vmatmul.mubr.bf16.gmra.mxu0 %v1717
      %v1815 = vpop.f32.mrf.mxu0
      %v1816 = vadd.f32 0.0, %v1815
      %v1817 = vpop.f32.mrf.mxu0
      %v1818 = vpop.f32.mrf.mxu0
      %v1819 = vadd.f32 0.0, %v1818
      %v1820 = vpop.f32.mrf.mxu0
      %1821 = vmatprep.mubr.bf16.mxu0 %v1720
      %1822 = vmatmul.mubr.bf16.gmra.mxu0 %v1719
      %v1823 = vpop.f32.mrf.mxu0
      %v1824 = vadd.f32 0.0, %v1823
      %v1825 = vpop.f32.mrf.mxu0
      %v1826 = vpop.f32.mrf.mxu0
      %v1827 = vadd.f32 0.0, %v1826
      %v1828 = vpop.f32.mrf.mxu0
      %1829 = vmatprep.mubr.bf16.mxu0 %v1722
      %1830 = vmatmul.mubr.bf16.gmra.mxu0 %v1721
      %v1831 = vpop.f32.mrf.mxu0
      %v1832 = vadd.f32 0.0, %v1831
      %v1833 = vpop.f32.mrf.mxu0
      %v1834 = vpop.f32.mrf.mxu0
      %v1835 = vadd.f32 0.0, %v1834
      %v1836 = vpop.f32.mrf.mxu0
      %1837 = vmatprep.mubr.bf16.mxu0 %v1724
      %1838 = vmatmul.mubr.bf16.gmra.mxu0 %v1723
      %v1839 = vpop.f32.mrf.mxu0
      %v1840 = vadd.f32 0.0, %v1839
      %v1841 = vpop.f32.mrf.mxu0
      %v1842 = vpop.f32.mrf.mxu0
      %v1843 = vadd.f32 0.0, %v1842
      %v1844 = vpop.f32.mrf.mxu0
      %1845 = vmatprep.mubr.bf16.mxu0 %v1726
      %1846 = vmatmul.mubr.bf16.gmra.mxu0 %v1725
      %v1847 = vpop.f32.mrf.mxu0
      %v1848 = vadd.f32 0.0, %v1847
      %v1849 = vpop.f32.mrf.mxu0
      %v1850 = vpop.f32.mrf.mxu0
      %v1851 = vadd.f32 0.0, %v1850
      %v1852 = vpop.f32.mrf.mxu0
      %1853 = vmatprep.mubr.bf16.mxu0 %v1728
      %1854 = vmatmul.mubr.bf16.gmra.mxu0 %v1727
      %v1855 = vpop.f32.mrf.mxu0
      %v1856 = vadd.f32 0.0, %v1855
      %v1857 = vpop.f32.mrf.mxu0
      %v1858 = vpop.f32.mrf.mxu0
      %v1859 = vadd.f32 0.0, %v1858
      %v1860 = vpop.f32.mrf.mxu0
      %1861 = vmatprep.mubr.bf16.mxu0 %v1730
      %1862 = vmatmul.mubr.bf16.gmra.mxu0 %v1729
      %v1863 = vpop.f32.mrf.mxu0
      %v1864 = vadd.f32 0.0, %v1863
      %v1865 = vpop.f32.mrf.mxu0
      %v1866 = vpop.f32.mrf.mxu0
      %v1867 = vadd.f32 0.0, %v1866
      %v1868 = vpop.f32.mrf.mxu0
      %1869 = vmatprep.mubr.bf16.mxu0 %v1732
      %1870 = vmatmul.mubr.bf16.gmra.mxu0 %v1731
      %v1871 = vpop.f32.mrf.mxu0
      %v1872 = vadd.f32 0.0, %v1871
      %v1873 = vpop.f32.mrf.mxu0
      %v1874 = vpop.f32.mrf.mxu0
      %v1875 = vadd.f32 0.0, %v1874
      %v1876 = vpop.f32.mrf.mxu0
      %1877 = vdwg.mxu0
      %vm1878 = vcmp.gt.f32.partialorder %v1816, 0.0
      %vm1879 = vcmp.gt.f32.partialorder %v1819, 0.0
      %vm1880 = vcmp.gt.f32.partialorder %v1824, 0.0
      %vm1881 = vcmp.gt.f32.partialorder %v1827, 0.0
      %vm1882 = vcmp.gt.f32.partialorder %v1832, 0.0
      %vm1883 = vcmp.gt.f32.partialorder %v1835, 0.0
      %vm1884 = vcmp.gt.f32.partialorder %v1840, 0.0
      %vm1885 = vcmp.gt.f32.partialorder %v1843, 0.0
      %vm1886 = vcmp.gt.f32.partialorder %v1848, 0.0
      %vm1887 = vcmp.gt.f32.partialorder %v1851, 0.0
      %vm1888 = vcmp.gt.f32.partialorder %v1856, 0.0
      %vm1889 = vcmp.gt.f32.partialorder %v1859, 0.0
      %vm1890 = vcmp.gt.f32.partialorder %v1864, 0.0
      %vm1891 = vcmp.gt.f32.partialorder %v1867, 0.0
      %vm1892 = vcmp.gt.f32.partialorder %v1872, 0.0
      %vm1893 = vcmp.gt.f32.partialorder %v1875, 0.0
      %v1894 = vmin.f32 %v1816, 0.0
      %v1895 = vmin.f32 %v1819, 0.0
      %v1896 = vmin.f32 %v1824, 0.0
      %v1897 = vmin.f32 %v1827, 0.0
      %v1898 = vmin.f32 %v1832, 0.0
      %v1899 = vmin.f32 %v1835, 0.0
      %v1900 = vmin.f32 %v1840, 0.0
      %v1901 = vmin.f32 %v1843, 0.0
      %v1902 = vmin.f32 %v1848, 0.0
      %v1903 = vmin.f32 %v1851, 0.0
      %v1904 = vmin.f32 %v1856, 0.0
      %v1905 = vmin.f32 %v1859, 0.0
      %v1906 = vmin.f32 %v1864, 0.0
      %v1907 = vmin.f32 %v1867, 0.0
      %v1908 = vmin.f32 %v1872, 0.0
      %v1909 = vmin.f32 %v1875, 0.0
      %v1910 = vmul.f32 %v1894, 1.442695
      %v1911 = vpow.pop %v1910
      %v1912 = vmul.f32 %v1895, 1.442695
      %v1913 = vpow.pop %v1912
      %v1914 = vmul.f32 %v1896, 1.442695
      %v1915 = vpow.pop %v1914
      %v1916 = vmul.f32 %v1897, 1.442695
      %v1917 = vpow.pop %v1916
      %v1918 = vmul.f32 %v1898, 1.442695
      %v1919 = vpow.pop %v1918
      %v1920 = vmul.f32 %v1899, 1.442695
      %v1921 = vpow.pop %v1920
      %v1922 = vmul.f32 %v1900, 1.442695
      %v1923 = vpow.pop %v1922
      %v1924 = vmul.f32 %v1901, 1.442695
      %v1925 = vpow.pop %v1924
      %v1926 = vmul.f32 %v1902, 1.442695
      %v1927 = vpow.pop %v1926
      %v1928 = vmul.f32 %v1903, 1.442695
      %v1929 = vpow.pop %v1928
      %v1930 = vmul.f32 %v1904, 1.442695
      %v1931 = vpow.pop %v1930
      %v1932 = vmul.f32 %v1905, 1.442695
      %v1933 = vpow.pop %v1932
      %v1934 = vmul.f32 %v1906, 1.442695
      %v1935 = vpow.pop %v1934
      %v1936 = vmul.f32 %v1907, 1.442695
      %v1937 = vpow.pop %v1936
      %v1938 = vmul.f32 %v1908, 1.442695
      %v1939 = vpow.pop %v1938
      %v1940 = vmul.f32 %v1909, 1.442695
      %v1941 = vpow.pop %v1940
      %v1942 = vsub.f32 %v1911, 1.0
      %v1943 = vsub.f32 %v1913, 1.0
      %v1944 = vsub.f32 %v1915, 1.0
      %v1945 = vsub.f32 %v1917, 1.0
      %v1946 = vsub.f32 %v1919, 1.0
      %v1947 = vsub.f32 %v1921, 1.0
      %v1948 = vsub.f32 %v1923, 1.0
      %v1949 = vsub.f32 %v1925, 1.0
      %v1950 = vsub.f32 %v1927, 1.0
      %v1951 = vsub.f32 %v1929, 1.0
      %v1952 = vsub.f32 %v1931, 1.0
      %v1953 = vsub.f32 %v1933, 1.0
      %v1954 = vsub.f32 %v1935, 1.0
      %v1955 = vsub.f32 %v1937, 1.0
      %v1956 = vsub.f32 %v1939, 1.0
      %v1957 = vsub.f32 %v1941, 1.0
      %v1958 = vsel %vm1878, %v1816, %v1942
      %v1959 = vsel %vm1879, %v1819, %v1943
      %v1960 = vsel %vm1880, %v1824, %v1944
      %v1961 = vsel %vm1881, %v1827, %v1945
      %v1962 = vsel %vm1882, %v1832, %v1946
      %v1963 = vsel %vm1883, %v1835, %v1947
      %v1964 = vsel %vm1884, %v1840, %v1948
      %v1965 = vsel %vm1885, %v1843, %v1949
      %v1966 = vsel %vm1886, %v1848, %v1950
      %v1967 = vsel %vm1887, %v1851, %v1951
      %v1968 = vsel %vm1888, %v1856, %v1952
      %v1969 = vsel %vm1889, %v1859, %v1953
      %v1970 = vsel %vm1890, %v1864, %v1954
      %v1971 = vsel %vm1891, %v1867, %v1955
      %v1972 = vsel %vm1892, %v1872, %v1956
      %v1973 = vsel %vm1893, %v1875, %v1957
      %1990 = vrot.lane.b32.xlu0 %v1958, 8
      %v1991 = vpop.permute.xlu0 %1990
      %1992 = vrot.lane.b32.xlu0 %v1959, 8
      %v1993 = vpop.permute.xlu0 %1992
      %1994 = vrot.lane.b32.xlu0 %v1960, 8
      %v1995 = vpop.permute.xlu0 %1994
      %1996 = vrot.lane.b32.xlu0 %v1961, 8
      %v1997 = vpop.permute.xlu0 %1996
      %1998 = vrot.lane.b32.xlu0 %v1962, 8
      %v1999 = vpop.permute.xlu0 %1998
      %2000 = vrot.lane.b32.xlu0 %v1963, 8
      %v2001 = vpop.permute.xlu0 %2000
      %2002 = vrot.lane.b32.xlu0 %v1964, 8
      %v2003 = vpop.permute.xlu0 %2002
      %2004 = vrot.lane.b32.xlu0 %v1965, 8
      %v2005 = vpop.permute.xlu0 %2004
      %2006 = vrot.lane.b32.xlu0 %v1966, 8
      %v2007 = vpop.permute.xlu0 %2006
      %2008 = vrot.lane.b32.xlu0 %v1967, 8
      %v2009 = vpop.permute.xlu0 %2008
      %2010 = vrot.lane.b32.xlu0 %v1968, 8
      %v2011 = vpop.permute.xlu0 %2010
      %2012 = vrot.lane.b32.xlu0 %v1969, 8
      %v2013 = vpop.permute.xlu0 %2012
      %2014 = vrot.lane.b32.xlu0 %v1970, 8
      %v2015 = vpop.permute.xlu0 %2014
      %2016 = vrot.lane.b32.xlu0 %v1971, 8
      %v2017 = vpop.permute.xlu0 %2016
      %2018 = vrot.lane.b32.xlu0 %v1972, 8
      %v2019 = vpop.permute.xlu0 %2018
      %2020 = vrot.lane.b32.xlu0 %v1973, 8
      %v2021 = vpop.permute.xlu0 %2020
      %vm2038 = vcmask 64512
      %v2039 = vsel %vm2038, %v1192, %v1991
      %v2040 = vsel %vm2038, %v1193, %v1993
      %v2041 = vsel %vm2038, %v1194, %v1995
      %v2042 = vsel %vm2038, %v1195, %v1997
      %v2043 = vsel %vm2038, %v1196, %v1999
      %v2044 = vsel %vm2038, %v1197, %v2001
      %v2045 = vsel %vm2038, %v1198, %v2003
      %v2046 = vsel %vm2038, %v1199, %v2005
      %v2047 = vsel %vm2038, %v1200, %v2007
      %v2048 = vsel %vm2038, %v1201, %v2009
      %v2049 = vsel %vm2038, %v1202, %v2011
      %v2050 = vsel %vm2038, %v1203, %v2013
      %v2051 = vsel %vm2038, %v1204, %v2015
      %v2052 = vsel %vm2038, %v1205, %v2017
      %v2053 = vsel %vm2038, %v1206, %v2019
      %v2054 = vsel %vm2038, %v1207, %v2021
      %vm2055 = vcmask 130048
      %v2056 = vsel %vm2055, %v2039, 0.0
      %v2057 = vsel %vm2055, %v2040, 0.0
      %v2058 = vsel %vm2055, %v2041, 0.0
      %v2059 = vsel %vm2055, %v2042, 0.0
      %v2060 = vsel %vm2055, %v2043, 0.0
      %v2061 = vsel %vm2055, %v2044, 0.0
      %v2062 = vsel %vm2055, %v2045, 0.0
      %v2063 = vsel %vm2055, %v2046, 0.0
      %v2064 = vsel %vm2055, %v2047, 0.0
      %v2065 = vsel %vm2055, %v2048, 0.0
      %v2066 = vsel %vm2055, %v2049, 0.0
      %v2067 = vsel %vm2055, %v2050, 0.0
      %v2068 = vsel %vm2055, %v2051, 0.0
      %v2069 = vsel %vm2055, %v2052, 0.0
      %v2070 = vsel %vm2055, %v2053, 0.0
      %v2071 = vsel %vm2055, %v2054, 0.0
      %2072 = vst [vmem:[%s224] sm:$0xff] %v2056
      %2073 = vst [vmem:[%s224 + $0x8] sm:$0xff] %v2057
      %2074 = vst [vmem:[%s224 + $0x10] sm:$0xff] %v2058
      %2075 = vst [vmem:[%s224 + $0x18] sm:$0xff] %v2059
      %2076 = vst [vmem:[%s224 + $0x20] sm:$0xff] %v2060
      %2077 = vst [vmem:[%s224 + $0x28] sm:$0xff] %v2061
      %2078 = vst [vmem:[%s224 + $0x30] sm:$0xff] %v2062
      %2079 = vst [vmem:[%s224 + $0x38] sm:$0xff] %v2063
      %2080 = vst [vmem:[%s224 + $0x40] sm:$0xff] %v2064
      %2081 = vst [vmem:[%s224 + $0x48] sm:$0xff] %v2065
      %2082 = vst [vmem:[%s224 + $0x50] sm:$0xff] %v2066
      %2083 = vst [vmem:[%s224 + $0x58] sm:$0xff] %v2067
      %2084 = vst [vmem:[%s224 + $0x60] sm:$0xff] %v2068
      %2085 = vst [vmem:[%s224 + $0x68] sm:$0xff] %v2069
      %2086 = vst [vmem:[%s224 + $0x70] sm:$0xff] %v2070
      %2087 = vst [vmem:[%s224 + $0x78] sm:$0xff] %v2071
      %s2088 = smul.u32 16, %s15
      %p2089 = scmp.lt.s32.totalorder %s2088, 31
      %s2090 = scalar_select %p2089, %s2088, 31
      %s2091 = smul.addr %s2090, 8
      %s2092 = scalar_lea.vmem %s4, %s2091
      // Predicated region
      $region37: #{gat_body_forward.3} parent=35 // pred_check
        %p2093 = pneg %p127
      $region38: #{gat_body_forward.3} parent=35 // pred_check_branch
        %2095 = sbr.rel (%p2093) target = $region40
      $region39: #{gat_body_forward.3} parent=35 // pred_region
        %s2096 = smul.u32 16, %s15
      $region40: #{gat_body_forward.3} parent=35 // pred_fallthru
        _
    $region36: #{gat_body_forward.3} parent=5 // pred_fallthru
      _
    %p2097 = scmp.le.s32.totalorder 2, %s10
    // Predicated region
    $region41: #{gat_body_forward.3} parent=5 // pred_check
      %p2098 = pneg %p2097
    $region42: #{gat_body_forward.3} parent=5 // pred_check_branch
      %2100 = sbr.rel (%p2098) target = $region44
    $region43: #{gat_body_forward.3} parent=5 // pred_region
      %s2101 = ssub.s32 %s10, 2
      // Predicated region
      $region45: #{gat_body_forward.3} parent=43 // pred_check
        %p2102 = pneg %p133
      $region46: #{gat_body_forward.3} parent=43 // pred_check_branch
        %2104 = sbr.rel (%p2102) target = $region48
      $region47: #{gat_body_forward.3} parent=43 // pred_region
        %s2105 = smul.u32 16, %s16
        %p2106 = scmp.lt.s32.totalorder %s2105, 31
        %s2107 = scalar_select %p2106, %s2105, 31
        %s2108 = smul.addr %s2107, 8
        %s2109 = scalar_lea.vmem %s4, %s2108
      $region48: #{gat_body_forward.3} parent=43 // pred_fallthru
        _
    $region44: #{gat_body_forward.3} parent=5 // pred_fallthru
      _
  $region6: #{gat_body_forward.3} parent=0 // loop_footer
    %s14 = sadd.s32 1, %s10
  $region7: #{gat_body_forward.3} parent=0 // loop_footer_branch
    %9 = sbr.rel target = $region3
  $region8: #{gat_body_forward.3} parent=0 // loop_exit
    _

// kernel: gat_body_forward.5
$region0: #{gat_body_forward.5}
  #allocation0 [shape = 'u32[]', space=smem, size = 0x4, offset = 0x4, fixed_abs, tag = 'smem constant byte address 0x4 - core index']
  #allocation1 [shape = 'u32[144,128]{1,0:T(1,128)}', space=vmem, size = 0x12000, scoped, tag = 'internal scratch']
  %s0 = inlined_call_operand.vmem [shape: s8[256,256], index: 0, kind: input, shape index: {}]
  %s1 = inlined_call_operand.vmem [shape: bf16[256,8], index: 1, kind: input, shape index: {}]
  %s2 = inlined_call_operand.vmem [shape: f32[8,256], index: 2, kind: input, shape index: {}]
  %s3 = inlined_call_operand.vmem [shape: f32[256,1], index: 3, kind: input, shape index: {}]
  %s4 = inlined_call_operand.vmem [shape: f32[256,8], index: 4, kind: input, shape index: {}]
  %s5 = inlined_call_operand.vmem [shape: f32[256,128], index: 5, kind: output, shape index: {}]
  %s6 = sld [smem:[#allocation0]]
  $region53: #{gat_body_forward.5} parent=0
    _
  %s8 = ssub.s32 1, %s6
  %s9 = scalar_select 0, %s8, %s6
  loop: start=0, step=1, limit=4
  $region2: #{gat_body_forward.5} parent=0 // loop_pre_header
    _
  $region3: #{gat_body_forward.5} parent=0 // loop_header
    %s11 = sphi 0, %s15
    %p12 = scmp.ge.s32.totalorder %s11, 4
    %s21 = sphi 0, %s23
    %s24 = sphi 0, %s21
    %s25 = sphi 0, %s24
    %s41 = sphi 0, %s25
    %s45 = sphi 0, %s45
    %s47 = sphi 0, %s45
    %s48 = sphi 0, %s47
    %s62 = sphi 0, %s48
    %s66 = sphi 0, %s66
    %s68 = sphi 0, %s66
    %s69 = sphi 0, %s68
    %s83 = sphi 0, %s69
    %s89 = sphi 0, %s91
    %s92 = sphi 0, %s89
    %s93 = sphi 0, %s92
    %s109 = sphi 0, %s93
    %s115 = sphi 0, %s117
    %s118 = sphi 0, %s115
    %s119 = sphi 0, %s118
    %s135 = sphi 0, %s119
    %s141 = sphi 0, %s143
    %s144 = sphi 0, %s141
    %s145 = sphi 0, %s144
    %s161 = sphi 0, %s145
  $region4: #{gat_body_forward.5} parent=0 // loop_header_branch
    %14 = sbr.rel (%p12) target = $region8
  $region5: #{gat_body_forward.5} parent=0 // loop_body
    %s16 = ssub.s32 %s11, 1
    %s17 = ssub.s32 %s11, 2
    %s18 = sadd.s32 %s11, 1
    %s19 = ssub.s32 %s11, %s18
    %p20 = scmp.eq.s32.totalorder %s19, 0
    %s22 = sadd.s32 %s21, 1
    %s23 = scalar_select %p20, %s21, %s22
    %p26 = pneg %p20
    %p27 = scmp.eq.s32.totalorder %s11, 1
    %p28 = por %p26, %p27
    %p29 = scmp.ne.s32.totalorder %s21, %s24
    %p30 = scmp.eq.s32.totalorder %s11, 0
    %p31 = por %p29, %p30
    %p32 = scmp.ne.s32.totalorder %s21, %s24
    %p33 = scmp.eq.s32.totalorder %s16, 1
    %p34 = por %p32, %p33
    %p35 = scmp.ne.s32.totalorder %s24, %s25
    %p36 = scmp.eq.s32.totalorder %s16, 0
    %p37 = por %p35, %p36
    %p38 = scmp.ne.s32.totalorder %s24, %s25
    %p39 = scmp.eq.s32.totalorder %s17, 1
    %p40 = por %p38, %p39
    %p42 = scmp.ne.s32.totalorder %s25, %s41
    %p43 = scmp.eq.s32.totalorder %s17, 0
    %p44 = por %p42, %p43
    %s46 = sadd.s32 %s45, 1
    %p49 = scmp.eq.s32.totalorder %s11, 1
    %p50 = scmp.ne.s32.totalorder %s45, %s47
    %p51 = scmp.eq.s32.totalorder %s11, 0
    %p52 = por %p50, %p51
    %p53 = scmp.ne.s32.totalorder %s45, %s47
    %p54 = scmp.eq.s32.totalorder %s16, 1
    %p55 = por %p53, %p54
    %p56 = scmp.ne.s32.totalorder %s47, %s48
    %p57 = scmp.eq.s32.totalorder %s16, 0
    %p58 = por %p56, %p57
    %p59 = scmp.ne.s32.totalorder %s47, %s48
    %p60 = scmp.eq.s32.totalorder %s17, 1
    %p61 = por %p59, %p60
    %p63 = scmp.ne.s32.totalorder %s48, %s62
    %p64 = scmp.eq.s32.totalorder %s17, 0
    %p65 = por %p63, %p64
    %s67 = sadd.s32 %s66, 1
    %p70 = scmp.eq.s32.totalorder %s11, 1
    %p71 = scmp.ne.s32.totalorder %s66, %s68
    %p72 = scmp.eq.s32.totalorder %s11, 0
    %p73 = por %p71, %p72
    %p74 = scmp.ne.s32.totalorder %s66, %s68
    %p75 = scmp.eq.s32.totalorder %s16, 1
    %p76 = por %p74, %p75
    %p77 = scmp.ne.s32.totalorder %s68, %s69
    %p78 = scmp.eq.s32.totalorder %s16, 0
    %p79 = por %p77, %p78
    %p80 = scmp.ne.s32.totalorder %s68, %s69
    %p81 = scmp.eq.s32.totalorder %s17, 1
    %p82 = por %p80, %p81
    %p84 = scmp.ne.s32.totalorder %s69, %s83
    %p85 = scmp.eq.s32.totalorder %s17, 0
    %p86 = por %p84, %p85
    %s87 = ssub.s32 %s11, %s18
    %p88 = scmp.eq.s32.totalorder %s87, 0
    %s90 = sadd.s32 %s89, 1
    %s91 = scalar_select %p88, %s89, %s90
    %p94 = pneg %p88
    %p95 = scmp.eq.s32.totalorder %s11, 1
    %p96 = por %p94, %p95
    %p97 = scmp.ne.s32.totalorder %s89, %s92
    %p98 = scmp.eq.s32.totalorder %s11, 0
    %p99 = por %p97, %p98
    %p100 = scmp.ne.s32.totalorder %s89, %s92
    %p101 = scmp.eq.s32.totalorder %s16, 1
    %p102 = por %p100, %p101
    %p103 = scmp.ne.s32.totalorder %s92, %s93
    %p104 = scmp.eq.s32.totalorder %s16, 0
    %p105 = por %p103, %p104
    %p106 = scmp.ne.s32.totalorder %s92, %s93
    %p107 = scmp.eq.s32.totalorder %s17, 1
    %p108 = por %p106, %p107
    %p110 = scmp.ne.s32.totalorder %s93, %s109
    %p111 = scmp.eq.s32.totalorder %s17, 0
    %p112 = por %p110, %p111
    %s113 = ssub.s32 %s11, %s18
    %p114 = scmp.eq.s32.totalorder %s113, 0
    %s116 = sadd.s32 %s115, 1
    %s117 = scalar_select %p114, %s115, %s116
    %p120 = pneg %p114
    %p121 = scmp.eq.s32.totalorder %s11, 1
    %p122 = por %p120, %p121
    %p123 = scmp.ne.s32.totalorder %s115, %s118
    %p124 = scmp.eq.s32.totalorder %s11, 0
    %p125 = por %p123, %p124
    %p126 = scmp.ne.s32.totalorder %s115, %s118
    %p127 = scmp.eq.s32.totalorder %s16, 1
    %p128 = por %p126, %p127
    %p129 = scmp.ne.s32.totalorder %s118, %s119
    %p130 = scmp.eq.s32.totalorder %s16, 0
    %p131 = por %p129, %p130
    %p132 = scmp.ne.s32.totalorder %s118, %s119
    %p133 = scmp.eq.s32.totalorder %s17, 1
    %p134 = por %p132, %p133
    %p136 = scmp.ne.s32.totalorder %s119, %s135
    %p137 = scmp.eq.s32.totalorder %s17, 0
    %p138 = por %p136, %p137
    %s139 = ssub.s32 %s11, %s18
    %p140 = scmp.eq.s32.totalorder %s139, 0
    %s142 = sadd.s32 %s141, 1
    %s143 = scalar_select %p140, %s141, %s142
    %p146 = pneg %p140
    %p147 = scmp.eq.s32.totalorder %s11, 1
    %p148 = por %p146, %p147
    %p149 = scmp.ne.s32.totalorder %s141, %s144
    %p150 = scmp.eq.s32.totalorder %s11, 0
    %p151 = por %p149, %p150
    %p152 = scmp.ne.s32.totalorder %s141, %s144
    %p153 = scmp.eq.s32.totalorder %s16, 1
    %p154 = por %p152, %p153
    %p155 = scmp.ne.s32.totalorder %s144, %s145
    %p156 = scmp.eq.s32.totalorder %s16, 0
    %p157 = por %p155, %p156
    %p158 = scmp.ne.s32.totalorder %s144, %s145
    %p159 = scmp.eq.s32.totalorder %s17, 1
    %p160 = por %p158, %p159
    %p162 = scmp.ne.s32.totalorder %s145, %s161
    %p163 = scmp.eq.s32.totalorder %s17, 0
    %p164 = por %p162, %p163
    %p165 = scmp.le.s32.totalorder 1, %s11
    %p166 = scmp.lt.s32.totalorder %s11, 3
    %p167 = pnand %p165, %p166
    %p168 = pneg %p167
    // Predicated region
    $region9: #{gat_body_forward.5} parent=5 // pred_check
      _
    $region10: #{gat_body_forward.5} parent=5 // pred_check_branch
      %170 = sbr.rel (%p167) target = $region12
    $region11: #{gat_body_forward.5} parent=5 // pred_region
      %s171 = ssub.s32 %s11, 1
      // Predicated region
      $region13: #{gat_body_forward.5} parent=11 // pred_check
        %p172 = pneg %p58
      $region14: #{gat_body_forward.5} parent=11 // pred_check_branch
        %174 = sbr.rel (%p172) target = $region16
      $region15: #{gat_body_forward.5} parent=11 // pred_region
        _
      $region16: #{gat_body_forward.5} parent=11 // pred_fallthru
        _
      // Predicated region
      $region17: #{gat_body_forward.5} parent=11 // pred_check
        %p175 = pneg %p79
      $region18: #{gat_body_forward.5} parent=11 // pred_check_branch
        %177 = sbr.rel (%p175) target = $region20
      $region19: #{gat_body_forward.5} parent=11 // pred_region
        _
      $region20: #{gat_body_forward.5} parent=11 // pred_fallthru
        _
    $region12: #{gat_body_forward.5} parent=5 // pred_fallthru
      _
    %p178 = scmp.lt.s32.totalorder %s11, 2
    // Predicated region
    $region21: #{gat_body_forward.5} parent=5 // pred_check
      %p179 = pneg %p178
    $region22: #{gat_body_forward.5} parent=5 // pred_check_branch
      %181 = sbr.rel (%p179) target = $region24
    $region23: #{gat_body_forward.5} parent=5 // pred_region
      // Predicated region
      $region25: #{gat_body_forward.5} parent=23 // pred_check
        %p182 = pneg %p31
      $region26: #{gat_body_forward.5} parent=23 // pred_check_branch
        %184 = sbr.rel (%p182) target = $region28
      $region27: #{gat_body_forward.5} parent=23 // pred_region
        %s185 = smul.u32 4, %s11
        %p186 = scmp.lt.s32.totalorder %s185, 7
        %s187 = scalar_select %p186, %s185, 7
        %s188 = smul.addr %s187, 2
        %s189 = smul.addr %s188, 8
        %s190 = scalar_lea.vmem %s0, %s189
        %s191 = smul.u32 4, %s11
      $region28: #{gat_body_forward.5} parent=23 // pred_fallthru
        _
      // Predicated region
      $region29: #{gat_body_forward.5} parent=23 // pred_check
        %p192 = pneg %p99
      $region30: #{gat_body_forward.5} parent=23 // pred_check_branch
        %194 = sbr.rel (%p192) target = $region32
      $region31: #{gat_body_forward.5} parent=23 // pred_region
        %s195 = smul.u32 16, %s11
        %p196 = scmp.lt.s32.totalorder %s195, 31
        %s197 = scalar_select %p196, %s195, 31
        %s198 = smul.addr %s197, 8
        %s199 = scalar_lea.vmem %s3, %s198
        %s200 = smul.u32 16, %s11
      $region32: #{gat_body_forward.5} parent=23 // pred_fallthru
        _
      // Predicated region
      $region33: #{gat_body_forward.5} parent=23 // pred_check
        %p201 = pneg %p125
      $region34: #{gat_body_forward.5} parent=23 // pred_check_branch
        %203 = sbr.rel (%p201) target = $region36
      $region35: #{gat_body_forward.5} parent=23 // pred_region
        %s204 = smul.u32 16, %s11
        %p205 = scmp.lt.s32.totalorder %s204, 31
        %s206 = scalar_select %p205, %s204, 31
        %s207 = smul.addr %s206, 8
        %s208 = scalar_lea.vmem %s4, %s207
        %s209 = smul.u32 16, %s11
      $region36: #{gat_body_forward.5} parent=23 // pred_fallthru
        _
    $region24: #{gat_body_forward.5} parent=5 // pred_fallthru
      _
    %p210 = scmp.le.s32.totalorder 1, %s11
    %p211 = scmp.lt.s32.totalorder %s11, 3
    %p212 = pnand %p210, %p211
    %p213 = pneg %p212
    // Predicated region
    $region37: #{gat_body_forward.5} parent=5 // pred_check
      _
    $region38: #{gat_body_forward.5} parent=5 // pred_check_branch
      %215 = sbr.rel (%p212) target = $region40
    $region39: #{gat_body_forward.5} parent=5 // pred_region
      %s216 = ssub.s32 %s11, 1
      %s217 = smul.u32 4, %s16
      %p218 = scmp.lt.s32.totalorder %s217, 7
      %s219 = scalar_select %p218, %s217, 7
      %s220 = smul.addr %s219, 2
      %s221 = smul.addr %s220, 8
      %s222 = scalar_lea.vmem %s0, %s221
      %p223 = pneg %p37
      %p224 = pneg %p34
      %p225 = pneg %p58
      %p226 = pneg %p55
      %p227 = pneg %p79
      %p228 = pneg %p76
      %s229 = smul.u32 16, %s16
      %p230 = scmp.lt.s32.totalorder %s229, 31
      %s231 = scalar_select %p230, %s229, 31
      %s232 = smul.addr %s231, 8
      %s233 = scalar_lea.vmem %s3, %s232
      %p234 = pneg %p105
      %p235 = pneg %p102
      %s236 = smul.u32 16, %s16
      %p237 = scmp.lt.s32.totalorder %s236, 31
      %s238 = scalar_select %p237, %s236, 31
      %s239 = smul.addr %s238, 8
      %s240 = scalar_lea.vmem %s4, %s239
      %p241 = pneg %p131
      %p242 = pneg %p128
      %p243 = pneg %p157
      %p244 = pneg %p154
      %s245 = smul.u32 16, %s16
      %p246 = scmp.lt.s32.totalorder %s245, 31
      %s247 = scalar_select %p246, %s245, 31
      %s248 = smul.addr %s247, 8
      %s249 = scalar_lea.vmem %s5, %s248
      %s250 = smul.u32 4, %s16
      %p251 = scmp.lt.s32.totalorder %s250, 7
      %s252 = scalar_select %p251, %s250, 7
      %s253 = smul.addr %s252, 2
      %s254 = smul.addr %s253, 8
      %s255 = scalar_lea.vmem %s0, %s254
      %s256 = smul.u32 4, %s16
      %s257 = smul.u32 16, %s16
      %p258 = scmp.lt.s32.totalorder %s257, 31
      %s259 = scalar_select %p258, %s257, 31
      %s260 = smul.addr %s259, 8
      %s261 = scalar_lea.vmem %s3, %s260
      %s262 = smul.u32 16, %s16
      %s263 = smul.u32 16, %s16
      %p264 = scmp.lt.s32.totalorder %s263, 31
      %s265 = scalar_select %p264, %s263, 31
      %s266 = smul.addr %s265, 8
      %s267 = scalar_lea.vmem %s4, %s266
      %s268 = smul.u32 16, %s16
      %s269 = smul.u32 16, %s16
      %p270 = scmp.lt.s32.totalorder %s269, 31
      %s271 = scalar_select %p270, %s269, 31
      %s272 = smul.addr %s271, 8
      %s273 = scalar_lea.vmem %s5, %s272
      %s274 = smul.u32 16, %s16
      %v276 = vld [vmem:[%s255] sm:$0xff]
      %v277 = vld [vmem:[%s255 + $0x8] sm:$0xff]
      %v278 = vld [vmem:[%s255 + $0x10] sm:$0xff]
      %v279 = vld [vmem:[%s255 + $0x18] sm:$0xff]
      %v280 = vld [vmem:[%s255 + $0x20] sm:$0xff]
      %v281 = vld [vmem:[%s255 + $0x28] sm:$0xff]
      %v282 = vld [vmem:[%s255 + $0x30] sm:$0xff]
      %v283 = vld [vmem:[%s255 + $0x38] sm:$0xff]
      %v284 = vunpack.c.0.s8 %v276
      %v285 = vunpack.c.0.s8 %v277
      %v286 = vunpack.c.1.s8 %v276
      %v287 = vunpack.c.1.s8 %v277
      %v288 = vunpack.c.2.s8 %v276
      %v289 = vunpack.c.2.s8 %v277
      %v290 = vunpack.c.3.s8 %v276
      %v291 = vunpack.c.3.s8 %v277
      %v292 = vunpack.c.0.s8 %v278
      %v293 = vunpack.c.0.s8 %v279
      %v294 = vunpack.c.1.s8 %v278
      %v295 = vunpack.c.1.s8 %v279
      %v296 = vunpack.c.2.s8 %v278
      %v297 = vunpack.c.2.s8 %v279
      %v298 = vunpack.c.3.s8 %v278
      %v299 = vunpack.c.3.s8 %v279
      %v300 = vunpack.c.0.s8 %v280
      %v301 = vunpack.c.0.s8 %v281
      %v302 = vunpack.c.1.s8 %v280
      %v303 = vunpack.c.1.s8 %v281
      %v304 = vunpack.c.2.s8 %v280
      %v305 = vunpack.c.2.s8 %v281
      %v306 = vunpack.c.3.s8 %v280
      %v307 = vunpack.c.3.s8 %v281
      %v308 = vunpack.c.0.s8 %v282
      %v309 = vunpack.c.0.s8 %v283
      %v310 = vunpack.c.1.s8 %v282
      %v311 = vunpack.c.1.s8 %v283
      %v312 = vunpack.c.2.s8 %v282
      %v313 = vunpack.c.2.s8 %v283
      %v314 = vunpack.c.3.s8 %v282
      %v315 = vunpack.c.3.s8 %v283
      %vm316 = vcmp.gt.s32.totalorder %v284, 0
      %vm317 = vcmp.gt.s32.totalorder %v285, 0
      %vm318 = vcmp.gt.s32.totalorder %v286, 0
      %vm319 = vcmp.gt.s32.totalorder %v287, 0
      %vm320 = vcmp.gt.s32.totalorder %v288, 0
      %vm321 = vcmp.gt.s32.totalorder %v289, 0
      %vm322 = vcmp.gt.s32.totalorder %v290, 0
      %vm323 = vcmp.gt.s32.totalorder %v291, 0
      %vm324 = vcmp.gt.s32.totalorder %v292, 0
      %vm325 = vcmp.gt.s32.totalorder %v293, 0
      %vm326 = vcmp.gt.s32.totalorder %v294, 0
      %vm327 = vcmp.gt.s32.totalorder %v295, 0
      %vm328 = vcmp.gt.s32.totalorder %v296, 0
      %vm329 = vcmp.gt.s32.totalorder %v297, 0
      %vm330 = vcmp.gt.s32.totalorder %v298, 0
      %vm331 = vcmp.gt.s32.totalorder %v299, 0
      %vm332 = vcmp.gt.s32.totalorder %v300, 0
      %vm333 = vcmp.gt.s32.totalorder %v301, 0
      %vm334 = vcmp.gt.s32.totalorder %v302, 0
      %vm335 = vcmp.gt.s32.totalorder %v303, 0
      %vm336 = vcmp.gt.s32.totalorder %v304, 0
      %vm337 = vcmp.gt.s32.totalorder %v305, 0
      %vm338 = vcmp.gt.s32.totalorder %v306, 0
      %vm339 = vcmp.gt.s32.totalorder %v307, 0
      %vm340 = vcmp.gt.s32.totalorder %v308, 0
      %vm341 = vcmp.gt.s32.totalorder %v309, 0
      %vm342 = vcmp.gt.s32.totalorder %v310, 0
      %vm343 = vcmp.gt.s32.totalorder %v311, 0
      %vm344 = vcmp.gt.s32.totalorder %v312, 0
      %vm345 = vcmp.gt.s32.totalorder %v313, 0
      %vm346 = vcmp.gt.s32.totalorder %v314, 0
      %vm347 = vcmp.gt.s32.totalorder %v315, 0
      %v348 = vsel %vm316, 0.0, -1e+30
      %v349 = vsel %vm317, 0.0, -1e+30
      %v350 = vsel %vm318, 0.0, -1e+30
      %v351 = vsel %vm319, 0.0, -1e+30
      %v352 = vsel %vm320, 0.0, -1e+30
      %v353 = vsel %vm321, 0.0, -1e+30
      %v354 = vsel %vm322, 0.0, -1e+30
      %v355 = vsel %vm323, 0.0, -1e+30
      %v356 = vsel %vm324, 0.0, -1e+30
      %v357 = vsel %vm325, 0.0, -1e+30
      %v358 = vsel %vm326, 0.0, -1e+30
      %v359 = vsel %vm327, 0.0, -1e+30
      %v360 = vsel %vm328, 0.0, -1e+30
      %v361 = vsel %vm329, 0.0, -1e+30
      %v362 = vsel %vm330, 0.0, -1e+30
      %v363 = vsel %vm331, 0.0, -1e+30
      %v364 = vsel %vm332, 0.0, -1e+30
      %v365 = vsel %vm333, 0.0, -1e+30
      %v366 = vsel %vm334, 0.0, -1e+30
      %v367 = vsel %vm335, 0.0, -1e+30
      %v368 = vsel %vm336, 0.0, -1e+30
      %v369 = vsel %vm337, 0.0, -1e+30
      %v370 = vsel %vm338, 0.0, -1e+30
      %v371 = vsel %vm339, 0.0, -1e+30
      %v372 = vsel %vm340, 0.0, -1e+30
      %v373 = vsel %vm341, 0.0, -1e+30
      %v374 = vsel %vm342, 0.0, -1e+30
      %v375 = vsel %vm343, 0.0, -1e+30
      %v376 = vsel %vm344, 0.0, -1e+30
      %v377 = vsel %vm345, 0.0, -1e+30
      %v378 = vsel %vm346, 0.0, -1e+30
      %v379 = vsel %vm347, 0.0, -1e+30
      %v380 = vld [vmem:[%s261] sm:$0xff]
      %v381 = vld [vmem:[%s261 + $0x8] sm:$0xff]
      %v382 = vld [vmem:[%s261 + $0x10] sm:$0xff]
      %v383 = vld [vmem:[%s261 + $0x18] sm:$0xff]
      %v384 = vld [vmem:[%s261 + $0x20] sm:$0xff]
      %v385 = vld [vmem:[%s261 + $0x28] sm:$0xff]
      %v386 = vld [vmem:[%s261 + $0x30] sm:$0xff]
      %v387 = vld [vmem:[%s261 + $0x38] sm:$0xff]
      %v388 = vld [vmem:[%s261 + $0x40] sm:$0xff]
      %v389 = vld [vmem:[%s261 + $0x48] sm:$0xff]
      %v390 = vld [vmem:[%s261 + $0x50] sm:$0xff]
      %v391 = vld [vmem:[%s261 + $0x58] sm:$0xff]
      %v392 = vld [vmem:[%s261 + $0x60] sm:$0xff]
      %v393 = vld [vmem:[%s261 + $0x68] sm:$0xff]
      %v394 = vld [vmem:[%s261 + $0x70] sm:$0xff]
      %v395 = vld [vmem:[%s261 + $0x78] sm:$0xff]
      %v396 = vld [vmem:[%s2] ss:$8 sm:$0x3]
      %398 = vset.pattern.permute.xlu0 0
      %399 = vperm.xlu0 %398, %v380
      %v400 = vpop.permute.xlu0 %399
      %403 = vset.pattern.permute.xlu0 0
      %404 = vperm.xlu0 %403, %v381
      %v405 = vpop.permute.xlu0 %404
      %408 = vset.pattern.permute.xlu0 0
      %409 = vperm.xlu0 %408, %v382
      %v410 = vpop.permute.xlu0 %409
      %413 = vset.pattern.permute.xlu0 0
      %414 = vperm.xlu0 %413, %v383
      %v415 = vpop.permute.xlu0 %414
      %418 = vset.pattern.permute.xlu0 0
      %419 = vperm.xlu0 %418, %v384
      %v420 = vpop.permute.xlu0 %419
      %423 = vset.pattern.permute.xlu0 0
      %424 = vperm.xlu0 %423, %v385
      %v425 = vpop.permute.xlu0 %424
      %428 = vset.pattern.permute.xlu0 0
      %429 = vperm.xlu0 %428, %v386
      %v430 = vpop.permute.xlu0 %429
      %433 = vset.pattern.permute.xlu0 0
      %434 = vperm.xlu0 %433, %v387
      %v435 = vpop.permute.xlu0 %434
      %438 = vset.pattern.permute.xlu0 0
      %439 = vperm.xlu0 %438, %v388
      %v440 = vpop.permute.xlu0 %439
      %443 = vset.pattern.permute.xlu0 0
      %444 = vperm.xlu0 %443, %v389
      %v445 = vpop.permute.xlu0 %444
      %448 = vset.pattern.permute.xlu0 0
      %449 = vperm.xlu0 %448, %v390
      %v450 = vpop.permute.xlu0 %449
      %453 = vset.pattern.permute.xlu0 0
      %454 = vperm.xlu0 %453, %v391
      %v455 = vpop.permute.xlu0 %454
      %458 = vset.pattern.permute.xlu0 0
      %459 = vperm.xlu0 %458, %v392
      %v460 = vpop.permute.xlu0 %459
      %463 = vset.pattern.permute.xlu0 0
      %464 = vperm.xlu0 %463, %v393
      %v465 = vpop.permute.xlu0 %464
      %468 = vset.pattern.permute.xlu0 0
      %469 = vperm.xlu0 %468, %v394
      %v470 = vpop.permute.xlu0 %469
      %473 = vset.pattern.permute.xlu0 0
      %474 = vperm.xlu0 %473, %v395
      %v475 = vpop.permute.xlu0 %474
      %v478 = vlaneseq
      %v479 = vshrl.u32 %v478, 7
      %v480 = vsub.s32 0, %v479
      %v481 = vrot.slane %v396, %v480
      %v482 = vlaneseq
      %v483 = vshrl.u32 %v482, 7
      %v484 = vsub.s32 1, %v483
      %v485 = vrot.slane %v396, %v484
      %v488 = vadd.f32 %v400, %v481
      %v489 = vadd.f32 %v400, %v485
      %v490 = vadd.f32 %v405, %v481
      %v491 = vadd.f32 %v405, %v485
      %v492 = vadd.f32 %v410, %v481
      %v493 = vadd.f32 %v410, %v485
      %v494 = vadd.f32 %v415, %v481
      %v495 = vadd.f32 %v415, %v485
      %v496 = vadd.f32 %v420, %v481
      %v497 = vadd.f32 %v420, %v485
      %v498 = vadd.f32 %v425, %v481
      %v499 = vadd.f32 %v425, %v485
      %v500 = vadd.f32 %v430, %v481
      %v501 = vadd.f32 %v430, %v485
      %v502 = vadd.f32 %v435, %v481
      %v503 = vadd.f32 %v435, %v485
      %v504 = vadd.f32 %v440, %v481
      %v505 = vadd.f32 %v440, %v485
      %v506 = vadd.f32 %v445, %v481
      %v507 = vadd.f32 %v445, %v485
      %v508 = vadd.f32 %v450, %v481
      %v509 = vadd.f32 %v450, %v485
      %v510 = vadd.f32 %v455, %v481
      %v511 = vadd.f32 %v455, %v485
      %v512 = vadd.f32 %v460, %v481
      %v513 = vadd.f32 %v460, %v485
      %v514 = vadd.f32 %v465, %v481
      %v515 = vadd.f32 %v465, %v485
      %v516 = vadd.f32 %v470, %v481
      %v517 = vadd.f32 %v470, %v485
      %v518 = vadd.f32 %v475, %v481
      %v519 = vadd.f32 %v475, %v485
      %vm520 = vcmp.gt.f32.partialorder %v488, 0.0
      %vm521 = vcmp.gt.f32.partialorder %v489, 0.0
      %vm522 = vcmp.gt.f32.partialorder %v490, 0.0
      %vm523 = vcmp.gt.f32.partialorder %v491, 0.0
      %vm524 = vcmp.gt.f32.partialorder %v492, 0.0
      %vm525 = vcmp.gt.f32.partialorder %v493, 0.0
      %vm526 = vcmp.gt.f32.partialorder %v494, 0.0
      %vm527 = vcmp.gt.f32.partialorder %v495, 0.0
      %vm528 = vcmp.gt.f32.partialorder %v496, 0.0
      %vm529 = vcmp.gt.f32.partialorder %v497, 0.0
      %vm530 = vcmp.gt.f32.partialorder %v498, 0.0
      %vm531 = vcmp.gt.f32.partialorder %v499, 0.0
      %vm532 = vcmp.gt.f32.partialorder %v500, 0.0
      %vm533 = vcmp.gt.f32.partialorder %v501, 0.0
      %vm534 = vcmp.gt.f32.partialorder %v502, 0.0
      %vm535 = vcmp.gt.f32.partialorder %v503, 0.0
      %vm536 = vcmp.gt.f32.partialorder %v504, 0.0
      %vm537 = vcmp.gt.f32.partialorder %v505, 0.0
      %vm538 = vcmp.gt.f32.partialorder %v506, 0.0
      %vm539 = vcmp.gt.f32.partialorder %v507, 0.0
      %vm540 = vcmp.gt.f32.partialorder %v508, 0.0
      %vm541 = vcmp.gt.f32.partialorder %v509, 0.0
      %vm542 = vcmp.gt.f32.partialorder %v510, 0.0
      %vm543 = vcmp.gt.f32.partialorder %v511, 0.0
      %vm544 = vcmp.gt.f32.partialorder %v512, 0.0
      %vm545 = vcmp.gt.f32.partialorder %v513, 0.0
      %vm546 = vcmp.gt.f32.partialorder %v514, 0.0
      %vm547 = vcmp.gt.f32.partialorder %v515, 0.0
      %vm548 = vcmp.gt.f32.partialorder %v516, 0.0
      %vm549 = vcmp.gt.f32.partialorder %v517, 0.0
      %vm550 = vcmp.gt.f32.partialorder %v518, 0.0
      %vm551 = vcmp.gt.f32.partialorder %v519, 0.0
      %v552 = vmul.f32 %v488, 0.2
      %v553 = vmul.f32 %v489, 0.2
      %v554 = vmul.f32 %v490, 0.2
      %v555 = vmul.f32 %v491, 0.2
      %v556 = vmul.f32 %v492, 0.2
      %v557 = vmul.f32 %v493, 0.2
      %v558 = vmul.f32 %v494, 0.2
      %v559 = vmul.f32 %v495, 0.2
      %v560 = vmul.f32 %v496, 0.2
      %v561 = vmul.f32 %v497, 0.2
      %v562 = vmul.f32 %v498, 0.2
      %v563 = vmul.f32 %v499, 0.2
      %v564 = vmul.f32 %v500, 0.2
      %v565 = vmul.f32 %v501, 0.2
      %v566 = vmul.f32 %v502, 0.2
      %v567 = vmul.f32 %v503, 0.2
      %v568 = vmul.f32 %v504, 0.2
      %v569 = vmul.f32 %v505, 0.2
      %v570 = vmul.f32 %v506, 0.2
      %v571 = vmul.f32 %v507, 0.2
      %v572 = vmul.f32 %v508, 0.2
      %v573 = vmul.f32 %v509, 0.2
      %v574 = vmul.f32 %v510, 0.2
      %v575 = vmul.f32 %v511, 0.2
      %v576 = vmul.f32 %v512, 0.2
      %v577 = vmul.f32 %v513, 0.2
      %v578 = vmul.f32 %v514, 0.2
      %v579 = vmul.f32 %v515, 0.2
      %v580 = vmul.f32 %v516, 0.2
      %v581 = vmul.f32 %v517, 0.2
      %v582 = vmul.f32 %v518, 0.2
      %v583 = vmul.f32 %v519, 0.2
      %v584 = vsel %vm520, %v488, %v552
      %v585 = vsel %vm521, %v489, %v553
      %v586 = vsel %vm522, %v490, %v554
      %v587 = vsel %vm523, %v491, %v555
      %v588 = vsel %vm524, %v492, %v556
      %v589 = vsel %vm525, %v493, %v557
      %v590 = vsel %vm526, %v494, %v558
      %v591 = vsel %vm527, %v495, %v559
      %v592 = vsel %vm528, %v496, %v560
      %v593 = vsel %vm529, %v497, %v561
      %v594 = vsel %vm530, %v498, %v562
      %v595 = vsel %vm531, %v499, %v563
      %v596 = vsel %vm532, %v500, %v564
      %v597 = vsel %vm533, %v501, %v565
      %v598 = vsel %vm534, %v502, %v566
      %v599 = vsel %vm535, %v503, %v567
      %v600 = vsel %vm536, %v504, %v568
      %v601 = vsel %vm537, %v505, %v569
      %v602 = vsel %vm538, %v506, %v570
      %v603 = vsel %vm539, %v507, %v571
      %v604 = vsel %vm540, %v508, %v572
      %v605 = vsel %vm541, %v509, %v573
      %v606 = vsel %vm542, %v510, %v574
      %v607 = vsel %vm543, %v511, %v575
      %v608 = vsel %vm544, %v512, %v576
      %v609 = vsel %vm545, %v513, %v577
      %v610 = vsel %vm546, %v514, %v578
      %v611 = vsel %vm547, %v515, %v579
      %v612 = vsel %vm548, %v516, %v580
      %v613 = vsel %vm549, %v517, %v581
      %v614 = vsel %vm550, %v518, %v582
      %v615 = vsel %vm551, %v519, %v583
      %v616 = vadd.f32 %v584, %v348
      %v617 = vadd.f32 %v585, %v349
      %v618 = vadd.f32 %v586, %v350
      %v619 = vadd.f32 %v587, %v351
      %v620 = vadd.f32 %v588, %v352
      %v621 = vadd.f32 %v589, %v353
      %v622 = vadd.f32 %v590, %v354
      %v623 = vadd.f32 %v591, %v355
      %v624 = vadd.f32 %v592, %v356
      %v625 = vadd.f32 %v593, %v357
      %v626 = vadd.f32 %v594, %v358
      %v627 = vadd.f32 %v595, %v359
      %v628 = vadd.f32 %v596, %v360
      %v629 = vadd.f32 %v597, %v361
      %v630 = vadd.f32 %v598, %v362
      %v631 = vadd.f32 %v599, %v363
      %v632 = vadd.f32 %v600, %v364
      %v633 = vadd.f32 %v601, %v365
      %v634 = vadd.f32 %v602, %v366
      %v635 = vadd.f32 %v603, %v367
      %v636 = vadd.f32 %v604, %v368
      %v637 = vadd.f32 %v605, %v369
      %v638 = vadd.f32 %v606, %v370
      %v639 = vadd.f32 %v607, %v371
      %v640 = vadd.f32 %v608, %v372
      %v641 = vadd.f32 %v609, %v373
      %v642 = vadd.f32 %v610, %v374
      %v643 = vadd.f32 %v611, %v375
      %v644 = vadd.f32 %v612, %v376
      %v645 = vadd.f32 %v613, %v377
      %v646 = vadd.f32 %v614, %v378
      %v647 = vadd.f32 %v615, %v379
      %v648 = vmax.f32 %v616, %v617
      %649 = vmax.xlane.f32.xlu0 %v648
      %v650 = vpop.xlane.xlu0 %649
      %v651 = vmax.f32 %v618, %v619
      %652 = vmax.xlane.f32.xlu0 %v651
      %v653 = vpop.xlane.xlu0 %652
      %v654 = vmax.f32 %v620, %v621
      %655 = vmax.xlane.f32.xlu0 %v654
      %v656 = vpop.xlane.xlu0 %655
      %v657 = vmax.f32 %v622, %v623
      %658 = vmax.xlane.f32.xlu0 %v657
      %v659 = vpop.xlane.xlu0 %658
      %v660 = vmax.f32 %v624, %v625
      %661 = vmax.xlane.f32.xlu0 %v660
      %v662 = vpop.xlane.xlu0 %661
      %v663 = vmax.f32 %v626, %v627
      %664 = vmax.xlane.f32.xlu0 %v663
      %v665 = vpop.xlane.xlu0 %664
      %v666 = vmax.f32 %v628, %v629
      %667 = vmax.xlane.f32.xlu0 %v666
      %v668 = vpop.xlane.xlu0 %667
      %v669 = vmax.f32 %v630, %v631
      %670 = vmax.xlane.f32.xlu0 %v669
      %v671 = vpop.xlane.xlu0 %670
      %v672 = vmax.f32 %v632, %v633
      %673 = vmax.xlane.f32.xlu0 %v672
      %v674 = vpop.xlane.xlu0 %673
      %v675 = vmax.f32 %v634, %v635
      %676 = vmax.xlane.f32.xlu0 %v675
      %v677 = vpop.xlane.xlu0 %676
      %v678 = vmax.f32 %v636, %v637
      %679 = vmax.xlane.f32.xlu0 %v678
      %v680 = vpop.xlane.xlu0 %679
      %v681 = vmax.f32 %v638, %v639
      %682 = vmax.xlane.f32.xlu0 %v681
      %v683 = vpop.xlane.xlu0 %682
      %v684 = vmax.f32 %v640, %v641
      %685 = vmax.xlane.f32.xlu0 %v684
      %v686 = vpop.xlane.xlu0 %685
      %v687 = vmax.f32 %v642, %v643
      %688 = vmax.xlane.f32.xlu0 %v687
      %v689 = vpop.xlane.xlu0 %688
      %v690 = vmax.f32 %v644, %v645
      %691 = vmax.xlane.f32.xlu0 %v690
      %v692 = vpop.xlane.xlu0 %691
      %v693 = vmax.f32 %v646, %v647
      %694 = vmax.xlane.f32.xlu0 %v693
      %v695 = vpop.xlane.xlu0 %694
      %v696 = vsub.f32 %v616, %v650
      %v697 = vsub.f32 %v617, %v650
      %v698 = vsub.f32 %v618, %v653
      %v699 = vsub.f32 %v619, %v653
      %v700 = vsub.f32 %v620, %v656
      %v701 = vsub.f32 %v621, %v656
      %v702 = vsub.f32 %v622, %v659
      %v703 = vsub.f32 %v623, %v659
      %v704 = vsub.f32 %v624, %v662
      %v705 = vsub.f32 %v625, %v662
      %v706 = vsub.f32 %v626, %v665
      %v707 = vsub.f32 %v627, %v665
      %v708 = vsub.f32 %v628, %v668
      %v709 = vsub.f32 %v629, %v668
      %v710 = vsub.f32 %v630, %v671
      %v711 = vsub.f32 %v631, %v671
      %v712 = vsub.f32 %v632, %v674
      %v713 = vsub.f32 %v633, %v674
      %v714 = vsub.f32 %v634, %v677
      %v715 = vsub.f32 %v635, %v677
      %v716 = vsub.f32 %v636, %v680
      %v717 = vsub.f32 %v637, %v680
      %v718 = vsub.f32 %v638, %v683
      %v719 = vsub.f32 %v639, %v683
      %v720 = vsub.f32 %v640, %v686
      %v721 = vsub.f32 %v641, %v686
      %v722 = vsub.f32 %v642, %v689
      %v723 = vsub.f32 %v643, %v689
      %v724 = vsub.f32 %v644, %v692
      %v725 = vsub.f32 %v645, %v692
      %v726 = vsub.f32 %v646, %v695
      %v727 = vsub.f32 %v647, %v695
      %v728 = vmul.f32 %v696, 1.442695
      %v729 = vpow.pop %v728
      %v730 = vmul.f32 %v697, 1.442695
      %v731 = vpow.pop %v730
      %v732 = vmul.f32 %v698, 1.442695
      %v733 = vpow.pop %v732
      %v734 = vmul.f32 %v699, 1.442695
      %v735 = vpow.pop %v734
      %v736 = vmul.f32 %v700, 1.442695
      %v737 = vpow.pop %v736
      %v738 = vmul.f32 %v701, 1.442695
      %v739 = vpow.pop %v738
      %v740 = vmul.f32 %v702, 1.442695
      %v741 = vpow.pop %v740
      %v742 = vmul.f32 %v703, 1.442695
      %v743 = vpow.pop %v742
      %v744 = vmul.f32 %v704, 1.442695
      %v745 = vpow.pop %v744
      %v746 = vmul.f32 %v705, 1.442695
      %v747 = vpow.pop %v746
      %v748 = vmul.f32 %v706, 1.442695
      %v749 = vpow.pop %v748
      %v750 = vmul.f32 %v707, 1.442695
      %v751 = vpow.pop %v750
      %v752 = vmul.f32 %v708, 1.442695
      %v753 = vpow.pop %v752
      %v754 = vmul.f32 %v709, 1.442695
      %v755 = vpow.pop %v754
      %v756 = vmul.f32 %v710, 1.442695
      %v757 = vpow.pop %v756
      %v758 = vmul.f32 %v711, 1.442695
      %v759 = vpow.pop %v758
      %v760 = vmul.f32 %v712, 1.442695
      %v761 = vpow.pop %v760
      %v762 = vmul.f32 %v713, 1.442695
      %v763 = vpow.pop %v762
      %v764 = vmul.f32 %v714, 1.442695
      %v765 = vpow.pop %v764
      %v766 = vmul.f32 %v715, 1.442695
      %v767 = vpow.pop %v766
      %v768 = vmul.f32 %v716, 1.442695
      %v769 = vpow.pop %v768
      %v770 = vmul.f32 %v717, 1.442695
      %v771 = vpow.pop %v770
      %v772 = vmul.f32 %v718, 1.442695
      %v773 = vpow.pop %v772
      %v774 = vmul.f32 %v719, 1.442695
      %v775 = vpow.pop %v774
      %v776 = vmul.f32 %v720, 1.442695
      %v777 = vpow.pop %v776
      %v778 = vmul.f32 %v721, 1.442695
      %v779 = vpow.pop %v778
      %v780 = vmul.f32 %v722, 1.442695
      %v781 = vpow.pop %v780
      %v782 = vmul.f32 %v723, 1.442695
      %v783 = vpow.pop %v782
      %v784 = vmul.f32 %v724, 1.442695
      %v785 = vpow.pop %v784
      %v786 = vmul.f32 %v725, 1.442695
      %v787 = vpow.pop %v786
      %v788 = vmul.f32 %v726, 1.442695
      %v789 = vpow.pop %v788
      %v790 = vmul.f32 %v727, 1.442695
      %v791 = vpow.pop %v790
      %v792 = vadd.f32 %v729, %v731
      %793 = vadd.xlane.f32.xlu0 %v792
      %v794 = vpop.xlane.xlu0 %793
      %v795 = vadd.f32 %v733, %v735
      %796 = vadd.xlane.f32.xlu0 %v795
      %v797 = vpop.xlane.xlu0 %796
      %v798 = vadd.f32 %v737, %v739
      %799 = vadd.xlane.f32.xlu0 %v798
      %v800 = vpop.xlane.xlu0 %799
      %v801 = vadd.f32 %v741, %v743
      %802 = vadd.xlane.f32.xlu0 %v801
      %v803 = vpop.xlane.xlu0 %802
      %v804 = vadd.f32 %v745, %v747
      %805 = vadd.xlane.f32.xlu0 %v804
      %v806 = vpop.xlane.xlu0 %805
      %v807 = vadd.f32 %v749, %v751
      %808 = vadd.xlane.f32.xlu0 %v807
      %v809 = vpop.xlane.xlu0 %808
      %v810 = vadd.f32 %v753, %v755
      %811 = vadd.xlane.f32.xlu0 %v810
      %v812 = vpop.xlane.xlu0 %811
      %v813 = vadd.f32 %v757, %v759
      %814 = vadd.xlane.f32.xlu0 %v813
      %v815 = vpop.xlane.xlu0 %814
      %v816 = vadd.f32 %v761, %v763
      %817 = vadd.xlane.f32.xlu0 %v816
      %v818 = vpop.xlane.xlu0 %817
      %v819 = vadd.f32 %v765, %v767
      %820 = vadd.xlane.f32.xlu0 %v819
      %v821 = vpop.xlane.xlu0 %820
      %v822 = vadd.f32 %v769, %v771
      %823 = vadd.xlane.f32.xlu0 %v822
      %v824 = vpop.xlane.xlu0 %823
      %v825 = vadd.f32 %v773, %v775
      %826 = vadd.xlane.f32.xlu0 %v825
      %v827 = vpop.xlane.xlu0 %826
      %v828 = vadd.f32 %v777, %v779
      %829 = vadd.xlane.f32.xlu0 %v828
      %v830 = vpop.xlane.xlu0 %829
      %v831 = vadd.f32 %v781, %v783
      %832 = vadd.xlane.f32.xlu0 %v831
      %v833 = vpop.xlane.xlu0 %832
      %v834 = vadd.f32 %v785, %v787
      %835 = vadd.xlane.f32.xlu0 %v834
      %v836 = vpop.xlane.xlu0 %835
      %v837 = vadd.f32 %v789, %v791
      %838 = vadd.xlane.f32.xlu0 %v837
      %v839 = vpop.xlane.xlu0 %838
      %vm840 = vcmp.gt.f32.partialorder %v650, -1e+20
      %vm841 = vcmp.gt.f32.partialorder %v653, -1e+20
      %vm842 = vcmp.gt.f32.partialorder %v656, -1e+20
      %vm843 = vcmp.gt.f32.partialorder %v659, -1e+20
      %vm844 = vcmp.gt.f32.partialorder %v662, -1e+20
      %vm845 = vcmp.gt.f32.partialorder %v665, -1e+20
      %vm846 = vcmp.gt.f32.partialorder %v668, -1e+20
      %vm847 = vcmp.gt.f32.partialorder %v671, -1e+20
      %vm848 = vcmp.gt.f32.partialorder %v674, -1e+20
      %vm849 = vcmp.gt.f32.partialorder %v677, -1e+20
      %vm850 = vcmp.gt.f32.partialorder %v680, -1e+20
      %vm851 = vcmp.gt.f32.partialorder %v683, -1e+20
      %vm852 = vcmp.gt.f32.partialorder %v686, -1e+20
      %vm853 = vcmp.gt.f32.partialorder %v689, -1e+20
      %vm854 = vcmp.gt.f32.partialorder %v692, -1e+20
      %vm855 = vcmp.gt.f32.partialorder %v695, -1e+20
      %v856 = vrcp.pop %v794
      %v857 = vrcp.pop %v797
      %v858 = vrcp.pop %v800
      %v859 = vrcp.pop %v803
      %v860 = vrcp.pop %v806
      %v861 = vrcp.pop %v809
      %v862 = vrcp.pop %v812
      %v863 = vrcp.pop %v815
      %v864 = vrcp.pop %v818
      %v865 = vrcp.pop %v821
      %v866 = vrcp.pop %v824
      %v867 = vrcp.pop %v827
      %v868 = vrcp.pop %v830
      %v869 = vrcp.pop %v833
      %v870 = vrcp.pop %v836
      %v871 = vrcp.pop %v839
      %v872 = vsel %vm840, %v856, 0.0
      %v873 = vsel %vm841, %v857, 0.0
      %v874 = vsel %vm842, %v858, 0.0
      %v875 = vsel %vm843, %v859, 0.0
      %v876 = vsel %vm844, %v860, 0.0
      %v877 = vsel %vm845, %v861, 0.0
      %v878 = vsel %vm846, %v862, 0.0
      %v879 = vsel %vm847, %v863, 0.0
      %v880 = vsel %vm848, %v864, 0.0
      %v881 = vsel %vm849, %v865, 0.0
      %v882 = vsel %vm850, %v866, 0.0
      %v883 = vsel %vm851, %v867, 0.0
      %v884 = vsel %vm852, %v868, 0.0
      %v885 = vsel %vm853, %v869, 0.0
      %v886 = vsel %vm854, %v870, 0.0
      %v887 = vsel %vm855, %v871, 0.0
      %v888 = vmul.f32 %v729, %v872
      %v889 = vmul.f32 %v731, %v872
      %v890 = vmul.f32 %v733, %v873
      %v891 = vmul.f32 %v735, %v873
      %v892 = vmul.f32 %v737, %v874
      %v893 = vmul.f32 %v739, %v874
      %v894 = vmul.f32 %v741, %v875
      %v895 = vmul.f32 %v743, %v875
      %v896 = vmul.f32 %v745, %v876
      %v897 = vmul.f32 %v747, %v876
      %v898 = vmul.f32 %v749, %v877
      %v899 = vmul.f32 %v751, %v877
      %v900 = vmul.f32 %v753, %v878
      %v901 = vmul.f32 %v755, %v878
      %v902 = vmul.f32 %v757, %v879
      %v903 = vmul.f32 %v759, %v879
      %v904 = vmul.f32 %v761, %v880
      %v905 = vmul.f32 %v763, %v880
      %v906 = vmul.f32 %v765, %v881
      %v907 = vmul.f32 %v767, %v881
      %v908 = vmul.f32 %v769, %v882
      %v909 = vmul.f32 %v771, %v882
      %v910 = vmul.f32 %v773, %v883
      %v911 = vmul.f32 %v775, %v883
      %v912 = vmul.f32 %v777, %v884
      %v913 = vmul.f32 %v779, %v884
      %v914 = vmul.f32 %v781, %v885
      %v915 = vmul.f32 %v783, %v885
      %v916 = vmul.f32 %v785, %v886
      %v917 = vmul.f32 %v787, %v886
      %v918 = vmul.f32 %v789, %v887
      %v919 = vmul.f32 %v791, %v887
      %v920 = vpack.c.bf16 %v890, %v888
      %v921 = vpack.c.bf16 %v891, %v889
      %v922 = vpack.c.bf16 %v894, %v892
      %v923 = vpack.c.bf16 %v895, %v893
      %v924 = vpack.c.bf16 %v898, %v896
      %v925 = vpack.c.bf16 %v899, %v897
      %v926 = vpack.c.bf16 %v902, %v900
      %v927 = vpack.c.bf16 %v903, %v901
      %v928 = vpack.c.bf16 %v906, %v904
      %v929 = vpack.c.bf16 %v907, %v905
      %v930 = vpack.c.bf16 %v910, %v908
      %v931 = vpack.c.bf16 %v911, %v909
      %v932 = vpack.c.bf16 %v914, %v912
      %v933 = vpack.c.bf16 %v915, %v913
      %v934 = vpack.c.bf16 %v918, %v916
      %v935 = vpack.c.bf16 %v919, %v917
      %v936 = vld [vmem:[%s1] sm:$0xf]
      %v937 = vld [vmem:[%s1 + $0x4] sm:$0xf]
      %v938 = vld [vmem:[%s1 + $0x8] sm:$0xf]
      %v939 = vld [vmem:[%s1 + $0xc] sm:$0xf]
      %v940 = vld [vmem:[%s1 + $0x10] sm:$0xf]
      %v941 = vld [vmem:[%s1 + $0x14] sm:$0xf]
      %v942 = vld [vmem:[%s1 + $0x18] sm:$0xf]
      %v943 = vld [vmem:[%s1 + $0x1c] sm:$0xf]
      %v944 = vld [vmem:[%s1 + $0x20] sm:$0xf]
      %v945 = vld [vmem:[%s1 + $0x24] sm:$0xf]
      %v946 = vld [vmem:[%s1 + $0x28] sm:$0xf]
      %v947 = vld [vmem:[%s1 + $0x2c] sm:$0xf]
      %v948 = vld [vmem:[%s1 + $0x30] sm:$0xf]
      %v949 = vld [vmem:[%s1 + $0x34] sm:$0xf]
      %v950 = vld [vmem:[%s1 + $0x38] sm:$0xf]
      %v951 = vld [vmem:[%s1 + $0x3c] sm:$0xf]
      %v952 = vld [vmem:[%s1 + $0x40] sm:$0xf]
      %v953 = vld [vmem:[%s1 + $0x44] sm:$0xf]
      %v954 = vld [vmem:[%s1 + $0x48] sm:$0xf]
      %v955 = vld [vmem:[%s1 + $0x4c] sm:$0xf]
      %v956 = vld [vmem:[%s1 + $0x50] sm:$0xf]
      %v957 = vld [vmem:[%s1 + $0x54] sm:$0xf]
      %v958 = vld [vmem:[%s1 + $0x58] sm:$0xf]
      %v959 = vld [vmem:[%s1 + $0x5c] sm:$0xf]
      %v960 = vld [vmem:[%s1 + $0x60] sm:$0xf]
      %v961 = vld [vmem:[%s1 + $0x64] sm:$0xf]
      %v962 = vld [vmem:[%s1 + $0x68] sm:$0xf]
      %v963 = vld [vmem:[%s1 + $0x6c] sm:$0xf]
      %v964 = vld [vmem:[%s1 + $0x70] sm:$0xf]
      %v965 = vld [vmem:[%s1 + $0x74] sm:$0xf]
      %v966 = vld [vmem:[%s1 + $0x78] sm:$0xf]
      %v967 = vld [vmem:[%s1 + $0x7c] sm:$0xf]
      %v968 = vld [vmem:[%s267] sm:$0xff]
      %v969 = vld [vmem:[%s267 + $0x8] sm:$0xff]
      %v970 = vld [vmem:[%s267 + $0x10] sm:$0xff]
      %v971 = vld [vmem:[%s267 + $0x18] sm:$0xff]
      %v972 = vld [vmem:[%s267 + $0x20] sm:$0xff]
      %v973 = vld [vmem:[%s267 + $0x28] sm:$0xff]
      %v974 = vld [vmem:[%s267 + $0x30] sm:$0xff]
      %v975 = vld [vmem:[%s267 + $0x38] sm:$0xff]
      %v976 = vld [vmem:[%s267 + $0x40] sm:$0xff]
      %v977 = vld [vmem:[%s267 + $0x48] sm:$0xff]
      %v978 = vld [vmem:[%s267 + $0x50] sm:$0xff]
      %v979 = vld [vmem:[%s267 + $0x58] sm:$0xff]
      %v980 = vld [vmem:[%s267 + $0x60] sm:$0xff]
      %v981 = vld [vmem:[%s267 + $0x68] sm:$0xff]
      %v982 = vld [vmem:[%s267 + $0x70] sm:$0xff]
      %v983 = vld [vmem:[%s267 + $0x78] sm:$0xff]
      %v1016 = vunpack.c.l.b16 %v936
      %v1017 = vunpack.c.l.b16 %v937
      %v1018 = vunpack.c.l.b16 %v938
      %v1019 = vunpack.c.l.b16 %v939
      %v1020 = vunpack.c.l.b16 %v940
      %v1021 = vunpack.c.l.b16 %v941
      %v1022 = vunpack.c.l.b16 %v942
      %v1023 = vunpack.c.l.b16 %v943
      %v1024 = vunpack.c.l.b16 %v944
      %v1025 = vunpack.c.l.b16 %v945
      %v1026 = vunpack.c.l.b16 %v946
      %v1027 = vunpack.c.l.b16 %v947
      %v1028 = vunpack.c.l.b16 %v948
      %v1029 = vunpack.c.l.b16 %v949
      %v1030 = vunpack.c.l.b16 %v950
      %v1031 = vunpack.c.l.b16 %v951
      %v1032 = vunpack.c.l.b16 %v952
      %v1033 = vunpack.c.l.b16 %v953
      %v1034 = vunpack.c.l.b16 %v954
      %v1035 = vunpack.c.l.b16 %v955
      %v1036 = vunpack.c.l.b16 %v956
      %v1037 = vunpack.c.l.b16 %v957
      %v1038 = vunpack.c.l.b16 %v958
      %v1039 = vunpack.c.l.b16 %v959
      %v1040 = vunpack.c.l.b16 %v960
      %v1041 = vunpack.c.l.b16 %v961
      %v1042 = vunpack.c.l.b16 %v962
      %v1043 = vunpack.c.l.b16 %v963
      %v1044 = vunpack.c.l.b16 %v964
      %v1045 = vunpack.c.l.b16 %v965
      %v1046 = vunpack.c.l.b16 %v966
      %v1047 = vunpack.c.l.b16 %v967
      %v1048 = vpack.c.b16 %v1017, %v1016
      %v1049 = vpack.c.b16 %v1019, %v1018
      %v1050 = vpack.c.b16 %v1021, %v1020
      %v1051 = vpack.c.b16 %v1023, %v1022
      %v1052 = vpack.c.b16 %v1025, %v1024
      %v1053 = vpack.c.b16 %v1027, %v1026
      %v1054 = vpack.c.b16 %v1029, %v1028
      %v1055 = vpack.c.b16 %v1031, %v1030
      %v1056 = vpack.c.b16 %v1033, %v1032
      %v1057 = vpack.c.b16 %v1035, %v1034
      %v1058 = vpack.c.b16 %v1037, %v1036
      %v1059 = vpack.c.b16 %v1039, %v1038
      %v1060 = vpack.c.b16 %v1041, %v1040
      %v1061 = vpack.c.b16 %v1043, %v1042
      %v1062 = vpack.c.b16 %v1045, %v1044
      %v1063 = vpack.c.b16 %v1047, %v1046
      %1080 = vmatprep.subr.bf16.mxu0 0
      %1081 = vmatpush1.bf16.msra.mxu0 %v1055
      %1082 = vmatprep.subr.bf16.mxu0 0
      %1083 = vmatpush1.bf16.msra.mxu0 %v1054
      %1084 = vmatprep.subr.bf16.mxu0 0
      %1085 = vmatpush1.bf16.msra.mxu0 %v1053
      %1086 = vmatprep.subr.bf16.mxu0 0
      %1087 = vmatpush1.bf16.msra.mxu0 %v1052
      %1088 = vmatprep.subr.bf16.mxu0 0
      %1089 = vmatpush1.bf16.msra.mxu0 %v1051
      %1090 = vmatprep.subr.bf16.mxu0 0
      %1091 = vmatpush1.bf16.msra.mxu0 %v1050
      %1092 = vmatprep.subr.bf16.mxu0 0
      %1093 = vmatpush1.bf16.msra.mxu0 %v1049
      %1094 = vmatprep.subr.bf16.mxu0 0
      %1095 = vmatpush1.bf16.msra.mxu0 %v1048
      %1096 = vmatprep.subr.bf16.mxu0 0
      %1097 = vmatpush2.bf16.msra.mxu0 %v1063
      %1098 = vmatprep.subr.bf16.mxu0 0
      %1099 = vmatpush2.bf16.msra.mxu0 %v1062
      %1100 = vmatprep.subr.bf16.mxu0 0
      %1101 = vmatpush2.bf16.msra.mxu0 %v1061
      %1102 = vmatprep.subr.bf16.mxu0 0
      %1103 = vmatpush2.bf16.msra.mxu0 %v1060
      %1104 = vmatprep.subr.bf16.mxu0 0
      %1105 = vmatpush2.bf16.msra.mxu0 %v1059
      %1106 = vmatprep.subr.bf16.mxu0 0
      %1107 = vmatpush2.bf16.msra.mxu0 %v1058
      %1108 = vmatprep.subr.bf16.mxu0 0
      %1109 = vmatpush2.bf16.msra.mxu0 %v1057
      %1110 = vmatprep.subr.bf16.mxu0 0
      %1111 = vmatpush2.bf16.msra.mxu0 %v1056
      %1112 = vmatprep.mubr.bf16.mxu0 %v921
      %1113 = vmatmul.mubr.bf16.gmra.mxu0 %v920
      %v1114 = vpop.f32.mrf.mxu0
      %v1115 = vadd.f32 %v968, %v1114
      %v1116 = vpop.f32.mrf.mxu0
      %v1117 = vpop.f32.mrf.mxu0
      %v1118 = vadd.f32 %v969, %v1117
      %v1119 = vpop.f32.mrf.mxu0
      %1120 = vmatprep.mubr.bf16.mxu0 %v923
      %1121 = vmatmul.mubr.bf16.gmra.mxu0 %v922
      %v1122 = vpop.f32.mrf.mxu0
      %v1123 = vadd.f32 %v970, %v1122
      %v1124 = vpop.f32.mrf.mxu0
      %v1125 = vpop.f32.mrf.mxu0
      %v1126 = vadd.f32 %v971, %v1125
      %v1127 = vpop.f32.mrf.mxu0
      %1128 = vmatprep.mubr.bf16.mxu0 %v925
      %1129 = vmatmul.mubr.bf16.gmra.mxu0 %v924
      %v1130 = vpop.f32.mrf.mxu0
      %v1131 = vadd.f32 %v972, %v1130
      %v1132 = vpop.f32.mrf.mxu0
      %v1133 = vpop.f32.mrf.mxu0
      %v1134 = vadd.f32 %v973, %v1133
      %v1135 = vpop.f32.mrf.mxu0
      %1136 = vmatprep.mubr.bf16.mxu0 %v927
      %1137 = vmatmul.mubr.bf16.gmra.mxu0 %v926
      %v1138 = vpop.f32.mrf.mxu0
      %v1139 = vadd.f32 %v974, %v1138
      %v1140 = vpop.f32.mrf.mxu0
      %v1141 = vpop.f32.mrf.mxu0
      %v1142 = vadd.f32 %v975, %v1141
      %v1143 = vpop.f32.mrf.mxu0
      %1144 = vmatprep.mubr.bf16.mxu0 %v929
      %1145 = vmatmul.mubr.bf16.gmra.mxu0 %v928
      %v1146 = vpop.f32.mrf.mxu0
      %v1147 = vadd.f32 %v976, %v1146
      %v1148 = vpop.f32.mrf.mxu0
      %v1149 = vpop.f32.mrf.mxu0
      %v1150 = vadd.f32 %v977, %v1149
      %v1151 = vpop.f32.mrf.mxu0
      %1152 = vmatprep.mubr.bf16.mxu0 %v931
      %1153 = vmatmul.mubr.bf16.gmra.mxu0 %v930
      %v1154 = vpop.f32.mrf.mxu0
      %v1155 = vadd.f32 %v978, %v1154
      %v1156 = vpop.f32.mrf.mxu0
      %v1157 = vpop.f32.mrf.mxu0
      %v1158 = vadd.f32 %v979, %v1157
      %v1159 = vpop.f32.mrf.mxu0
      %1160 = vmatprep.mubr.bf16.mxu0 %v933
      %1161 = vmatmul.mubr.bf16.gmra.mxu0 %v932
      %v1162 = vpop.f32.mrf.mxu0
      %v1163 = vadd.f32 %v980, %v1162
      %v1164 = vpop.f32.mrf.mxu0
      %v1165 = vpop.f32.mrf.mxu0
      %v1166 = vadd.f32 %v981, %v1165
      %v1167 = vpop.f32.mrf.mxu0
      %1168 = vmatprep.mubr.bf16.mxu0 %v935
      %1169 = vmatmul.mubr.bf16.gmra.mxu0 %v934
      %v1170 = vpop.f32.mrf.mxu0
      %v1171 = vadd.f32 %v982, %v1170
      %v1172 = vpop.f32.mrf.mxu0
      %v1173 = vpop.f32.mrf.mxu0
      %v1174 = vadd.f32 %v983, %v1173
      %v1175 = vpop.f32.mrf.mxu0
      %1176 = vdwg.mxu0
      %vm1177 = vcmask 64512
      %v1178 = vsel %vm1177, %v1115, 0.0
      %v1179 = vsel %vm1177, %v1118, 0.0
      %v1180 = vsel %vm1177, %v1123, 0.0
      %v1181 = vsel %vm1177, %v1126, 0.0
      %v1182 = vsel %vm1177, %v1131, 0.0
      %v1183 = vsel %vm1177, %v1134, 0.0
      %v1184 = vsel %vm1177, %v1139, 0.0
      %v1185 = vsel %vm1177, %v1142, 0.0
      %v1186 = vsel %vm1177, %v1147, 0.0
      %v1187 = vsel %vm1177, %v1150, 0.0
      %v1188 = vsel %vm1177, %v1155, 0.0
      %v1189 = vsel %vm1177, %v1158, 0.0
      %v1190 = vsel %vm1177, %v1163, 0.0
      %v1191 = vsel %vm1177, %v1166, 0.0
      %v1192 = vsel %vm1177, %v1171, 0.0
      %v1193 = vsel %vm1177, %v1174, 0.0
      %1194 = vst [vmem:[%s273] sm:$0xff] %v1178
      %1195 = vst [vmem:[%s273 + $0x8] sm:$0xff] %v1179
      %1196 = vst [vmem:[%s273 + $0x10] sm:$0xff] %v1180
      %1197 = vst [vmem:[%s273 + $0x18] sm:$0xff] %v1181
      %1198 = vst [vmem:[%s273 + $0x20] sm:$0xff] %v1182
      %1199 = vst [vmem:[%s273 + $0x28] sm:$0xff] %v1183
      %1200 = vst [vmem:[%s273 + $0x30] sm:$0xff] %v1184
      %1201 = vst [vmem:[%s273 + $0x38] sm:$0xff] %v1185
      %1202 = vst [vmem:[%s273 + $0x40] sm:$0xff] %v1186
      %1203 = vst [vmem:[%s273 + $0x48] sm:$0xff] %v1187
      %1204 = vst [vmem:[%s273 + $0x50] sm:$0xff] %v1188
      %1205 = vst [vmem:[%s273 + $0x58] sm:$0xff] %v1189
      %1206 = vst [vmem:[%s273 + $0x60] sm:$0xff] %v1190
      %1207 = vst [vmem:[%s273 + $0x68] sm:$0xff] %v1191
      %1208 = vst [vmem:[%s273 + $0x70] sm:$0xff] %v1192
      %1209 = vst [vmem:[%s273 + $0x78] sm:$0xff] %v1193
      %s1210 = smul.u32 16, %s16
      %p1211 = scmp.lt.s32.totalorder %s1210, 31
      %s1212 = scalar_select %p1211, %s1210, 31
      %s1213 = smul.addr %s1212, 8
      %s1214 = scalar_lea.vmem %s5, %s1213
      // Predicated region
      $region41: #{gat_body_forward.5} parent=39 // pred_check
        %p1215 = pneg %p154
      $region42: #{gat_body_forward.5} parent=39 // pred_check_branch
        %1217 = sbr.rel (%p1215) target = $region44
      $region43: #{gat_body_forward.5} parent=39 // pred_region
        %s1218 = smul.u32 16, %s16
      $region44: #{gat_body_forward.5} parent=39 // pred_fallthru
        _
    $region40: #{gat_body_forward.5} parent=5 // pred_fallthru
      _
    %p1219 = scmp.le.s32.totalorder 2, %s11
    // Predicated region
    $region45: #{gat_body_forward.5} parent=5 // pred_check
      %p1220 = pneg %p1219
    $region46: #{gat_body_forward.5} parent=5 // pred_check_branch
      %1222 = sbr.rel (%p1220) target = $region48
    $region47: #{gat_body_forward.5} parent=5 // pred_region
      %s1223 = ssub.s32 %s11, 2
      // Predicated region
      $region49: #{gat_body_forward.5} parent=47 // pred_check
        %p1224 = pneg %p160
      $region50: #{gat_body_forward.5} parent=47 // pred_check_branch
        %1226 = sbr.rel (%p1224) target = $region52
      $region51: #{gat_body_forward.5} parent=47 // pred_region
        %s1227 = smul.u32 16, %s17
        %p1228 = scmp.lt.s32.totalorder %s1227, 31
        %s1229 = scalar_select %p1228, %s1227, 31
        %s1230 = smul.addr %s1229, 8
        %s1231 = scalar_lea.vmem %s5, %s1230
      $region52: #{gat_body_forward.5} parent=47 // pred_fallthru
        _
    $region48: #{gat_body_forward.5} parent=5 // pred_fallthru
      _
  $region6: #{gat_body_forward.5} parent=0 // loop_footer
    %s15 = sadd.s32 1, %s11
  $region7: #{gat_body_forward.5} parent=0 // loop_footer_branch
    %10 = sbr.rel target = $region3
  $region8: #{gat_body_forward.5} parent=0 // loop_exit
    _

</llo_original>
